<compile_context>
chip_gen: v6e
topology: v6e:2x2x1
jax: 0.10.0
libtpu: 0.0.40
codegen_flags: <defaults>
</compile_context>

<pallas_src>
import functools

import jax
import jax.numpy as jnp
from jax.experimental import pallas as pl
from jax.experimental.pallas import tpu as pltpu


# ---------------------------------------------------------------------------
# Tiled matmul (+ optional bias) kernels
# ---------------------------------------------------------------------------
def _matmul_kernel(x_ref, w_ref, o_ref, acc_ref):
    @pl.when(pl.program_id(2) == 0)
    def _():
        acc_ref[...] = jnp.zeros_like(acc_ref)

    acc_ref[...] += jnp.dot(x_ref[...], w_ref[...], preferred_element_type=jnp.float32)

    @pl.when(pl.program_id(2) == pl.num_programs(2) - 1)
    def _():
        o_ref[...] = acc_ref[...].astype(o_ref.dtype)


def _matmul_bias_kernel(x_ref, w_ref, b_ref, o_ref, acc_ref):
    @pl.when(pl.program_id(2) == 0)
    def _():
        acc_ref[...] = jnp.zeros_like(acc_ref)

    acc_ref[...] += jnp.dot(x_ref[...], w_ref[...], preferred_element_type=jnp.float32)

    @pl.when(pl.program_id(2) == pl.num_programs(2) - 1)
    def _():
        # Bias is added exactly once, on the final K step.
        o_ref[...] = (acc_ref[...] + b_ref[...]).astype(o_ref.dtype)


def _pick_tile(dim, target, aligns):
    """Largest divisor of `dim` that is <= target and a multiple of an entry of
    `aligns` (preferred alignments tried in order); falls back to the full dim."""
    if dim <= target:
        return dim
    for align in aligns:
        t = (target // align) * align
        while t >= align:
            if dim % t == 0:
                return t
            t -= align
    return dim  # fallback: whole dimension (always correct)


def pallas_linear(x, w, b=None, *, out_dtype=jnp.float32, tm=512, tn=1024, tk=512):
    """Tiled (M,K)@(K,N) [+ bias] with fp32 accumulation. Inputs may be bf16."""
    M, K = x.shape
    K2, N = w.shape
    assert K == K2
    # bf16 packs 16 rows per sublane group; prefer 256-aligned N/K tiles
    # (v6e/v7x 2x256^2 MXU), falling back to 128 (v5e 4x128^2).
    tm = _pick_tile(M, tm, (16, 8))
    tn = _pick_tile(N, tn, (256, 128))
    tk = _pick_tile(K, tk, (256, 128))
    grid = (M // tm, N // tn, K // tk)

    in_specs = [
        pl.BlockSpec((tm, tk), lambda i, j, k: (i, k)),
        pl.BlockSpec((tk, tn), lambda i, j, k: (k, j)),
    ]
    args = [x, w]
    if b is None:
        kernel = _matmul_kernel
    else:
        kernel = _matmul_bias_kernel
        in_specs.append(pl.BlockSpec((1, tn), lambda i, j, k: (0, j)))
        args.append(b.reshape(1, N))

    return pl.pallas_call(
        kernel,
        out_shape=jax.ShapeDtypeStruct((M, N), out_dtype),
        grid=grid,
        in_specs=in_specs,
        out_specs=pl.BlockSpec((tm, tn), lambda i, j, k: (i, j)),
        scratch_shapes=[pltpu.VMEM((tm, tn), jnp.float32)],
        compiler_params=pltpu.CompilerParams(
            dimension_semantics=("parallel", "parallel", "arbitrary"),
            vmem_limit_bytes=32 * 1024 * 1024,
        ),
    )(*args)


# ---------------------------------------------------------------------------
# Fused factorized attention kernel — grid = (batch, head-half)
# ---------------------------------------------------------------------------
def _fd_attn_kernel(qkv_ref, o_ref, *, nt, S, h2, dh, scale):
    # qkv_ref: (n, 3, h2, dh)  — one batch element, one head-half, q|k|v stacked.
    # o_ref:   (n, h2*dh)      — this half's merged-head output columns.
    n = nt * S
    half = pl.program_id(1)

    def attend(L):
        # Reference .view(): token axis reinterpreted as (n // L, L) — groups are
        # consecutive chunks of L tokens.  All h2 heads * (n//L) groups batched.
        G = (n // L) * h2
        qkv = qkv_ref[...]                                        # (n, 3, h2, dh) bf16
        # Scale folded into the VMEM-resident q slab (single VPU mul, hidden
        # under the MXU); one head-major relayout per tensor on a half-slab.
        q = jnp.transpose(qkv[:, 0], (1, 0, 2)) * scale           # (h2, n, dh)
        k = jnp.transpose(qkv[:, 1], (1, 0, 2))
        v = jnp.transpose(qkv[:, 2], (1, 0, 2))
        qg = q.reshape(G, L, dh)
        kg = k.reshape(G, L, dh)
        vg = v.reshape(G, L, dh)

        s = jnp.einsum("gid,gjd->gij", qg, kg,
                       preferred_element_type=jnp.float32)        # (G, L, L) fp32
        m = jnp.max(s, axis=-1, keepdims=True)
        e = jnp.exp(s - m)                                        # fp32 EUP
        # TODO(synk): on v6e/v7x, computing exp on bf16 (s-m) halves EUP/VMEM cost.
        p = (e * pl.reciprocal(jnp.sum(e, axis=-1, keepdims=True), approx=True)
             ).astype(vg.dtype)                                   # bf16 for the MXU
        o = jnp.einsum("gij,gjd->gid", p, vg,
                       preferred_element_type=jnp.float32)        # (G, L, dh) fp32
        # Back to token order, merged head-major -> lane-dense (n, h2*dh) store.
        o = jnp.transpose(o.reshape(h2, n, dh), (1, 0, 2)).reshape(n, h2 * dh)
        o_ref[...] = o.astype(o_ref.dtype)

    @pl.when(half == 0)
    def _spatial():      # first half of the heads attends over nh*nw tokens
        attend(S)

    @pl.when(half == 1)
    def _temporal():     # second half of the heads attends over nt tokens
        attend(nt)


def pallas_fd_attention(qkv, *, nt, nh, nw, heads, dim_head):
    """qkv: (b, n, 3*heads*dh).  Returns (b, n, heads*dh) in merged-head layout."""
    b, n, _ = qkv.shape
    S = nh * nw
    h2 = heads // 2
    dh = dim_head
    assert n == nt * S
    assert heads % 2 == 0
    # Each grid step stores one half's columns; keep that store lane-dense.
    assert (h2 * dh) % 128 == 0, "per-half output width must be a multiple of 128"
    scale = dh ** (-0.5)

    # Free view of the projection output: (b, n, q|k|v, half, head, dh).
    qkv6 = qkv.reshape(b, n, 3, 2, h2, dh)
    kernel = functools.partial(_fd_attn_kernel, nt=nt, S=S, h2=h2, dh=dh, scale=scale)

    return pl.pallas_call(
        kernel,
        out_shape=jax.ShapeDtypeStruct((b, n, heads * dh), qkv.dtype),
        grid=(b, 2),
        in_specs=[
            # One DMA per (batch, half): q|k|v slab for that half only.
            pl.BlockSpec((None, n, 3, None, h2, dh),
                         lambda bi, half: (bi, 0, 0, half, 0, 0)),
        ],
        out_specs=pl.BlockSpec((None, n, h2 * dh), lambda bi, half: (bi, 0, half)),
        compiler_params=pltpu.CompilerParams(
            dimension_semantics=("parallel", "parallel"),
            vmem_limit_bytes=48 * 1024 * 1024,
        ),
    )(qkv6)


# ---------------------------------------------------------------------------
# FDAttention forward (Pallas)
# ---------------------------------------------------------------------------
def fd_attention_forward(x, params, *, nt, nh, nw, heads, dim_head):
    b, n, dim = x.shape
    assert n == nt * nh * nw
    inner = heads * dim_head

    compute_dtype = jnp.bfloat16  # MXU inputs; accumulation and softmax stay fp32.
    w_qkv = params["w_qkv"].astype(compute_dtype)   # no-op if already bf16
    w_out = params["w_out"].astype(compute_dtype)
    b_out = params["b_out"].astype(jnp.float32)

    # --- QKV projection: (b*n, dim) @ (dim, 3*inner) -> bf16 activations ---
    qkv = pallas_linear(
        x.reshape(b * n, dim).astype(compute_dtype), w_qkv, out_dtype=compute_dtype,
    ).reshape(b, n, 3 * inner)

    # --- Factorized attention; output already in 'b n (h d)' layout (bf16) ---
    attn = pallas_fd_attention(qkv, nt=nt, nh=nh, nw=nw, heads=heads, dim_head=dim_head)

    # --- Output projection (+ bias on the last K step). Dropout(p=0) == identity ---
    out = pallas_linear(
        attn.reshape(b * n, inner), w_out, b_out, out_dtype=jnp.float32,
    )
    return out.reshape(b, n, dim)


# ---------------------------------------------------------------------------
# Pure-JAX fp32 reference (mirrors the PyTorch module exactly)
# ---------------------------------------------------------------------------
def fd_attention_reference(x, params, *, nt, nh, nw, heads, dim_head):
    b, n, dim = x.shape
    inner = heads * dim_head
    h2 = heads // 2
    S = nh * nw
    scale = dim_head ** (-0.5)

    qkv = x @ params["w_qkv"]
    qkv = qkv.reshape(b, n, 3, heads, dim_head)
    q = jnp.transpose(qkv[:, :, 0], (0, 2, 1, 3))
    k = jnp.transpose(qkv[:, :, 1], (0, 2, 1, 3))
    v = jnp.transpose(qkv[:, :, 2], (0, 2, 1, 3))
    qs, qt = q[:, :h2], q[:, h2:]
    ks, kt = k[:, :h2], k[:, h2:]
    vs, vt = v[:, :h2], v[:, h2:]

    qs = qs.reshape(b, h2, nt, S, dim_head)
    ks = ks.reshape(b, h2, nt, S, dim_head)
    vs = vs.reshape(b, h2, nt, S, dim_head)
    sd = jnp.einsum("bhtid,bhtjd->bhtij", qs, ks) * scale
    sa = jax.nn.softmax(sd, axis=-1)
    so = jnp.einsum("bhtij,bhtjd->bhtid", sa, vs).reshape(b, h2, n, dim_head)

    qt = qt.reshape(b, h2, S, nt, dim_head)
    kt = kt.reshape(b, h2, S, nt, dim_head)
    vt = vt.reshape(b, h2, S, nt, dim_head)
    td = jnp.einsum("bhsid,bhsjd->bhsij", qt, kt) * scale
    ta = jax.nn.softmax(td, axis=-1)
    to = jnp.einsum("bhsij,bhsjd->bhsid", ta, vt).reshape(b, h2, n, dim_head)

    out = jnp.concatenate([so, to], axis=1)
    out = jnp.transpose(out, (0, 2, 1, 3)).reshape(b, n, inner)
    return out @ params["w_out"] + params["b_out"]


# ---------------------------------------------------------------------------
if __name__ == "__main__":
    # Small config consistent with the module: n = nt * nh * nw
    B, DIM = 2, 32
    NT, NH, NW = 4, 2, 2
    HEADS, DIM_HEAD = 8, 32
    N = NT * NH * NW
    INNER = HEADS * DIM_HEAD

    key = jax.random.PRNGKey(0)
    kx, kq, kw, kb = jax.random.split(key, 4)

    x = jax.random.normal(kx, (B, N, DIM), dtype=jnp.float32)
    # Stored as (in, out) so forward is x @ w (== x @ torch_weight.T).
    params = {
        "w_qkv": 0.05 * jax.random.normal(kq, (DIM, 3 * INNER), dtype=jnp.float32),
        "w_out": 0.05 * jax.random.normal(kw, (INNER, DIM), dtype=jnp.float32),
        "b_out": 0.05 * jax.random.normal(kb, (DIM,), dtype=jnp.float32),
    }
    # Cast weights to the compute dtype ONCE, outside the jitted forward
    # (avoids a per-call whole-weight HBM rewrite in the hot path).
    params_c = {
        "w_qkv": params["w_qkv"].astype(jnp.bfloat16),
        "w_out": params["w_out"].astype(jnp.bfloat16),
        "b_out": params["b_out"],
    }

    run = jax.jit(
        functools.partial(
            fd_attention_forward, nt=NT, nh=NH, nw=NW, heads=HEADS, dim_head=DIM_HEAD
        )
    )
    out = run(x, params_c)
    jax.block_until_ready(out)

    ref = fd_attention_reference(
        x, params, nt=NT, nh=NH, nw=NW, heads=HEADS, dim_head=DIM_HEAD
    )
    assert out.shape == (B, N, DIM)
    # bf16 MXU inputs (fp32 accumulation / softmax) vs fp32 reference -> looser tol.
    assert jnp.allclose(out.astype(jnp.float32), ref, rtol=2e-2, atol=2e-2), (
        "mismatch vs reference"
    )

    print("KERNEL_OK")
</pallas_src>

<mosaic_0001>
module attributes {stable_mosaic.version = 11 : i64} {
  func.func @_fd_attn_kernel(%arg0: i32, %arg1: i32, %arg2: memref<1x16x3x1x4x32xbf16, #tpu.memory_space<vmem>>, %arg3: memref<1x16x128xbf16, #tpu.memory_space<vmem>>) attributes {dimension_semantics = [#tpu.dimension_semantics<parallel>, #tpu.dimension_semantics<parallel>], iteration_bounds = array<i64: 2, 2>, scalar_prefetch = 0 : i64, scratch_operands = 0 : i64, tpu.core_type = #tpu.core_type<tc>, window_params = [{transform_indices = @transform_0, window_bounds = array<i64: 1, 16, 3, 1, 4, 32>}, {transform_indices = @transform_1, window_bounds = array<i64: 1, 16, 128>}]} {
    %c0_i32 = arith.constant 0 : i32
    %0 = arith.cmpi eq, %arg1, %c0_i32 : i32
    %1 = arith.extui %0 : i1 to i32
    %c0_i32_0 = arith.constant 0 : i32
    %2 = arith.cmpi ne, %1, %c0_i32_0 : i32
    scf.if %2 {
      %c0 = arith.constant 0 : index
      %c0_2 = arith.constant 0 : index
      %c0_3 = arith.constant 0 : index
      %c0_4 = arith.constant 0 : index
      %c0_5 = arith.constant 0 : index
      %c0_6 = arith.constant 0 : index
      %6 = vector.load %arg2[%c0, %c0_2, %c0_3, %c0_4, %c0_5, %c0_6] : memref<1x16x3x1x4x32xbf16, #tpu.memory_space<vmem>>, vector<1x16x3x1x4x32xbf16>
      %7 = vector.shape_cast %6 : vector<1x16x3x1x4x32xbf16> to vector<16x3x4x32xbf16>
      %8 = vector.extract_strided_slice %7 {offsets = [0, 0, 0, 0], sizes = [16, 1, 4, 32], strides = [1, 1, 1, 1]} : vector<16x3x4x32xbf16> to vector<16x1x4x32xbf16>
      %9 = vector.shape_cast %8 : vector<16x1x4x32xbf16> to vector<16x4x32xbf16>
      %10 = tpu.transpose %9, [1, 0, 2] : vector<16x4x32xbf16> -> vector<4x16x32xbf16>
      %cst = arith.constant 1.767580e-01 : bf16
      %11 = vector.broadcast %cst : bf16 to vector<4x16x32xbf16>
      %12 = arith.mulf %10, %11 : vector<4x16x32xbf16>
      %13 = vector.extract_strided_slice %7 {offsets = [0, 1, 0, 0], sizes = [16, 1, 4, 32], strides = [1, 1, 1, 1]} : vector<16x3x4x32xbf16> to vector<16x1x4x32xbf16>
      %14 = vector.shape_cast %13 : vector<16x1x4x32xbf16> to vector<16x4x32xbf16>
      %15 = tpu.transpose %14, [1, 0, 2] : vector<16x4x32xbf16> -> vector<4x16x32xbf16>
      %16 = vector.extract_strided_slice %7 {offsets = [0, 2, 0, 0], sizes = [16, 1, 4, 32], strides = [1, 1, 1, 1]} : vector<16x3x4x32xbf16> to vector<16x1x4x32xbf16>
      %17 = vector.shape_cast %16 : vector<16x1x4x32xbf16> to vector<16x4x32xbf16>
      %18 = tpu.transpose %17, [1, 0, 2] : vector<16x4x32xbf16> -> vector<4x16x32xbf16>
      %19 = vector.shape_cast %12 : vector<4x16x32xbf16> to vector<16x4x32xbf16>
      %20 = vector.shape_cast %15 : vector<4x16x32xbf16> to vector<16x4x32xbf16>
      %21 = vector.shape_cast %18 : vector<4x16x32xbf16> to vector<16x4x32xbf16>
      "tpu.trace_start"() <{level = 10 : i32, message = "gid,gjd->gij"}> : () -> ()
      %cst_7 = arith.constant dense<0.000000e+00> : vector<16x4x4xf32>
      %22 = tpu.matmul %19, %20, %cst_7 {dimension_numbers = #tpu.dot_dimension_numbers<[2], [2], [1], [1], [0, 0, 0, 1, 1, 1], [0], [0]>} : vector<16x4x32xbf16>, vector<16x4x32xbf16>, vector<16x4x4xf32> -> vector<16x4x4xf32>
      "tpu.trace_stop"() : () -> ()
      %cst_8 = arith.constant dense<0xFF800000> : vector<16x4xf32>
      %23 = vector.multi_reduction <maximumf>, %22, %cst_8 [2] : vector<16x4x4xf32> to vector<16x4xf32>
      %24 = vector.shape_cast %23 : vector<16x4xf32> to vector<16x4x1xf32>
      %25 = vector.broadcast %24 : vector<16x4x1xf32> to vector<16x4x4xf32>
      %26 = arith.subf %22, %25 : vector<16x4x4xf32>
      %27 = math.exp %26 : vector<16x4x4xf32>
      %cst_9 = arith.constant dense<0.000000e+00> : vector<16x4xf32>
      %28 = vector.multi_reduction <add>, %27, %cst_9 [2] : vector<16x4x4xf32> to vector<16x4xf32>
      %29 = vector.shape_cast %28 : vector<16x4xf32> to vector<16x4x1xf32>
      %30 = tpu.reciprocal %29 {approx = true} : vector<16x4x1xf32> -> vector<16x4x1xf32>
      %31 = vector.broadcast %30 : vector<16x4x1xf32> to vector<16x4x4xf32>
      %32 = arith.mulf %27, %31 : vector<16x4x4xf32>
      %33 = arith.truncf %32 : vector<16x4x4xf32> to vector<16x4x4xbf16>
      "tpu.trace_start"() <{level = 10 : i32, message = "gij,gjd->gid"}> : () -> ()
      %cst_10 = arith.constant dense<0.000000e+00> : vector<16x4x32xf32>
      %34 = tpu.matmul %33, %21, %cst_10 {dimension_numbers = #tpu.dot_dimension_numbers<[2], [1], [1], [2], [0, 0, 0, 1, 1, 2], [0], [0]>} : vector<16x4x4xbf16>, vector<16x4x32xbf16>, vector<16x4x32xf32> -> vector<16x4x32xf32>
      "tpu.trace_stop"() : () -> ()
      %35 = vector.shape_cast %34 : vector<16x4x32xf32> to vector<4x16x32xf32>
      %36 = tpu.transpose %35, [1, 0, 2] : vector<4x16x32xf32> -> vector<16x4x32xf32>
      %37 = vector.shape_cast %36 : vector<16x4x32xf32> to vector<16x128xf32>
      %38 = arith.truncf %37 : vector<16x128xf32> to vector<16x128xbf16>
      %c0_11 = arith.constant 0 : index
      %c0_12 = arith.constant 0 : index
      %c0_13 = arith.constant 0 : index
      %39 = vector.load %arg3[%c0_11, %c0_12, %c0_13] : memref<1x16x128xbf16, #tpu.memory_space<vmem>>, vector<1x16x128xbf16>
      %40 = vector.shape_cast %39 : vector<1x16x128xbf16> to vector<16x128xbf16>
      %41 = vector.shape_cast %38 : vector<16x128xbf16> to vector<1x16x128xbf16>
      tpu.vector_store %arg3[%c0_11, %c0_12, %c0_13], %41 {strides = array<i32>} : memref<1x16x128xbf16, #tpu.memory_space<vmem>>, vector<1x16x128xbf16>,
    } else {
    }
    %c1_i32 = arith.constant 1 : i32
    %3 = arith.cmpi eq, %arg1, %c1_i32 : i32
    %4 = arith.extui %3 : i1 to i32
    %c0_i32_1 = arith.constant 0 : i32
    %5 = arith.cmpi ne, %4, %c0_i32_1 : i32
    scf.if %5 {
      %c0 = arith.constant 0 : index
      %c0_2 = arith.constant 0 : index
      %c0_3 = arith.constant 0 : index
      %c0_4 = arith.constant 0 : index
      %c0_5 = arith.constant 0 : index
      %c0_6 = arith.constant 0 : index
      %6 = vector.load %arg2[%c0, %c0_2, %c0_3, %c0_4, %c0_5, %c0_6] : memref<1x16x3x1x4x32xbf16, #tpu.memory_space<vmem>>, vector<1x16x3x1x4x32xbf16>
      %7 = vector.shape_cast %6 : vector<1x16x3x1x4x32xbf16> to vector<16x3x4x32xbf16>
      %8 = vector.extract_strided_slice %7 {offsets = [0, 0, 0, 0], sizes = [16, 1, 4, 32], strides = [1, 1, 1, 1]} : vector<16x3x4x32xbf16> to vector<16x1x4x32xbf16>
      %9 = vector.shape_cast %8 : vector<16x1x4x32xbf16> to vector<16x4x32xbf16>
      %10 = tpu.transpose %9, [1, 0, 2] : vector<16x4x32xbf16> -> vector<4x16x32xbf16>
      %cst = arith.constant 1.767580e-01 : bf16
      %11 = vector.broadcast %cst : bf16 to vector<4x16x32xbf16>
      %12 = arith.mulf %10, %11 : vector<4x16x32xbf16>
      %13 = vector.extract_strided_slice %7 {offsets = [0, 1, 0, 0], sizes = [16, 1, 4, 32], strides = [1, 1, 1, 1]} : vector<16x3x4x32xbf16> to vector<16x1x4x32xbf16>
      %14 = vector.shape_cast %13 : vector<16x1x4x32xbf16> to vector<16x4x32xbf16>
      %15 = tpu.transpose %14, [1, 0, 2] : vector<16x4x32xbf16> -> vector<4x16x32xbf16>
      %16 = vector.extract_strided_slice %7 {offsets = [0, 2, 0, 0], sizes = [16, 1, 4, 32], strides = [1, 1, 1, 1]} : vector<16x3x4x32xbf16> to vector<16x1x4x32xbf16>
      %17 = vector.shape_cast %16 : vector<16x1x4x32xbf16> to vector<16x4x32xbf16>
      %18 = tpu.transpose %17, [1, 0, 2] : vector<16x4x32xbf16> -> vector<4x16x32xbf16>
      %19 = vector.shape_cast %12 : vector<4x16x32xbf16> to vector<16x4x32xbf16>
      %20 = vector.shape_cast %15 : vector<4x16x32xbf16> to vector<16x4x32xbf16>
      %21 = vector.shape_cast %18 : vector<4x16x32xbf16> to vector<16x4x32xbf16>
      "tpu.trace_start"() <{level = 10 : i32, message = "gid,gjd->gij"}> : () -> ()
      %cst_7 = arith.constant dense<0.000000e+00> : vector<16x4x4xf32>
      %22 = tpu.matmul %19, %20, %cst_7 {dimension_numbers = #tpu.dot_dimension_numbers<[2], [2], [1], [1], [0, 0, 0, 1, 1, 1], [0], [0]>} : vector<16x4x32xbf16>, vector<16x4x32xbf16>, vector<16x4x4xf32> -> vector<16x4x4xf32>
      "tpu.trace_stop"() : () -> ()
      %cst_8 = arith.constant dense<0xFF800000> : vector<16x4xf32>
      %23 = vector.multi_reduction <maximumf>, %22, %cst_8 [2] : vector<16x4x4xf32> to vector<16x4xf32>
      %24 = vector.shape_cast %23 : vector<16x4xf32> to vector<16x4x1xf32>
      %25 = vector.broadcast %24 : vector<16x4x1xf32> to vector<16x4x4xf32>
      %26 = arith.subf %22, %25 : vector<16x4x4xf32>
      %27 = math.exp %26 : vector<16x4x4xf32>
      %cst_9 = arith.constant dense<0.000000e+00> : vector<16x4xf32>
      %28 = vector.multi_reduction <add>, %27, %cst_9 [2] : vector<16x4x4xf32> to vector<16x4xf32>
      %29 = vector.shape_cast %28 : vector<16x4xf32> to vector<16x4x1xf32>
      %30 = tpu.reciprocal %29 {approx = true} : vector<16x4x1xf32> -> vector<16x4x1xf32>
      %31 = vector.broadcast %30 : vector<16x4x1xf32> to vector<16x4x4xf32>
      %32 = arith.mulf %27, %31 : vector<16x4x4xf32>
      %33 = arith.truncf %32 : vector<16x4x4xf32> to vector<16x4x4xbf16>
      "tpu.trace_start"() <{level = 10 : i32, message = "gij,gjd->gid"}> : () -> ()
      %cst_10 = arith.constant dense<0.000000e+00> : vector<16x4x32xf32>
      %34 = tpu.matmul %33, %21, %cst_10 {dimension_numbers = #tpu.dot_dimension_numbers<[2], [1], [1], [2], [0, 0, 0, 1, 1, 2], [0], [0]>} : vector<16x4x4xbf16>, vector<16x4x32xbf16>, vector<16x4x32xf32> -> vector<16x4x32xf32>
      "tpu.trace_stop"() : () -> ()
      %35 = vector.shape_cast %34 : vector<16x4x32xf32> to vector<4x16x32xf32>
      %36 = tpu.transpose %35, [1, 0, 2] : vector<4x16x32xf32> -> vector<16x4x32xf32>
      %37 = vector.shape_cast %36 : vector<16x4x32xf32> to vector<16x128xf32>
      %38 = arith.truncf %37 : vector<16x128xf32> to vector<16x128xbf16>
      %c0_11 = arith.constant 0 : index
      %c0_12 = arith.constant 0 : index
      %c0_13 = arith.constant 0 : index
      %39 = vector.load %arg3[%c0_11, %c0_12, %c0_13] : memref<1x16x128xbf16, #tpu.memory_space<vmem>>, vector<1x16x128xbf16>
      %40 = vector.shape_cast %39 : vector<1x16x128xbf16> to vector<16x128xbf16>
      %41 = vector.shape_cast %38 : vector<16x128xbf16> to vector<1x16x128xbf16>
      tpu.vector_store %arg3[%c0_11, %c0_12, %c0_13], %41 {strides = array<i32>} : memref<1x16x128xbf16, #tpu.memory_space<vmem>>, vector<1x16x128xbf16>,
    } else {
    }
    return
  }
  func.func @transform_0(%arg0: i32, %arg1: i32) -> (i32, i32, i32, i32, i32, i32) {
    %c0_i32 = arith.constant 0 : i32
    %c0_i32_0 = arith.constant 0 : i32
    %c0_i32_1 = arith.constant 0 : i32
    %c0_i32_2 = arith.constant 0 : i32
    %c0_i32_3 = arith.constant 0 : i32
    return %arg0, %c0_i32, %c0_i32_0, %arg1, %c0_i32_1, %c0_i32_2 : i32, i32, i32, i32, i32, i32
  }
  func.func @transform_1(%arg0: i32, %arg1: i32) -> (i32, i32, i32) {
    %c0_i32 = arith.constant 0 : i32
    %c0_i32_0 = arith.constant 0 : i32
    return %arg0, %c0_i32, %arg1 : i32, i32, i32
  }
}

module attributes {stable_mosaic.version = 11 : i64} {
  func.func @_matmul_kernel(%arg0: i32, %arg1: i32, %arg2: i32, %arg3: memref<32x32xbf16, #tpu.memory_space<vmem>>, %arg4: memref<32x768xbf16, #tpu.memory_space<vmem>>, %arg5: memref<32x768xbf16, #tpu.memory_space<vmem>>, %arg6: memref<32x768xf32, #tpu.memory_space<vmem>>) attributes {dimension_semantics = [#tpu.dimension_semantics<parallel>, #tpu.dimension_semantics<parallel>, #tpu.dimension_semantics<arbitrary>], iteration_bounds = array<i64: 1, 1, 1>, scalar_prefetch = 0 : i64, scratch_operands = 1 : i64, tpu.core_type = #tpu.core_type<tc>, window_params = [{transform_indices = @transform_0, window_bounds = array<i64: 32, 32>}, {transform_indices = @transform_1, window_bounds = array<i64: 32, 768>}, {transform_indices = @transform_2, window_bounds = array<i64: 32, 768>}]} {
    %c0_i32 = arith.constant 0 : i32
    %0 = arith.cmpi eq, %arg2, %c0_i32 : i32
    %1 = arith.extui %0 : i1 to i32
    %c0_i32_0 = arith.constant 0 : i32
    %2 = arith.cmpi ne, %1, %c0_i32_0 : i32
    scf.if %2 {
      %cst_10 = arith.constant 0.000000e+00 : f32
      %12 = vector.broadcast %cst_10 : f32 to vector<32x768xf32>
      %c0_11 = arith.constant 0 : index
      %c0_12 = arith.constant 0 : index
      %13 = vector.load %arg6[%c0_11, %c0_12] : memref<32x768xf32, #tpu.memory_space<vmem>>, vector<32x768xf32>
      tpu.vector_store %arg6[%c0_11, %c0_12], %12 {strides = array<i32>} : memref<32x768xf32, #tpu.memory_space<vmem>>, vector<32x768xf32>,
    } else {
    }
    %c0 = arith.constant 0 : index
    %c0_1 = arith.constant 0 : index
    %3 = vector.load %arg6[%c0, %c0_1] : memref<32x768xf32, #tpu.memory_space<vmem>>, vector<32x768xf32>
    %c0_2 = arith.constant 0 : index
    %c0_3 = arith.constant 0 : index
    %4 = vector.load %arg3[%c0_2, %c0_3] : memref<32x32xbf16, #tpu.memory_space<vmem>>, vector<32x32xbf16>
    %c0_4 = arith.constant 0 : index
    %c0_5 = arith.constant 0 : index
    %5 = vector.load %arg4[%c0_4, %c0_5] : memref<32x768xbf16, #tpu.memory_space<vmem>>, vector<32x768xbf16>
    %cst = arith.constant dense<0.000000e+00> : vector<32x768xf32>
    %6 = tpu.matmul %4, %5, %cst {dimension_numbers = #tpu.dot_dimension_numbers<[1], [0], [0], [1], [0, 0, 1, 1], [], []>} : vector<32x32xbf16>, vector<32x768xbf16>, vector<32x768xf32> -> vector<32x768xf32>
    %7 = arith.addf %3, %6 : vector<32x768xf32>
    %c0_6 = arith.constant 0 : index
    %c0_7 = arith.constant 0 : index
    %8 = vector.load %arg6[%c0_6, %c0_7] : memref<32x768xf32, #tpu.memory_space<vmem>>, vector<32x768xf32>
    tpu.vector_store %arg6[%c0_6, %c0_7], %7 {strides = array<i32>} : memref<32x768xf32, #tpu.memory_space<vmem>>, vector<32x768xf32>,
    %c0_i32_8 = arith.constant 0 : i32
    %9 = arith.cmpi eq, %arg2, %c0_i32_8 : i32
    %10 = arith.extui %9 : i1 to i32
    %c0_i32_9 = arith.constant 0 : i32
    %11 = arith.cmpi ne, %10, %c0_i32_9 : i32
    scf.if %11 {
      %c0_10 = arith.constant 0 : index
      %c0_11 = arith.constant 0 : index
      %12 = vector.load %arg6[%c0_10, %c0_11] : memref<32x768xf32, #tpu.memory_space<vmem>>, vector<32x768xf32>
      %13 = arith.truncf %12 : vector<32x768xf32> to vector<32x768xbf16>
      %c0_12 = arith.constant 0 : index
      %c0_13 = arith.constant 0 : index
      %14 = vector.load %arg5[%c0_12, %c0_13] : memref<32x768xbf16, #tpu.memory_space<vmem>>, vector<32x768xbf16>
      tpu.vector_store %arg5[%c0_12, %c0_13], %13 {strides = array<i32>} : memref<32x768xbf16, #tpu.memory_space<vmem>>, vector<32x768xbf16>,
    } else {
    }
    return
  }
  func.func @transform_0(%arg0: i32, %arg1: i32, %arg2: i32) -> (i32, i32) {
    %c0_i32 = arith.constant 0 : i32
    return %arg0, %arg2 : i32, i32
  }
  func.func @transform_1(%arg0: i32, %arg1: i32, %arg2: i32) -> (i32, i32) {
    %c0_i32 = arith.constant 0 : i32
    return %arg2, %arg1 : i32, i32
  }
  func.func @transform_2(%arg0: i32, %arg1: i32, %arg2: i32) -> (i32, i32) {
    %c0_i32 = arith.constant 0 : i32
    return %arg0, %arg1 : i32, i32
  }
}

module attributes {stable_mosaic.version = 11 : i64} {
  func.func @_matmul_bias_kernel(%arg0: i32, %arg1: i32, %arg2: i32, %arg3: memref<32x256xbf16, #tpu.memory_space<vmem>>, %arg4: memref<256x32xbf16, #tpu.memory_space<vmem>>, %arg5: memref<1x32xf32, #tpu.memory_space<vmem>>, %arg6: memref<32x32xf32, #tpu.memory_space<vmem>>, %arg7: memref<32x32xf32, #tpu.memory_space<vmem>>) attributes {dimension_semantics = [#tpu.dimension_semantics<parallel>, #tpu.dimension_semantics<parallel>, #tpu.dimension_semantics<arbitrary>], iteration_bounds = array<i64: 1, 1, 1>, scalar_prefetch = 0 : i64, scratch_operands = 1 : i64, tpu.core_type = #tpu.core_type<tc>, window_params = [{transform_indices = @transform_0, window_bounds = array<i64: 32, 256>}, {transform_indices = @transform_1, window_bounds = array<i64: 256, 32>}, {transform_indices = @transform_2, window_bounds = array<i64: 1, 32>}, {transform_indices = @transform_3, window_bounds = array<i64: 32, 32>}]} {
    %c0_i32 = arith.constant 0 : i32
    %0 = arith.cmpi eq, %arg2, %c0_i32 : i32
    %1 = arith.extui %0 : i1 to i32
    %c0_i32_0 = arith.constant 0 : i32
    %2 = arith.cmpi ne, %1, %c0_i32_0 : i32
    scf.if %2 {
      %cst_10 = arith.constant 0.000000e+00 : f32
      %12 = vector.broadcast %cst_10 : f32 to vector<32x32xf32>
      %c0_11 = arith.constant 0 : index
      %c0_12 = arith.constant 0 : index
      %13 = vector.load %arg7[%c0_11, %c0_12] : memref<32x32xf32, #tpu.memory_space<vmem>>, vector<32x32xf32>
      tpu.vector_store %arg7[%c0_11, %c0_12], %12 {strides = array<i32>} : memref<32x32xf32, #tpu.memory_space<vmem>>, vector<32x32xf32>,
    } else {
    }
    %c0 = arith.constant 0 : index
    %c0_1 = arith.constant 0 : index
    %3 = vector.load %arg7[%c0, %c0_1] : memref<32x32xf32, #tpu.memory_space<vmem>>, vector<32x32xf32>
    %c0_2 = arith.constant 0 : index
    %c0_3 = arith.constant 0 : index
    %4 = vector.load %arg3[%c0_2, %c0_3] : memref<32x256xbf16, #tpu.memory_space<vmem>>, vector<32x256xbf16>
    %c0_4 = arith.constant 0 : index
    %c0_5 = arith.constant 0 : index
    %5 = vector.load %arg4[%c0_4, %c0_5] : memref<256x32xbf16, #tpu.memory_space<vmem>>, vector<256x32xbf16>
    %cst = arith.constant dense<0.000000e+00> : vector<32x32xf32>
    %6 = tpu.matmul %4, %5, %cst {dimension_numbers = #tpu.dot_dimension_numbers<[1], [0], [0], [1], [0, 0, 1, 1], [], []>} : vector<32x256xbf16>, vector<256x32xbf16>, vector<32x32xf32> -> vector<32x32xf32>
    %7 = arith.addf %3, %6 : vector<32x32xf32>
    %c0_6 = arith.constant 0 : index
    %c0_7 = arith.constant 0 : index
    %8 = vector.load %arg7[%c0_6, %c0_7] : memref<32x32xf32, #tpu.memory_space<vmem>>, vector<32x32xf32>
    tpu.vector_store %arg7[%c0_6, %c0_7], %7 {strides = array<i32>} : memref<32x32xf32, #tpu.memory_space<vmem>>, vector<32x32xf32>,
    %c0_i32_8 = arith.constant 0 : i32
    %9 = arith.cmpi eq, %arg2, %c0_i32_8 : i32
    %10 = arith.extui %9 : i1 to i32
    %c0_i32_9 = arith.constant 0 : i32
    %11 = arith.cmpi ne, %10, %c0_i32_9 : i32
    scf.if %11 {
      %c0_10 = arith.constant 0 : index
      %c0_11 = arith.constant 0 : index
      %12 = vector.load %arg7[%c0_10, %c0_11] : memref<32x32xf32, #tpu.memory_space<vmem>>, vector<32x32xf32>
      %c0_12 = arith.constant 0 : index
      %c0_13 = arith.constant 0 : index
      %13 = vector.load %arg5[%c0_12, %c0_13] : memref<1x32xf32, #tpu.memory_space<vmem>>, vector<1x32xf32>
      %14 = vector.broadcast %13 : vector<1x32xf32> to vector<32x32xf32>
      %15 = arith.addf %12, %14 : vector<32x32xf32>
      %c0_14 = arith.constant 0 : index
      %c0_15 = arith.constant 0 : index
      %16 = vector.load %arg6[%c0_14, %c0_15] : memref<32x32xf32, #tpu.memory_space<vmem>>, vector<32x32xf32>
      tpu.vector_store %arg6[%c0_14, %c0_15], %15 {strides = array<i32>} : memref<32x32xf32, #tpu.memory_space<vmem>>, vector<32x32xf32>,
    } else {
    }
    return
  }
  func.func @transform_0(%arg0: i32, %arg1: i32, %arg2: i32) -> (i32, i32) {
    %c0_i32 = arith.constant 0 : i32
    return %arg0, %arg2 : i32, i32
  }
  func.func @transform_1(%arg0: i32, %arg1: i32, %arg2: i32) -> (i32, i32) {
    %c0_i32 = arith.constant 0 : i32
    return %arg2, %arg1 : i32, i32
  }
  func.func @transform_2(%arg0: i32, %arg1: i32, %arg2: i32) -> (i32, i32) {
    %c0_i32 = arith.constant 0 : i32
    %c0_i32_0 = arith.constant 0 : i32
    return %c0_i32, %arg1 : i32, i32
  }
  func.func @transform_3(%arg0: i32, %arg1: i32, %arg2: i32) -> (i32, i32) {
    %c0_i32 = arith.constant 0 : i32
    return %arg0, %arg1 : i32, i32
  }
}

</mosaic_0001>

<llo_original>
// kernel: fd_attention_forward.3
$region0: #{fd_attention_forward.3}
  #allocation0 [shape = 'u32[]', space=smem, size = 0x4, offset = 0x4, fixed_abs, tag = 'smem constant byte address 0x4 - core index']
  #allocation1 [shape = 'u32[144,128]{1,0:T(1,128)}', space=vmem, size = 0x12000, scoped, tag = 'internal scratch']
  #allocation2 [shape = 'f32[32,768]{1,0:T(8,128)}', space=vmem, size = 0x18000, scoped, tag = 'scratch operand']
  %s0 = inlined_call_operand.vmem [shape: bf16[32,32], index: 0, kind: input, shape index: {}]
  %s1 = inlined_call_operand.hbm [shape: bf16[32,768], index: 1, kind: input, shape index: {}]
  %s2 = inlined_call_operand.vmem [shape: bf16[32,768], index: 2, kind: output, shape index: {}]
  %s3 = sld [smem:[#allocation0]]
  $region30: #{fd_attention_forward.3} parent=0
    _
  %s5 = ssub.s32 1, %s3
  %s6 = scalar_select 0, %s5, %s3
  $region1: #{fd_attention_forward.3} parent=0
    #allocation3 [shape = 'u8[49152]{0}', space=vmem, size = 0xc000, scoped, tag = 'input window, operand 1, single buffered']
    #allocation4 [shape = 's32[1]{0}', space=sflag, size = 0x4, scoped, tag = 'scoped memory for fd_attention_forward.3']
    %7 = vsyncpa [#allocation4], 0
    // Predicated region
    $region2: #{fd_attention_forward.3} parent=1 // pred_check
      _
    $region3: #{fd_attention_forward.3} parent=1 // pred_check_branch
      %9 = sbr.rel (0) target = $region5
    $region4: #{fd_attention_forward.3} parent=1 // pred_region
      _
    $region5: #{fd_attention_forward.3} parent=1 // pred_fallthru
      _
    // Predicated region
    $region6: #{fd_attention_forward.3} parent=1 // pred_check
      _
    $region7: #{fd_attention_forward.3} parent=1 // pred_check_branch
      %11 = sbr.rel (0) target = $region9
    $region8: #{fd_attention_forward.3} parent=1 // pred_region
      %s13 = ssub.s32 1536, 1536
      %14 = vsyncadd [#allocation4], %s13
      %s15 = sshll.u32 [#allocation3], 4
      %s16 = int_to_ptr.vmem [resolvable:$true] %s15
      %21 = dma.hbm_to_vmem [thread:$0]  %s1, 1536, %s16, [#allocation4], 384, 384, 24
    $region9: #{fd_attention_forward.3} parent=1 // pred_fallthru
      _
    // Predicated region
    $region10: #{fd_attention_forward.3} parent=1 // pred_check
      _
    $region11: #{fd_attention_forward.3} parent=1 // pred_check_branch
      %23 = sbr.rel (0) target = $region13
    $region12: #{fd_attention_forward.3} parent=1 // pred_region
      %24 = dma.done [#allocation4], 1536
    $region13: #{fd_attention_forward.3} parent=1 // pred_fallthru
      _
    %p26 = scmp.eq.s32.totalorder 0, 0
    // Predicated region
    $region14: #{fd_attention_forward.3} parent=1 // pred_check
      %p27 = pneg %p26
    $region15: #{fd_attention_forward.3} parent=1 // pred_check_branch
      %29 = sbr.rel (%p27) target = $region17
    $region16: #{fd_attention_forward.3} parent=1 // pred_region
      %30 = vst [vmem:[#allocation2] sm:$0xff] 0.0
      %31 = vst [vmem:[#allocation2 + $0x8] sm:$0xff] 0.0
      %32 = vst [vmem:[#allocation2 + $0x10] sm:$0xff] 0.0
      %33 = vst [vmem:[#allocation2 + $0x18] sm:$0xff] 0.0
      %34 = vst [vmem:[#allocation2 + $0x20] sm:$0xff] 0.0
      %35 = vst [vmem:[#allocation2 + $0x28] sm:$0xff] 0.0
      %36 = vst [vmem:[#allocation2 + $0x30] sm:$0xff] 0.0
      %37 = vst [vmem:[#allocation2 + $0x38] sm:$0xff] 0.0
      %38 = vst [vmem:[#allocation2 + $0x40] sm:$0xff] 0.0
      %39 = vst [vmem:[#allocation2 + $0x48] sm:$0xff] 0.0
      %40 = vst [vmem:[#allocation2 + $0x50] sm:$0xff] 0.0
      %41 = vst [vmem:[#allocation2 + $0x58] sm:$0xff] 0.0
      %42 = vst [vmem:[#allocation2 + $0x60] sm:$0xff] 0.0
      %43 = vst [vmem:[#allocation2 + $0x68] sm:$0xff] 0.0
      %44 = vst [vmem:[#allocation2 + $0x70] sm:$0xff] 0.0
      %45 = vst [vmem:[#allocation2 + $0x78] sm:$0xff] 0.0
      %46 = vst [vmem:[#allocation2 + $0x80] sm:$0xff] 0.0
      %47 = vst [vmem:[#allocation2 + $0x88] sm:$0xff] 0.0
      %48 = vst [vmem:[#allocation2 + $0x90] sm:$0xff] 0.0
      %49 = vst [vmem:[#allocation2 + $0x98] sm:$0xff] 0.0
      %50 = vst [vmem:[#allocation2 + $0xa0] sm:$0xff] 0.0
      %51 = vst [vmem:[#allocation2 + $0xa8] sm:$0xff] 0.0
      %52 = vst [vmem:[#allocation2 + $0xb0] sm:$0xff] 0.0
      %53 = vst [vmem:[#allocation2 + $0xb8] sm:$0xff] 0.0
    $region17: #{fd_attention_forward.3} parent=1 // pred_fallthru
      _
    %v54 = vld [vmem:[#allocation2] sm:$0xff]
    %v55 = vld [vmem:[#allocation2 + $0x8] sm:$0xff]
    %v56 = vld [vmem:[#allocation2 + $0x10] sm:$0xff]
    %v57 = vld [vmem:[#allocation2 + $0x18] sm:$0xff]
    %v58 = vld [vmem:[#allocation2 + $0x20] sm:$0xff]
    %v59 = vld [vmem:[#allocation2 + $0x28] sm:$0xff]
    %v60 = vld [vmem:[#allocation2 + $0x30] sm:$0xff]
    %v61 = vld [vmem:[#allocation2 + $0x38] sm:$0xff]
    %v62 = vld [vmem:[#allocation2 + $0x40] sm:$0xff]
    %v63 = vld [vmem:[#allocation2 + $0x48] sm:$0xff]
    %v64 = vld [vmem:[#allocation2 + $0x50] sm:$0xff]
    %v65 = vld [vmem:[#allocation2 + $0x58] sm:$0xff]
    %v66 = vld [vmem:[#allocation2 + $0x60] sm:$0xff]
    %v67 = vld [vmem:[#allocation2 + $0x68] sm:$0xff]
    %v68 = vld [vmem:[#allocation2 + $0x70] sm:$0xff]
    %v69 = vld [vmem:[#allocation2 + $0x78] sm:$0xff]
    %v70 = vld [vmem:[#allocation2 + $0x80] sm:$0xff]
    %v71 = vld [vmem:[#allocation2 + $0x88] sm:$0xff]
    %v72 = vld [vmem:[#allocation2 + $0x90] sm:$0xff]
    %v73 = vld [vmem:[#allocation2 + $0x98] sm:$0xff]
    %v74 = vld [vmem:[#allocation2 + $0xa0] sm:$0xff]
    %v75 = vld [vmem:[#allocation2 + $0xa8] sm:$0xff]
    %v76 = vld [vmem:[#allocation2 + $0xb0] sm:$0xff]
    %v77 = vld [vmem:[#allocation2 + $0xb8] sm:$0xff]
    %v78 = vld [vmem:[%s0] sm:$0xf]
    %v79 = vld [vmem:[%s0 + $0x4] sm:$0xf]
    %v80 = vld [vmem:[%s0 + $0x8] sm:$0xf]
    %v81 = vld [vmem:[%s0 + $0xc] sm:$0xf]
    %v82 = vld [vmem:[#allocation3] sm:$0xff]
    %v83 = vld [vmem:[#allocation3 + $0x8] sm:$0xff]
    %v84 = vld [vmem:[#allocation3 + $0x10] sm:$0xff]
    %v85 = vld [vmem:[#allocation3 + $0x18] sm:$0xff]
    %v86 = vld [vmem:[#allocation3 + $0x20] sm:$0xff]
    %v87 = vld [vmem:[#allocation3 + $0x28] sm:$0xff]
    %v88 = vld [vmem:[#allocation3 + $0x30] sm:$0xff]
    %v89 = vld [vmem:[#allocation3 + $0x38] sm:$0xff]
    %v90 = vld [vmem:[#allocation3 + $0x40] sm:$0xff]
    %v91 = vld [vmem:[#allocation3 + $0x48] sm:$0xff]
    %v92 = vld [vmem:[#allocation3 + $0x50] sm:$0xff]
    %v93 = vld [vmem:[#allocation3 + $0x58] sm:$0xff]
    %v98 = vunpack.c.l.b16 %v78
    %v99 = vunpack.c.l.b16 %v79
    %v100 = vunpack.c.l.b16 %v80
    %v101 = vunpack.c.l.b16 %v81
    %v102 = vpack.c.b16 %v99, %v98
    %v103 = vpack.c.b16 %v101, %v100
    %v116 = vunpack.c.l.b16 %v82
    %v117 = vunpack.c.h.b16 %v82
    %v118 = vunpack.c.l.b16 %v83
    %v119 = vunpack.c.h.b16 %v83
    %v120 = vunpack.c.l.b16 %v84
    %v121 = vunpack.c.h.b16 %v84
    %v122 = vunpack.c.l.b16 %v85
    %v123 = vunpack.c.h.b16 %v85
    %v124 = vunpack.c.l.b16 %v86
    %v125 = vunpack.c.h.b16 %v86
    %v126 = vunpack.c.l.b16 %v87
    %v127 = vunpack.c.h.b16 %v87
    %v128 = vunpack.c.l.b16 %v88
    %v129 = vunpack.c.h.b16 %v88
    %v130 = vunpack.c.l.b16 %v89
    %v131 = vunpack.c.h.b16 %v89
    %v132 = vunpack.c.l.b16 %v90
    %v133 = vunpack.c.h.b16 %v90
    %v134 = vunpack.c.l.b16 %v91
    %v135 = vunpack.c.h.b16 %v91
    %v136 = vunpack.c.l.b16 %v92
    %v137 = vunpack.c.h.b16 %v92
    %v138 = vunpack.c.l.b16 %v93
    %v139 = vunpack.c.h.b16 %v93
    %v140 = vpack.c.b16 %v122, %v116
    %v141 = vpack.c.b16 %v123, %v117
    %v142 = vpack.c.b16 %v124, %v118
    %v143 = vpack.c.b16 %v125, %v119
    %v144 = vpack.c.b16 %v126, %v120
    %v145 = vpack.c.b16 %v127, %v121
    %v146 = vpack.c.b16 %v134, %v128
    %v147 = vpack.c.b16 %v135, %v129
    %v148 = vpack.c.b16 %v136, %v130
    %v149 = vpack.c.b16 %v137, %v131
    %v150 = vpack.c.b16 %v138, %v132
    %v151 = vpack.c.b16 %v139, %v133
    %vm164 = vcmask 261120
    %v166 = vsel %vm164, %v102, 0
    %v169 = vsel %vm164, %v103, 0
    %171 = vmatprep.subr.bf16.mxu0 0
    %172 = vmatpush1.bf16.msra.mxu0 0
    %173 = vmatprep.subr.bf16.mxu0 0
    %174 = vmatpush1.bf16.msra.mxu0 0
    %175 = vmatprep.subr.bf16.mxu0 0
    %176 = vmatpush1.bf16.msra.mxu0 0
    %177 = vmatprep.subr.bf16.mxu0 0
    %178 = vmatpush1.bf16.msra.mxu0 0
    %179 = vmatprep.subr.bf16.mxu0 0
    %180 = vmatpush1.bf16.msra.mxu0 0
    %181 = vmatprep.subr.bf16.mxu0 0
    %182 = vmatpush1.bf16.msra.mxu0 0
    %183 = vmatprep.subr.bf16.mxu0 %v147
    %184 = vmatpush1.bf16.msra.mxu0 %v146
    %185 = vmatprep.subr.bf16.mxu0 %v141
    %186 = vmatpush1.bf16.msra.mxu0 %v140
    %187 = vmatprep.subr.bf16.mxu0 0
    %188 = vmatpush2.bf16.msra.mxu0 0
    %189 = vmatprep.subr.bf16.mxu0 0
    %190 = vmatpush2.bf16.msra.mxu0 0
    %191 = vmatprep.subr.bf16.mxu0 0
    %192 = vmatpush2.bf16.msra.mxu0 0
    %193 = vmatprep.subr.bf16.mxu0 0
    %194 = vmatpush2.bf16.msra.mxu0 0
    %195 = vmatprep.subr.bf16.mxu0 0
    %196 = vmatpush2.bf16.msra.mxu0 0
    %197 = vmatprep.subr.bf16.mxu0 0
    %198 = vmatpush2.bf16.msra.mxu0 0
    %199 = vmatprep.subr.bf16.mxu0 0
    %200 = vmatpush2.bf16.msra.mxu0 0
    %201 = vmatprep.subr.bf16.mxu0 0
    %202 = vmatpush2.bf16.msra.mxu0 0
    %203 = vmatprep.mubr.bf16.mxu0 0
    %204 = vmatmul.mubr.bf16.gmra.mxu0 %v166
    %v205 = vpop.f32.mrf.mxu0
    %v206 = vadd.f32 0.0, %v205
    %v207 = vpop.f32.mrf.mxu0
    %v208 = vadd.f32 0.0, %v207
    %v209 = vpop.f32.mrf.mxu0
    %v210 = vadd.f32 0.0, %v209
    %v211 = vpop.f32.mrf.mxu0
    %v212 = vadd.f32 0.0, %v211
    %213 = vmatprep.mubr.bf16.mxu0 0
    %214 = vmatmul.mubr.bf16.gmra.mxu0 %v169
    %v215 = vpop.f32.mrf.mxu0
    %v216 = vadd.f32 0.0, %v215
    %v217 = vpop.f32.mrf.mxu0
    %v218 = vadd.f32 0.0, %v217
    %v219 = vpop.f32.mrf.mxu0
    %v220 = vadd.f32 0.0, %v219
    %v221 = vpop.f32.mrf.mxu0
    %v222 = vadd.f32 0.0, %v221
    %223 = vdwg.mxu0
    %224 = vmatprep.subr.bf16.mxu0 0
    %225 = vmatpush1.bf16.msra.mxu0 0
    %226 = vmatprep.subr.bf16.mxu0 0
    %227 = vmatpush1.bf16.msra.mxu0 0
    %228 = vmatprep.subr.bf16.mxu0 0
    %229 = vmatpush1.bf16.msra.mxu0 0
    %230 = vmatprep.subr.bf16.mxu0 0
    %231 = vmatpush1.bf16.msra.mxu0 0
    %232 = vmatprep.subr.bf16.mxu0 0
    %233 = vmatpush1.bf16.msra.mxu0 0
    %234 = vmatprep.subr.bf16.mxu0 0
    %235 = vmatpush1.bf16.msra.mxu0 0
    %236 = vmatprep.subr.bf16.mxu0 %v149
    %237 = vmatpush1.bf16.msra.mxu0 %v148
    %238 = vmatprep.subr.bf16.mxu0 %v143
    %239 = vmatpush1.bf16.msra.mxu0 %v142
    %240 = vmatprep.subr.bf16.mxu0 0
    %241 = vmatpush2.bf16.msra.mxu0 0
    %242 = vmatprep.subr.bf16.mxu0 0
    %243 = vmatpush2.bf16.msra.mxu0 0
    %244 = vmatprep.subr.bf16.mxu0 0
    %245 = vmatpush2.bf16.msra.mxu0 0
    %246 = vmatprep.subr.bf16.mxu0 0
    %247 = vmatpush2.bf16.msra.mxu0 0
    %248 = vmatprep.subr.bf16.mxu0 0
    %249 = vmatpush2.bf16.msra.mxu0 0
    %250 = vmatprep.subr.bf16.mxu0 0
    %251 = vmatpush2.bf16.msra.mxu0 0
    %252 = vmatprep.subr.bf16.mxu0 0
    %253 = vmatpush2.bf16.msra.mxu0 0
    %254 = vmatprep.subr.bf16.mxu0 0
    %255 = vmatpush2.bf16.msra.mxu0 0
    %256 = vmatprep.mubr.bf16.mxu0 0
    %257 = vmatmul.mubr.bf16.gmra.mxu0 %v166
    %v258 = vpop.f32.mrf.mxu0
    %v259 = vadd.f32 0.0, %v258
    %v260 = vpop.f32.mrf.mxu0
    %v261 = vadd.f32 0.0, %v260
    %v262 = vpop.f32.mrf.mxu0
    %v263 = vadd.f32 0.0, %v262
    %v264 = vpop.f32.mrf.mxu0
    %v265 = vadd.f32 0.0, %v264
    %266 = vmatprep.mubr.bf16.mxu0 0
    %267 = vmatmul.mubr.bf16.gmra.mxu0 %v169
    %v268 = vpop.f32.mrf.mxu0
    %v269 = vadd.f32 0.0, %v268
    %v270 = vpop.f32.mrf.mxu0
    %v271 = vadd.f32 0.0, %v270
    %v272 = vpop.f32.mrf.mxu0
    %v273 = vadd.f32 0.0, %v272
    %v274 = vpop.f32.mrf.mxu0
    %v275 = vadd.f32 0.0, %v274
    %276 = vdwg.mxu0
    %277 = vmatprep.subr.bf16.mxu0 0
    %278 = vmatpush1.bf16.msra.mxu0 0
    %279 = vmatprep.subr.bf16.mxu0 0
    %280 = vmatpush1.bf16.msra.mxu0 0
    %281 = vmatprep.subr.bf16.mxu0 0
    %282 = vmatpush1.bf16.msra.mxu0 0
    %283 = vmatprep.subr.bf16.mxu0 0
    %284 = vmatpush1.bf16.msra.mxu0 0
    %285 = vmatprep.subr.bf16.mxu0 0
    %286 = vmatpush1.bf16.msra.mxu0 0
    %287 = vmatprep.subr.bf16.mxu0 0
    %288 = vmatpush1.bf16.msra.mxu0 0
    %289 = vmatprep.subr.bf16.mxu0 %v151
    %290 = vmatpush1.bf16.msra.mxu0 %v150
    %291 = vmatprep.subr.bf16.mxu0 %v145
    %292 = vmatpush1.bf16.msra.mxu0 %v144
    %293 = vmatprep.subr.bf16.mxu0 0
    %294 = vmatpush2.bf16.msra.mxu0 0
    %295 = vmatprep.subr.bf16.mxu0 0
    %296 = vmatpush2.bf16.msra.mxu0 0
    %297 = vmatprep.subr.bf16.mxu0 0
    %298 = vmatpush2.bf16.msra.mxu0 0
    %299 = vmatprep.subr.bf16.mxu0 0
    %300 = vmatpush2.bf16.msra.mxu0 0
    %301 = vmatprep.subr.bf16.mxu0 0
    %302 = vmatpush2.bf16.msra.mxu0 0
    %303 = vmatprep.subr.bf16.mxu0 0
    %304 = vmatpush2.bf16.msra.mxu0 0
    %305 = vmatprep.subr.bf16.mxu0 0
    %306 = vmatpush2.bf16.msra.mxu0 0
    %307 = vmatprep.subr.bf16.mxu0 0
    %308 = vmatpush2.bf16.msra.mxu0 0
    %309 = vmatprep.mubr.bf16.mxu0 0
    %310 = vmatmul.mubr.bf16.gmra.mxu0 %v166
    %v311 = vpop.f32.mrf.mxu0
    %v312 = vadd.f32 0.0, %v311
    %v313 = vpop.f32.mrf.mxu0
    %v314 = vadd.f32 0.0, %v313
    %v315 = vpop.f32.mrf.mxu0
    %v316 = vadd.f32 0.0, %v315
    %v317 = vpop.f32.mrf.mxu0
    %v318 = vadd.f32 0.0, %v317
    %319 = vmatprep.mubr.bf16.mxu0 0
    %320 = vmatmul.mubr.bf16.gmra.mxu0 %v169
    %v321 = vpop.f32.mrf.mxu0
    %v322 = vadd.f32 0.0, %v321
    %v323 = vpop.f32.mrf.mxu0
    %v324 = vadd.f32 0.0, %v323
    %v325 = vpop.f32.mrf.mxu0
    %v326 = vadd.f32 0.0, %v325
    %v327 = vpop.f32.mrf.mxu0
    %v328 = vadd.f32 0.0, %v327
    %329 = vdwg.mxu0
    %v330 = vadd.f32 %v54, %v206
    %v331 = vadd.f32 %v55, %v208
    %v332 = vadd.f32 %v56, %v259
    %v333 = vadd.f32 %v57, %v261
    %v334 = vadd.f32 %v58, %v312
    %v335 = vadd.f32 %v59, %v314
    %v336 = vadd.f32 %v60, %v210
    %v337 = vadd.f32 %v61, %v212
    %v338 = vadd.f32 %v62, %v263
    %v339 = vadd.f32 %v63, %v265
    %v340 = vadd.f32 %v64, %v316
    %v341 = vadd.f32 %v65, %v318
    %v342 = vadd.f32 %v66, %v216
    %v343 = vadd.f32 %v67, %v218
    %v344 = vadd.f32 %v68, %v269
    %v345 = vadd.f32 %v69, %v271
    %v346 = vadd.f32 %v70, %v322
    %v347 = vadd.f32 %v71, %v324
    %v348 = vadd.f32 %v72, %v220
    %v349 = vadd.f32 %v73, %v222
    %v350 = vadd.f32 %v74, %v273
    %v351 = vadd.f32 %v75, %v275
    %v352 = vadd.f32 %v76, %v326
    %v353 = vadd.f32 %v77, %v328
    %354 = vst [vmem:[#allocation2] sm:$0xff] %v330
    %355 = vst [vmem:[#allocation2 + $0x8] sm:$0xff] %v331
    %356 = vst [vmem:[#allocation2 + $0x10] sm:$0xff] %v332
    %357 = vst [vmem:[#allocation2 + $0x18] sm:$0xff] %v333
    %358 = vst [vmem:[#allocation2 + $0x20] sm:$0xff] %v334
    %359 = vst [vmem:[#allocation2 + $0x28] sm:$0xff] %v335
    %360 = vst [vmem:[#allocation2 + $0x30] sm:$0xff] %v336
    %361 = vst [vmem:[#allocation2 + $0x38] sm:$0xff] %v337
    %362 = vst [vmem:[#allocation2 + $0x40] sm:$0xff] %v338
    %363 = vst [vmem:[#allocation2 + $0x48] sm:$0xff] %v339
    %364 = vst [vmem:[#allocation2 + $0x50] sm:$0xff] %v340
    %365 = vst [vmem:[#allocation2 + $0x58] sm:$0xff] %v341
    %366 = vst [vmem:[#allocation2 + $0x60] sm:$0xff] %v342
    %367 = vst [vmem:[#allocation2 + $0x68] sm:$0xff] %v343
    %368 = vst [vmem:[#allocation2 + $0x70] sm:$0xff] %v344
    %369 = vst [vmem:[#allocation2 + $0x78] sm:$0xff] %v345
    %370 = vst [vmem:[#allocation2 + $0x80] sm:$0xff] %v346
    %371 = vst [vmem:[#allocation2 + $0x88] sm:$0xff] %v347
    %372 = vst [vmem:[#allocation2 + $0x90] sm:$0xff] %v348
    %373 = vst [vmem:[#allocation2 + $0x98] sm:$0xff] %v349
    %374 = vst [vmem:[#allocation2 + $0xa0] sm:$0xff] %v350
    %375 = vst [vmem:[#allocation2 + $0xa8] sm:$0xff] %v351
    %376 = vst [vmem:[#allocation2 + $0xb0] sm:$0xff] %v352
    %377 = vst [vmem:[#allocation2 + $0xb8] sm:$0xff] %v353
    // Predicated region
    $region18: #{fd_attention_forward.3} parent=1 // pred_check
      %p378 = pneg %p26
    $region19: #{fd_attention_forward.3} parent=1 // pred_check_branch
      %380 = sbr.rel (%p378) target = $region21
    $region20: #{fd_attention_forward.3} parent=1 // pred_region
      %v381 = vld [vmem:[#allocation2] sm:$0xff]
      %v382 = vld [vmem:[#allocation2 + $0x8] sm:$0xff]
      %v383 = vld [vmem:[#allocation2 + $0x10] sm:$0xff]
      %v384 = vld [vmem:[#allocation2 + $0x18] sm:$0xff]
      %v385 = vld [vmem:[#allocation2 + $0x20] sm:$0xff]
      %v386 = vld [vmem:[#allocation2 + $0x28] sm:$0xff]
      %v387 = vld [vmem:[#allocation2 + $0x30] sm:$0xff]
      %v388 = vld [vmem:[#allocation2 + $0x38] sm:$0xff]
      %v389 = vld [vmem:[#allocation2 + $0x40] sm:$0xff]
      %v390 = vld [vmem:[#allocation2 + $0x48] sm:$0xff]
      %v391 = vld [vmem:[#allocation2 + $0x50] sm:$0xff]
      %v392 = vld [vmem:[#allocation2 + $0x58] sm:$0xff]
      %v393 = vld [vmem:[#allocation2 + $0x60] sm:$0xff]
      %v394 = vld [vmem:[#allocation2 + $0x68] sm:$0xff]
      %v395 = vld [vmem:[#allocation2 + $0x70] sm:$0xff]
      %v396 = vld [vmem:[#allocation2 + $0x78] sm:$0xff]
      %v397 = vld [vmem:[#allocation2 + $0x80] sm:$0xff]
      %v398 = vld [vmem:[#allocation2 + $0x88] sm:$0xff]
      %v399 = vld [vmem:[#allocation2 + $0x90] sm:$0xff]
      %v400 = vld [vmem:[#allocation2 + $0x98] sm:$0xff]
      %v401 = vld [vmem:[#allocation2 + $0xa0] sm:$0xff]
      %v402 = vld [vmem:[#allocation2 + $0xa8] sm:$0xff]
      %v403 = vld [vmem:[#allocation2 + $0xb0] sm:$0xff]
      %v404 = vld [vmem:[#allocation2 + $0xb8] sm:$0xff]
      %v405 = vpack.c.bf16 %v387, %v381
      %v406 = vpack.c.bf16 %v388, %v382
      %v407 = vpack.c.bf16 %v389, %v383
      %v408 = vpack.c.bf16 %v390, %v384
      %v409 = vpack.c.bf16 %v391, %v385
      %v410 = vpack.c.bf16 %v392, %v386
      %v411 = vpack.c.bf16 %v399, %v393
      %v412 = vpack.c.bf16 %v400, %v394
      %v413 = vpack.c.bf16 %v401, %v395
      %v414 = vpack.c.bf16 %v402, %v396
      %v415 = vpack.c.bf16 %v403, %v397
      %v416 = vpack.c.bf16 %v404, %v398
      %v429 = vunpack.c.l.b16 %v405
      %v430 = vunpack.c.l.b16 %v406
      %v431 = vunpack.c.l.b16 %v407
      %v432 = vunpack.c.l.b16 %v408
      %v433 = vunpack.c.l.b16 %v409
      %v434 = vunpack.c.l.b16 %v410
      %v435 = vunpack.c.h.b16 %v405
      %v436 = vunpack.c.h.b16 %v406
      %v437 = vunpack.c.h.b16 %v407
      %v438 = vunpack.c.h.b16 %v408
      %v439 = vunpack.c.h.b16 %v409
      %v440 = vunpack.c.h.b16 %v410
      %v441 = vunpack.c.l.b16 %v411
      %v442 = vunpack.c.l.b16 %v412
      %v443 = vunpack.c.l.b16 %v413
      %v444 = vunpack.c.l.b16 %v414
      %v445 = vunpack.c.l.b16 %v415
      %v446 = vunpack.c.l.b16 %v416
      %v447 = vunpack.c.h.b16 %v411
      %v448 = vunpack.c.h.b16 %v412
      %v449 = vunpack.c.h.b16 %v413
      %v450 = vunpack.c.h.b16 %v414
      %v451 = vunpack.c.h.b16 %v415
      %v452 = vunpack.c.h.b16 %v416
      %v453 = vpack.c.b16 %v430, %v429
      %v454 = vpack.c.b16 %v432, %v431
      %v455 = vpack.c.b16 %v434, %v433
      %v456 = vpack.c.b16 %v436, %v435
      %v457 = vpack.c.b16 %v438, %v437
      %v458 = vpack.c.b16 %v440, %v439
      %v459 = vpack.c.b16 %v442, %v441
      %v460 = vpack.c.b16 %v444, %v443
      %v461 = vpack.c.b16 %v446, %v445
      %v462 = vpack.c.b16 %v448, %v447
      %v463 = vpack.c.b16 %v450, %v449
      %v464 = vpack.c.b16 %v452, %v451
      %477 = vst [vmem:[%s2] sm:$0xff] %v453
      %478 = vst [vmem:[%s2 + $0x8] sm:$0xff] %v454
      %479 = vst [vmem:[%s2 + $0x10] sm:$0xff] %v455
      %480 = vst [vmem:[%s2 + $0x18] sm:$0xff] %v456
      %481 = vst [vmem:[%s2 + $0x20] sm:$0xff] %v457
      %482 = vst [vmem:[%s2 + $0x28] sm:$0xff] %v458
      %483 = vst [vmem:[%s2 + $0x30] sm:$0xff] %v459
      %484 = vst [vmem:[%s2 + $0x38] sm:$0xff] %v460
      %485 = vst [vmem:[%s2 + $0x40] sm:$0xff] %v461
      %486 = vst [vmem:[%s2 + $0x48] sm:$0xff] %v462
      %487 = vst [vmem:[%s2 + $0x50] sm:$0xff] %v463
      %488 = vst [vmem:[%s2 + $0x58] sm:$0xff] %v464
    $region21: #{fd_attention_forward.3} parent=1 // pred_fallthru
      _
    // Predicated region
    $region22: #{fd_attention_forward.3} parent=1 // pred_check
      _
    $region23: #{fd_attention_forward.3} parent=1 // pred_check_branch
      %490 = sbr.rel (0) target = $region25
    $region24: #{fd_attention_forward.3} parent=1 // pred_region
      _
    $region25: #{fd_attention_forward.3} parent=1 // pred_fallthru
      _
    // Predicated region
    $region26: #{fd_attention_forward.3} parent=1 // pred_check
      _
    $region27: #{fd_attention_forward.3} parent=1 // pred_check_branch
      %492 = sbr.rel (0) target = $region29
    $region28: #{fd_attention_forward.3} parent=1 // pred_region
      _
    $region29: #{fd_attention_forward.3} parent=1 // pred_fallthru
      _
    %493 = vsyncpa [#allocation4], 1

// kernel: fd_attention_forward.5
$region0: #{fd_attention_forward.5}
  #allocation0 [shape = 'u32[]', space=smem, size = 0x4, offset = 0x4, fixed_abs, tag = 'smem constant byte address 0x4 - core index']
  #allocation1 [shape = 'u32[144,128]{1,0:T(1,128)}', space=vmem, size = 0x12000, scoped, tag = 'internal scratch']
  #allocation2 [shape = 'f32[32,32]{1,0:T(8,128)}', space=vmem, size = 0x4000, scoped, tag = 'scratch operand']
  %s0 = inlined_call_operand.vmem [shape: bf16[32,256], index: 0, kind: input, shape index: {}]
  %s1 = inlined_call_operand.vmem [shape: bf16[256,32], index: 1, kind: input, shape index: {}]
  %s2 = inlined_call_operand.vmem [shape: f32[1,32], index: 2, kind: input, shape index: {}]
  %s3 = inlined_call_operand.hbm [shape: f32[32,32], index: 3, kind: output, shape index: {}]
  %s4 = sld [smem:[#allocation0]]
  $region30: #{fd_attention_forward.5} parent=0
    _
  %s6 = ssub.s32 1, %s4
  %s7 = scalar_select 0, %s6, %s4
  $region1: #{fd_attention_forward.5} parent=0
    #allocation3 [shape = 'u8[16384]{0}', space=vmem, size = 0x4000, scoped, tag = 'output window, operand 0, single buffered']
    #allocation4 [shape = 's32[1]{0}', space=sflag, size = 0x4, scoped, tag = 'scoped memory for fd_attention_forward.5']
    %8 = vsyncpa [#allocation4], 0
    // Predicated region
    $region2: #{fd_attention_forward.5} parent=1 // pred_check
      _
    $region3: #{fd_attention_forward.5} parent=1 // pred_check_branch
      %10 = sbr.rel (0) target = $region5
    $region4: #{fd_attention_forward.5} parent=1 // pred_region
      _
    $region5: #{fd_attention_forward.5} parent=1 // pred_fallthru
      _
    // Predicated region
    $region6: #{fd_attention_forward.5} parent=1 // pred_check
      _
    $region7: #{fd_attention_forward.5} parent=1 // pred_check_branch
      %12 = sbr.rel (0) target = $region9
    $region8: #{fd_attention_forward.5} parent=1 // pred_region
      _
    $region9: #{fd_attention_forward.5} parent=1 // pred_fallthru
      _
    // Predicated region
    $region10: #{fd_attention_forward.5} parent=1 // pred_check
      _
    $region11: #{fd_attention_forward.5} parent=1 // pred_check_branch
      %14 = sbr.rel (0) target = $region13
    $region12: #{fd_attention_forward.5} parent=1 // pred_region
      _
    $region13: #{fd_attention_forward.5} parent=1 // pred_fallthru
      _
    %p16 = scmp.eq.s32.totalorder 0, 0
    // Predicated region
    $region14: #{fd_attention_forward.5} parent=1 // pred_check
      %p17 = pneg %p16
    $region15: #{fd_attention_forward.5} parent=1 // pred_check_branch
      %19 = sbr.rel (%p17) target = $region17
    $region16: #{fd_attention_forward.5} parent=1 // pred_region
      %vm20 = vcmask 261120
      %21 = vst.msk [vmem:[#allocation2] sm:$0xff] %vm20, 0.0
      %22 = vst.msk [vmem:[#allocation2 + $0x8] sm:$0xff] %vm20, 0.0
      %23 = vst.msk [vmem:[#allocation2 + $0x10] sm:$0xff] %vm20, 0.0
      %24 = vst.msk [vmem:[#allocation2 + $0x18] sm:$0xff] %vm20, 0.0
    $region17: #{fd_attention_forward.5} parent=1 // pred_fallthru
      _
    %v25 = vld [vmem:[#allocation2] sm:$0xff]
    %v26 = vld [vmem:[#allocation2 + $0x8] sm:$0xff]
    %v27 = vld [vmem:[#allocation2 + $0x10] sm:$0xff]
    %v28 = vld [vmem:[#allocation2 + $0x18] sm:$0xff]
    %v29 = vld [vmem:[%s0] sm:$0xff]
    %v30 = vld [vmem:[%s0 + $0x8] sm:$0xff]
    %v31 = vld [vmem:[%s0 + $0x10] sm:$0xff]
    %v32 = vld [vmem:[%s0 + $0x18] sm:$0xff]
    %v33 = vld [vmem:[%s1] sm:$0xf]
    %v34 = vld [vmem:[%s1 + $0x4] sm:$0xf]
    %v35 = vld [vmem:[%s1 + $0x8] sm:$0xf]
    %v36 = vld [vmem:[%s1 + $0xc] sm:$0xf]
    %v37 = vld [vmem:[%s1 + $0x10] sm:$0xf]
    %v38 = vld [vmem:[%s1 + $0x14] sm:$0xf]
    %v39 = vld [vmem:[%s1 + $0x18] sm:$0xf]
    %v40 = vld [vmem:[%s1 + $0x1c] sm:$0xf]
    %v41 = vld [vmem:[%s1 + $0x20] sm:$0xf]
    %v42 = vld [vmem:[%s1 + $0x24] sm:$0xf]
    %v43 = vld [vmem:[%s1 + $0x28] sm:$0xf]
    %v44 = vld [vmem:[%s1 + $0x2c] sm:$0xf]
    %v45 = vld [vmem:[%s1 + $0x30] sm:$0xf]
    %v46 = vld [vmem:[%s1 + $0x34] sm:$0xf]
    %v47 = vld [vmem:[%s1 + $0x38] sm:$0xf]
    %v48 = vld [vmem:[%s1 + $0x3c] sm:$0xf]
    %v49 = vld [vmem:[%s1 + $0x40] sm:$0xf]
    %v50 = vld [vmem:[%s1 + $0x44] sm:$0xf]
    %v51 = vld [vmem:[%s1 + $0x48] sm:$0xf]
    %v52 = vld [vmem:[%s1 + $0x4c] sm:$0xf]
    %v53 = vld [vmem:[%s1 + $0x50] sm:$0xf]
    %v54 = vld [vmem:[%s1 + $0x54] sm:$0xf]
    %v55 = vld [vmem:[%s1 + $0x58] sm:$0xf]
    %v56 = vld [vmem:[%s1 + $0x5c] sm:$0xf]
    %v57 = vld [vmem:[%s1 + $0x60] sm:$0xf]
    %v58 = vld [vmem:[%s1 + $0x64] sm:$0xf]
    %v59 = vld [vmem:[%s1 + $0x68] sm:$0xf]
    %v60 = vld [vmem:[%s1 + $0x6c] sm:$0xf]
    %v61 = vld [vmem:[%s1 + $0x70] sm:$0xf]
    %v62 = vld [vmem:[%s1 + $0x74] sm:$0xf]
    %v63 = vld [vmem:[%s1 + $0x78] sm:$0xf]
    %v64 = vld [vmem:[%s1 + $0x7c] sm:$0xf]
    %v69 = vunpack.c.l.b16 %v29
    %v70 = vunpack.c.h.b16 %v29
    %v71 = vunpack.c.l.b16 %v30
    %v72 = vunpack.c.h.b16 %v30
    %v73 = vunpack.c.l.b16 %v31
    %v74 = vunpack.c.h.b16 %v31
    %v75 = vunpack.c.l.b16 %v32
    %v76 = vunpack.c.h.b16 %v32
    %v77 = vpack.c.b16 %v71, %v69
    %v78 = vpack.c.b16 %v72, %v70
    %v79 = vpack.c.b16 %v75, %v73
    %v80 = vpack.c.b16 %v76, %v74
    %v117 = vunpack.c.l.b16 %v33
    %v118 = vunpack.c.l.b16 %v34
    %v119 = vunpack.c.l.b16 %v35
    %v120 = vunpack.c.l.b16 %v36
    %v121 = vunpack.c.l.b16 %v37
    %v122 = vunpack.c.l.b16 %v38
    %v123 = vunpack.c.l.b16 %v39
    %v124 = vunpack.c.l.b16 %v40
    %v125 = vunpack.c.l.b16 %v41
    %v126 = vunpack.c.l.b16 %v42
    %v127 = vunpack.c.l.b16 %v43
    %v128 = vunpack.c.l.b16 %v44
    %v129 = vunpack.c.l.b16 %v45
    %v130 = vunpack.c.l.b16 %v46
    %v131 = vunpack.c.l.b16 %v47
    %v132 = vunpack.c.l.b16 %v48
    %v133 = vunpack.c.l.b16 %v49
    %v134 = vunpack.c.l.b16 %v50
    %v135 = vunpack.c.l.b16 %v51
    %v136 = vunpack.c.l.b16 %v52
    %v137 = vunpack.c.l.b16 %v53
    %v138 = vunpack.c.l.b16 %v54
    %v139 = vunpack.c.l.b16 %v55
    %v140 = vunpack.c.l.b16 %v56
    %v141 = vunpack.c.l.b16 %v57
    %v142 = vunpack.c.l.b16 %v58
    %v143 = vunpack.c.l.b16 %v59
    %v144 = vunpack.c.l.b16 %v60
    %v145 = vunpack.c.l.b16 %v61
    %v146 = vunpack.c.l.b16 %v62
    %v147 = vunpack.c.l.b16 %v63
    %v148 = vunpack.c.l.b16 %v64
    %v149 = vpack.c.b16 %v118, %v117
    %v150 = vpack.c.b16 %v120, %v119
    %v151 = vpack.c.b16 %v122, %v121
    %v152 = vpack.c.b16 %v124, %v123
    %v153 = vpack.c.b16 %v126, %v125
    %v154 = vpack.c.b16 %v128, %v127
    %v155 = vpack.c.b16 %v130, %v129
    %v156 = vpack.c.b16 %v132, %v131
    %v157 = vpack.c.b16 %v134, %v133
    %v158 = vpack.c.b16 %v136, %v135
    %v159 = vpack.c.b16 %v138, %v137
    %v160 = vpack.c.b16 %v140, %v139
    %v161 = vpack.c.b16 %v142, %v141
    %v162 = vpack.c.b16 %v144, %v143
    %v163 = vpack.c.b16 %v146, %v145
    %v164 = vpack.c.b16 %v148, %v147
    %181 = vmatprep.subr.bf16.mxu0 0
    %182 = vmatpush1.bf16.msra.mxu0 %v156
    %183 = vmatprep.subr.bf16.mxu0 0
    %184 = vmatpush1.bf16.msra.mxu0 %v155
    %185 = vmatprep.subr.bf16.mxu0 0
    %186 = vmatpush1.bf16.msra.mxu0 %v154
    %187 = vmatprep.subr.bf16.mxu0 0
    %188 = vmatpush1.bf16.msra.mxu0 %v153
    %189 = vmatprep.subr.bf16.mxu0 0
    %190 = vmatpush1.bf16.msra.mxu0 %v152
    %191 = vmatprep.subr.bf16.mxu0 0
    %192 = vmatpush1.bf16.msra.mxu0 %v151
    %193 = vmatprep.subr.bf16.mxu0 0
    %194 = vmatpush1.bf16.msra.mxu0 %v150
    %195 = vmatprep.subr.bf16.mxu0 0
    %196 = vmatpush1.bf16.msra.mxu0 %v149
    %197 = vmatprep.subr.bf16.mxu0 0
    %198 = vmatpush2.bf16.msra.mxu0 %v164
    %199 = vmatprep.subr.bf16.mxu0 0
    %200 = vmatpush2.bf16.msra.mxu0 %v163
    %201 = vmatprep.subr.bf16.mxu0 0
    %202 = vmatpush2.bf16.msra.mxu0 %v162
    %203 = vmatprep.subr.bf16.mxu0 0
    %204 = vmatpush2.bf16.msra.mxu0 %v161
    %205 = vmatprep.subr.bf16.mxu0 0
    %206 = vmatpush2.bf16.msra.mxu0 %v160
    %207 = vmatprep.subr.bf16.mxu0 0
    %208 = vmatpush2.bf16.msra.mxu0 %v159
    %209 = vmatprep.subr.bf16.mxu0 0
    %210 = vmatpush2.bf16.msra.mxu0 %v158
    %211 = vmatprep.subr.bf16.mxu0 0
    %212 = vmatpush2.bf16.msra.mxu0 %v157
    %213 = vmatprep.mubr.bf16.mxu0 %v78
    %214 = vmatmul.mubr.bf16.gmra.mxu0 %v77
    %v215 = vpop.f32.mrf.mxu0
    %v216 = vadd.f32 0.0, %v215
    %v217 = vpop.f32.mrf.mxu0
    %v218 = vpop.f32.mrf.mxu0
    %v219 = vadd.f32 0.0, %v218
    %v220 = vpop.f32.mrf.mxu0
    %221 = vmatprep.mubr.bf16.mxu0 %v80
    %222 = vmatmul.mubr.bf16.gmra.mxu0 %v79
    %v223 = vpop.f32.mrf.mxu0
    %v224 = vadd.f32 0.0, %v223
    %v225 = vpop.f32.mrf.mxu0
    %v226 = vpop.f32.mrf.mxu0
    %v227 = vadd.f32 0.0, %v226
    %v228 = vpop.f32.mrf.mxu0
    %229 = vdwg.mxu0
    %v230 = vadd.f32 %v25, %v216
    %v231 = vadd.f32 %v26, %v219
    %v232 = vadd.f32 %v27, %v224
    %v233 = vadd.f32 %v28, %v227
    %vm234 = vcmask 261120
    %235 = vst.msk [vmem:[#allocation2] sm:$0xff] %vm234, %v230
    %236 = vst.msk [vmem:[#allocation2 + $0x8] sm:$0xff] %vm234, %v231
    %237 = vst.msk [vmem:[#allocation2 + $0x10] sm:$0xff] %vm234, %v232
    %238 = vst.msk [vmem:[#allocation2 + $0x18] sm:$0xff] %vm234, %v233
    // Predicated region
    $region18: #{fd_attention_forward.5} parent=1 // pred_check
      %p239 = pneg %p16
    $region19: #{fd_attention_forward.5} parent=1 // pred_check_branch
      %241 = sbr.rel (%p239) target = $region21
    $region20: #{fd_attention_forward.5} parent=1 // pred_region
      %v242 = vld [vmem:[#allocation2] sm:$0xff]
      %v243 = vld [vmem:[#allocation2 + $0x8] sm:$0xff]
      %v244 = vld [vmem:[#allocation2 + $0x10] sm:$0xff]
      %v245 = vld [vmem:[#allocation2 + $0x18] sm:$0xff]
      %v246 = vld [vmem:[%s2] sm:$0x1]
      %v248 = vlaneseq
      %v249 = vshrl.u32 %v248, 7
      %v250 = vsub.s32 0, %v249
      %v251 = vrot.slane %v246, %v250
      %v253 = vadd.f32 %v242, %v251
      %v254 = vadd.f32 %v243, %v251
      %v255 = vadd.f32 %v244, %v251
      %v256 = vadd.f32 %v245, %v251
      %257 = vst.msk [vmem:[#allocation3] sm:$0xff] %vm234, %v253
      %258 = vst.msk [vmem:[#allocation3 + $0x8] sm:$0xff] %vm234, %v254
      %259 = vst.msk [vmem:[#allocation3 + $0x10] sm:$0xff] %vm234, %v255
      %260 = vst.msk [vmem:[#allocation3 + $0x18] sm:$0xff] %vm234, %v256
    $region21: #{fd_attention_forward.5} parent=1 // pred_fallthru
      _
    // Predicated region
    $region22: #{fd_attention_forward.5} parent=1 // pred_check
      _
    $region23: #{fd_attention_forward.5} parent=1 // pred_check_branch
      %262 = sbr.rel (0) target = $region25
    $region24: #{fd_attention_forward.5} parent=1 // pred_region
      %s264 = ssub.s32 512, 512
      %265 = vsyncadd [#allocation4], %s264
      %s266 = sshll.u32 [#allocation3], 4
      %s267 = int_to_ptr.vmem [resolvable:$true] %s266
      %272 = dma.vmem_to_hbm [thread:$0]  %s267, 512, %s3, [#allocation4], 128, 128, 8
    $region25: #{fd_attention_forward.5} parent=1 // pred_fallthru
      _
    // Predicated region
    $region26: #{fd_attention_forward.5} parent=1 // pred_check
      _
    $region27: #{fd_attention_forward.5} parent=1 // pred_check_branch
      %274 = sbr.rel (0) target = $region29
    $region28: #{fd_attention_forward.5} parent=1 // pred_region
      %275 = dma.done [#allocation4], 512
    $region29: #{fd_attention_forward.5} parent=1 // pred_fallthru
      _
    %276 = vsyncpa [#allocation4], 1

// kernel: fd_attention_forward.4
$region0: #{fd_attention_forward.4}
  #allocation0 [shape = 'u32[]', space=smem, size = 0x4, offset = 0x4, fixed_abs, tag = 'smem constant byte address 0x4 - core index']
  #allocation1 [shape = 'u32[144,128]{1,0:T(1,128)}', space=vmem, size = 0x12000, scoped, tag = 'internal scratch']
  %s0 = inlined_call_operand.vmem [shape: bf16[2,16,3,2,4,32], index: 0, kind: input, shape index: {}]
  %s1 = inlined_call_operand.vmem [shape: bf16[2,16,256], index: 1, kind: output, shape index: {}]
  %s2 = sld [smem:[#allocation0]]
  $region123: #{fd_attention_forward.4} parent=0
    _
  %s4 = ssub.s32 1, %s2
  %s5 = scalar_select 0, %s4, %s2
  $region1: #{fd_attention_forward.4} parent=0
    #allocation2 [shape = 'u8[98304]{0}', space=vmem, size = 0x18000, scoped, tag = 'input window, operand 0']
    #allocation3 [shape = 'u8[8192]{0}', space=vmem, size = 0x2000, scoped, tag = 'output window, operand 0']
    loop: start=0, step=1, limit=6
    $region2: #{fd_attention_forward.4} parent=1 // loop_pre_header
      _
    $region3: #{fd_attention_forward.4} parent=1 // loop_header
      %s7 = sphi 0, %s11
      %p8 = scmp.ge.s32.totalorder %s7, 6
      %s14 = sphi 0, %s26
      %s15 = sphi 0, %s22
      %s16 = sphi 0, %s14
      %s17 = sphi 0, %s15
      %s18 = sphi 0, %s16
      %s19 = sphi 0, %s17
      %s31 = sphi 0, %s33
      %s34 = sphi 0, %s31
      %s35 = sphi 0, %s34
      %s51 = sphi 0, %s35
      %s59 = sphi 0, %s61
      %s62 = sphi 0, %s59
      %s63 = sphi 0, %s62
      %s79 = sphi 0, %s63
    $region4: #{fd_attention_forward.4} parent=1 // loop_header_branch
      %10 = sbr.rel (%p8) target = $region8
    $region5: #{fd_attention_forward.4} parent=1 // loop_body
      %s12 = ssub.s32 %s7, 1
      %s13 = ssub.s32 %s7, 2
      %s20 = sadd.s32 1, %s15
      %p21 = scmp.ge.s32.totalorder %s20, 2
      %s22 = scalar_select %p21, 0, %s20
      %s23 = sadd.s32 1, %s14
      %s24 = scalar_select %p21, %s23, %s14
      %p25 = scmp.ge.s32.totalorder %s24, 2
      %s26 = scalar_select %p25, 0, %s24
      %s27 = ssub.s32 %s14, %s26
      %s28 = ssub.s32 %s15, %s22
      %s29 = sor.u32 %s27, %s28
      %p30 = scmp.eq.s32.totalorder %s29, 0
      %s32 = sadd.s32 %s31, 1
      %s33 = scalar_select %p30, %s31, %s32
      %p36 = pneg %p30
      %p37 = scmp.eq.s32.totalorder %s7, 3
      %p38 = por %p36, %p37
      %p39 = scmp.ne.s32.totalorder %s31, %s34
      %p40 = scmp.eq.s32.totalorder %s7, 0
      %p41 = por %p39, %p40
      %p42 = scmp.ne.s32.totalorder %s31, %s34
      %p43 = scmp.eq.s32.totalorder %s12, 3
      %p44 = por %p42, %p43
      %p45 = scmp.ne.s32.totalorder %s34, %s35
      %p46 = scmp.eq.s32.totalorder %s12, 0
      %p47 = por %p45, %p46
      %p48 = scmp.ne.s32.totalorder %s34, %s35
      %p49 = scmp.eq.s32.totalorder %s13, 3
      %p50 = por %p48, %p49
      %p52 = scmp.ne.s32.totalorder %s35, %s51
      %p53 = scmp.eq.s32.totalorder %s13, 0
      %p54 = por %p52, %p53
      %s55 = ssub.s32 %s14, %s26
      %s56 = ssub.s32 %s15, %s22
      %s57 = sor.u32 %s55, %s56
      %p58 = scmp.eq.s32.totalorder %s57, 0
      %s60 = sadd.s32 %s59, 1
      %s61 = scalar_select %p58, %s59, %s60
      %p64 = pneg %p58
      %p65 = scmp.eq.s32.totalorder %s7, 3
      %p66 = por %p64, %p65
      %p67 = scmp.ne.s32.totalorder %s59, %s62
      %p68 = scmp.eq.s32.totalorder %s7, 0
      %p69 = por %p67, %p68
      %p70 = scmp.ne.s32.totalorder %s59, %s62
      %p71 = scmp.eq.s32.totalorder %s12, 3
      %p72 = por %p70, %p71
      %p73 = scmp.ne.s32.totalorder %s62, %s63
      %p74 = scmp.eq.s32.totalorder %s12, 0
      %p75 = por %p73, %p74
      %p76 = scmp.ne.s32.totalorder %s62, %s63
      %p77 = scmp.eq.s32.totalorder %s13, 3
      %p78 = por %p76, %p77
      %p80 = scmp.ne.s32.totalorder %s63, %s79
      %p81 = scmp.eq.s32.totalorder %s13, 0
      %p82 = por %p80, %p81
      %p83 = scmp.le.s32.totalorder 1, %s7
      %p84 = scmp.lt.s32.totalorder %s7, 5
      %p85 = pnand %p83, %p84
      %p86 = pneg %p85
      // Predicated region
      $region9: #{fd_attention_forward.4} parent=5 // pred_check
        _
      $region10: #{fd_attention_forward.4} parent=5 // pred_check_branch
        %88 = sbr.rel (%p85) target = $region12
      $region11: #{fd_attention_forward.4} parent=5 // pred_region
        %s89 = ssub.s32 %s7, 1
      $region12: #{fd_attention_forward.4} parent=5 // pred_fallthru
        _
      %p90 = scmp.lt.s32.totalorder %s7, 4
      // Predicated region
      $region13: #{fd_attention_forward.4} parent=5 // pred_check
        %p91 = pneg %p90
      $region14: #{fd_attention_forward.4} parent=5 // pred_check_branch
        %93 = sbr.rel (%p91) target = $region16
      $region15: #{fd_attention_forward.4} parent=5 // pred_region
        // Predicated region
        $region17: #{fd_attention_forward.4} parent=15 // pred_check
          %p94 = pneg %p41
        $region18: #{fd_attention_forward.4} parent=15 // pred_check_branch
          %96 = sbr.rel (%p94) target = $region20
        $region19: #{fd_attention_forward.4} parent=15 // pred_region
          %s97 = sand.u32 %s31, 1
          %s98 = sand.u32 %s31, 1
          %s99 = smul.addr %s98, 96
          %s100 = scalar_lea.vmem [#allocation2], %s99
          %s101 = smul.addr %s14, 96
          %s102 = sadd.s32 %s15, %s101
          %s103 = smul.addr %s102, 2
          %s104 = scalar_lea.vmem %s0, %s103
          // Predicated region
          $region21: #{fd_attention_forward.4} parent=19 // pred_check
            _
          $region22: #{fd_attention_forward.4} parent=19 // pred_check_branch
            %106 = sbr.rel (0) target = $region24
          $region23: #{fd_attention_forward.4} parent=19 // pred_region
            // Predicated region
            $region25: #{fd_attention_forward.4} parent=23 // pred_check
              _
            $region26: #{fd_attention_forward.4} parent=23 // pred_check_branch
              %108 = sbr.rel target = $region28
            $region27: #{fd_attention_forward.4} parent=23 // pred_region
              // Predicated region
              $region40: #{fd_attention_forward.4} parent=27 // pred_check
                _
              $region41: #{fd_attention_forward.4} parent=27 // pred_check_branch
                %218 = sbr.rel (0) target = $region43
              $region42: #{fd_attention_forward.4} parent=27 // pred_region
                loop: start=0, step=1, limit=1
                $region44: #{fd_attention_forward.4} parent=42 // loop_pre_header
                  _
                $region45: #{fd_attention_forward.4} parent=42 // loop_header
                  %s220 = sphi 0, %s224
                  %p221 = scmp.ge.s32.totalorder %s220, 1
                  %s225 = sphi %s104, %s104
                  %s226 = sphi %s100, %s100
                $region46: #{fd_attention_forward.4} parent=42 // loop_header_branch
                  %223 = sbr.rel (%p221) target = $region50
                $region47: #{fd_attention_forward.4} parent=42 // loop_body
                  _
                $region48: #{fd_attention_forward.4} parent=42 // loop_footer
                  %s224 = sadd.s32 1, %s220
                $region49: #{fd_attention_forward.4} parent=42 // loop_footer_branch
                  %219 = sbr.rel target = $region45
                $region50: #{fd_attention_forward.4} parent=42 // loop_exit
                  _
                %s228 = ssub.s32 4, 1
                loop: start=0, step=1, limit=1
                $region51: #{fd_attention_forward.4} parent=42 // loop_pre_header
                  _
                $region52: #{fd_attention_forward.4} parent=42 // loop_header
                  %s230 = sphi 0, %s234
                  %p231 = scmp.ge.s32.totalorder %s230, 1
                  %s235 = sphi %s104, %s104
                  %s236 = sphi %s100, %s100
                $region53: #{fd_attention_forward.4} parent=42 // loop_header_branch
                  %233 = sbr.rel (%p231) target = $region57
                $region54: #{fd_attention_forward.4} parent=42 // loop_body
                  %v237 = vld [vmem:[%s235] sm:%s228]
                  %238 = vst [vmem:[%s236] sm:%s228] %v237
                  %v239 = vld [vmem:[%s235 + $0x4] sm:%s228]
                  %240 = vst [vmem:[%s236 + $0x2] sm:%s228] %v239
                  %v241 = vld [vmem:[%s235 + $0x8] sm:%s228]
                  %242 = vst [vmem:[%s236 + $0x4] sm:%s228] %v241
                  %v243 = vld [vmem:[%s235 + $0xc] sm:%s228]
                  %244 = vst [vmem:[%s236 + $0x6] sm:%s228] %v243
                  %v245 = vld [vmem:[%s235 + $0x10] sm:%s228]
                  %246 = vst [vmem:[%s236 + $0x8] sm:%s228] %v245
                  %v247 = vld [vmem:[%s235 + $0x14] sm:%s228]
                  %248 = vst [vmem:[%s236 + $0xa] sm:%s228] %v247
                  %v249 = vld [vmem:[%s235 + $0x18] sm:%s228]
                  %250 = vst [vmem:[%s236 + $0xc] sm:%s228] %v249
                  %v251 = vld [vmem:[%s235 + $0x1c] sm:%s228]
                  %252 = vst [vmem:[%s236 + $0xe] sm:%s228] %v251
                  %v253 = vld [vmem:[%s235 + $0x20] sm:%s228]
                  %254 = vst [vmem:[%s236 + $0x10] sm:%s228] %v253
                  %v255 = vld [vmem:[%s235 + $0x24] sm:%s228]
                  %256 = vst [vmem:[%s236 + $0x12] sm:%s228] %v255
                  %v257 = vld [vmem:[%s235 + $0x28] sm:%s228]
                  %258 = vst [vmem:[%s236 + $0x14] sm:%s228] %v257
                  %v259 = vld [vmem:[%s235 + $0x2c] sm:%s228]
                  %260 = vst [vmem:[%s236 + $0x16] sm:%s228] %v259
                  %v261 = vld [vmem:[%s235 + $0x30] sm:%s228]
                  %262 = vst [vmem:[%s236 + $0x18] sm:%s228] %v261
                  %v263 = vld [vmem:[%s235 + $0x34] sm:%s228]
                  %264 = vst [vmem:[%s236 + $0x1a] sm:%s228] %v263
                  %v265 = vld [vmem:[%s235 + $0x38] sm:%s228]
                  %266 = vst [vmem:[%s236 + $0x1c] sm:%s228] %v265
                  %v267 = vld [vmem:[%s235 + $0x3c] sm:%s228]
                  %268 = vst [vmem:[%s236 + $0x1e] sm:%s228] %v267
                  %v269 = vld [vmem:[%s235 + $0x40] sm:%s228]
                  %270 = vst [vmem:[%s236 + $0x20] sm:%s228] %v269
                  %v271 = vld [vmem:[%s235 + $0x44] sm:%s228]
                  %272 = vst [vmem:[%s236 + $0x22] sm:%s228] %v271
                  %v273 = vld [vmem:[%s235 + $0x48] sm:%s228]
                  %274 = vst [vmem:[%s236 + $0x24] sm:%s228] %v273
                  %v275 = vld [vmem:[%s235 + $0x4c] sm:%s228]
                  %276 = vst [vmem:[%s236 + $0x26] sm:%s228] %v275
                  %v277 = vld [vmem:[%s235 + $0x50] sm:%s228]
                  %278 = vst [vmem:[%s236 + $0x28] sm:%s228] %v277
                  %v279 = vld [vmem:[%s235 + $0x54] sm:%s228]
                  %280 = vst [vmem:[%s236 + $0x2a] sm:%s228] %v279
                  %v281 = vld [vmem:[%s235 + $0x58] sm:%s228]
                  %282 = vst [vmem:[%s236 + $0x2c] sm:%s228] %v281
                  %v283 = vld [vmem:[%s235 + $0x5c] sm:%s228]
                  %284 = vst [vmem:[%s236 + $0x2e] sm:%s228] %v283
                  %v285 = vld [vmem:[%s235 + $0x60] sm:%s228]
                  %286 = vst [vmem:[%s236 + $0x30] sm:%s228] %v285
                  %v287 = vld [vmem:[%s235 + $0x64] sm:%s228]
                  %288 = vst [vmem:[%s236 + $0x32] sm:%s228] %v287
                  %v289 = vld [vmem:[%s235 + $0x68] sm:%s228]
                  %290 = vst [vmem:[%s236 + $0x34] sm:%s228] %v289
                  %v291 = vld [vmem:[%s235 + $0x6c] sm:%s228]
                  %292 = vst [vmem:[%s236 + $0x36] sm:%s228] %v291
                  %v293 = vld [vmem:[%s235 + $0x70] sm:%s228]
                  %294 = vst [vmem:[%s236 + $0x38] sm:%s228] %v293
                  %v295 = vld [vmem:[%s235 + $0x74] sm:%s228]
                  %296 = vst [vmem:[%s236 + $0x3a] sm:%s228] %v295
                  %v297 = vld [vmem:[%s235 + $0x78] sm:%s228]
                  %298 = vst [vmem:[%s236 + $0x3c] sm:%s228] %v297
                  %v299 = vld [vmem:[%s235 + $0x7c] sm:%s228]
                  %300 = vst [vmem:[%s236 + $0x3e] sm:%s228] %v299
                  %v301 = vld [vmem:[%s235 + $0x80] sm:%s228]
                  %302 = vst [vmem:[%s236 + $0x40] sm:%s228] %v301
                  %v303 = vld [vmem:[%s235 + $0x84] sm:%s228]
                  %304 = vst [vmem:[%s236 + $0x42] sm:%s228] %v303
                  %v305 = vld [vmem:[%s235 + $0x88] sm:%s228]
                  %306 = vst [vmem:[%s236 + $0x44] sm:%s228] %v305
                  %v307 = vld [vmem:[%s235 + $0x8c] sm:%s228]
                  %308 = vst [vmem:[%s236 + $0x46] sm:%s228] %v307
                  %v309 = vld [vmem:[%s235 + $0x90] sm:%s228]
                  %310 = vst [vmem:[%s236 + $0x48] sm:%s228] %v309
                  %v311 = vld [vmem:[%s235 + $0x94] sm:%s228]
                  %312 = vst [vmem:[%s236 + $0x4a] sm:%s228] %v311
                  %v313 = vld [vmem:[%s235 + $0x98] sm:%s228]
                  %314 = vst [vmem:[%s236 + $0x4c] sm:%s228] %v313
                  %v315 = vld [vmem:[%s235 + $0x9c] sm:%s228]
                  %316 = vst [vmem:[%s236 + $0x4e] sm:%s228] %v315
                  %v317 = vld [vmem:[%s235 + $0xa0] sm:%s228]
                  %318 = vst [vmem:[%s236 + $0x50] sm:%s228] %v317
                  %v319 = vld [vmem:[%s235 + $0xa4] sm:%s228]
                  %320 = vst [vmem:[%s236 + $0x52] sm:%s228] %v319
                  %v321 = vld [vmem:[%s235 + $0xa8] sm:%s228]
                  %322 = vst [vmem:[%s236 + $0x54] sm:%s228] %v321
                  %v323 = vld [vmem:[%s235 + $0xac] sm:%s228]
                  %324 = vst [vmem:[%s236 + $0x56] sm:%s228] %v323
                  %v325 = vld [vmem:[%s235 + $0xb0] sm:%s228]
                  %326 = vst [vmem:[%s236 + $0x58] sm:%s228] %v325
                  %v327 = vld [vmem:[%s235 + $0xb4] sm:%s228]
                  %328 = vst [vmem:[%s236 + $0x5a] sm:%s228] %v327
                  %v329 = vld [vmem:[%s235 + $0xb8] sm:%s228]
                  %330 = vst [vmem:[%s236 + $0x5c] sm:%s228] %v329
                  %v331 = vld [vmem:[%s235 + $0xbc] sm:%s228]
                  %332 = vst [vmem:[%s236 + $0x5e] sm:%s228] %v331
                $region55: #{fd_attention_forward.4} parent=42 // loop_footer
                  %s234 = sadd.s32 1, %s230
                $region56: #{fd_attention_forward.4} parent=42 // loop_footer_branch
                  %229 = sbr.rel target = $region52
                $region57: #{fd_attention_forward.4} parent=42 // loop_exit
                  _
              $region43: #{fd_attention_forward.4} parent=27 // pred_fallthru
                _
            $region28: #{fd_attention_forward.4} parent=23 // pred_fallthru
              _
            // Predicated region
            $region29: #{fd_attention_forward.4} parent=23 // pred_check
              _
            $region30: #{fd_attention_forward.4} parent=23 // pred_check_branch
              %110 = sbr.rel (0) target = $region32
            $region31: #{fd_attention_forward.4} parent=23 // pred_region
              %s112 = ssub.s32 4, 1
              loop: start=0, step=1, limit=1
              $region33: #{fd_attention_forward.4} parent=31 // loop_pre_header
                _
              $region34: #{fd_attention_forward.4} parent=31 // loop_header
                %s114 = sphi 0, %s118
                %p115 = scmp.ge.s32.totalorder %s114, 1
                %s119 = sphi %s104, %s104
                %s120 = sphi %s100, %s100
              $region35: #{fd_attention_forward.4} parent=31 // loop_header_branch
                %117 = sbr.rel (%p115) target = $region39
              $region36: #{fd_attention_forward.4} parent=31 // loop_body
                %v121 = vld [vmem:[%s119] sm:%s112]
                %122 = vst [vmem:[%s120] sm:%s112] %v121
                %v123 = vld [vmem:[%s119 + $0x4] sm:%s112]
                %124 = vst [vmem:[%s120 + $0x2] sm:%s112] %v123
                %v125 = vld [vmem:[%s119 + $0x8] sm:%s112]
                %126 = vst [vmem:[%s120 + $0x4] sm:%s112] %v125
                %v127 = vld [vmem:[%s119 + $0xc] sm:%s112]
                %128 = vst [vmem:[%s120 + $0x6] sm:%s112] %v127
                %v129 = vld [vmem:[%s119 + $0x10] sm:%s112]
                %130 = vst [vmem:[%s120 + $0x8] sm:%s112] %v129
                %v131 = vld [vmem:[%s119 + $0x14] sm:%s112]
                %132 = vst [vmem:[%s120 + $0xa] sm:%s112] %v131
                %v133 = vld [vmem:[%s119 + $0x18] sm:%s112]
                %134 = vst [vmem:[%s120 + $0xc] sm:%s112] %v133
                %v135 = vld [vmem:[%s119 + $0x1c] sm:%s112]
                %136 = vst [vmem:[%s120 + $0xe] sm:%s112] %v135
                %v137 = vld [vmem:[%s119 + $0x20] sm:%s112]
                %138 = vst [vmem:[%s120 + $0x10] sm:%s112] %v137
                %v139 = vld [vmem:[%s119 + $0x24] sm:%s112]
                %140 = vst [vmem:[%s120 + $0x12] sm:%s112] %v139
                %v141 = vld [vmem:[%s119 + $0x28] sm:%s112]
                %142 = vst [vmem:[%s120 + $0x14] sm:%s112] %v141
                %v143 = vld [vmem:[%s119 + $0x2c] sm:%s112]
                %144 = vst [vmem:[%s120 + $0x16] sm:%s112] %v143
                %v145 = vld [vmem:[%s119 + $0x30] sm:%s112]
                %146 = vst [vmem:[%s120 + $0x18] sm:%s112] %v145
                %v147 = vld [vmem:[%s119 + $0x34] sm:%s112]
                %148 = vst [vmem:[%s120 + $0x1a] sm:%s112] %v147
                %v149 = vld [vmem:[%s119 + $0x38] sm:%s112]
                %150 = vst [vmem:[%s120 + $0x1c] sm:%s112] %v149
                %v151 = vld [vmem:[%s119 + $0x3c] sm:%s112]
                %152 = vst [vmem:[%s120 + $0x1e] sm:%s112] %v151
                %v153 = vld [vmem:[%s119 + $0x40] sm:%s112]
                %154 = vst [vmem:[%s120 + $0x20] sm:%s112] %v153
                %v155 = vld [vmem:[%s119 + $0x44] sm:%s112]
                %156 = vst [vmem:[%s120 + $0x22] sm:%s112] %v155
                %v157 = vld [vmem:[%s119 + $0x48] sm:%s112]
                %158 = vst [vmem:[%s120 + $0x24] sm:%s112] %v157
                %v159 = vld [vmem:[%s119 + $0x4c] sm:%s112]
                %160 = vst [vmem:[%s120 + $0x26] sm:%s112] %v159
                %v161 = vld [vmem:[%s119 + $0x50] sm:%s112]
                %162 = vst [vmem:[%s120 + $0x28] sm:%s112] %v161
                %v163 = vld [vmem:[%s119 + $0x54] sm:%s112]
                %164 = vst [vmem:[%s120 + $0x2a] sm:%s112] %v163
                %v165 = vld [vmem:[%s119 + $0x58] sm:%s112]
                %166 = vst [vmem:[%s120 + $0x2c] sm:%s112] %v165
                %v167 = vld [vmem:[%s119 + $0x5c] sm:%s112]
                %168 = vst [vmem:[%s120 + $0x2e] sm:%s112] %v167
                %v169 = vld [vmem:[%s119 + $0x60] sm:%s112]
                %170 = vst [vmem:[%s120 + $0x30] sm:%s112] %v169
                %v171 = vld [vmem:[%s119 + $0x64] sm:%s112]
                %172 = vst [vmem:[%s120 + $0x32] sm:%s112] %v171
                %v173 = vld [vmem:[%s119 + $0x68] sm:%s112]
                %174 = vst [vmem:[%s120 + $0x34] sm:%s112] %v173
                %v175 = vld [vmem:[%s119 + $0x6c] sm:%s112]
                %176 = vst [vmem:[%s120 + $0x36] sm:%s112] %v175
                %v177 = vld [vmem:[%s119 + $0x70] sm:%s112]
                %178 = vst [vmem:[%s120 + $0x38] sm:%s112] %v177
                %v179 = vld [vmem:[%s119 + $0x74] sm:%s112]
                %180 = vst [vmem:[%s120 + $0x3a] sm:%s112] %v179
                %v181 = vld [vmem:[%s119 + $0x78] sm:%s112]
                %182 = vst [vmem:[%s120 + $0x3c] sm:%s112] %v181
                %v183 = vld [vmem:[%s119 + $0x7c] sm:%s112]
                %184 = vst [vmem:[%s120 + $0x3e] sm:%s112] %v183
                %v185 = vld [vmem:[%s119 + $0x80] sm:%s112]
                %186 = vst [vmem:[%s120 + $0x40] sm:%s112] %v185
                %v187 = vld [vmem:[%s119 + $0x84] sm:%s112]
                %188 = vst [vmem:[%s120 + $0x42] sm:%s112] %v187
                %v189 = vld [vmem:[%s119 + $0x88] sm:%s112]
                %190 = vst [vmem:[%s120 + $0x44] sm:%s112] %v189
                %v191 = vld [vmem:[%s119 + $0x8c] sm:%s112]
                %192 = vst [vmem:[%s120 + $0x46] sm:%s112] %v191
                %v193 = vld [vmem:[%s119 + $0x90] sm:%s112]
                %194 = vst [vmem:[%s120 + $0x48] sm:%s112] %v193
                %v195 = vld [vmem:[%s119 + $0x94] sm:%s112]
                %196 = vst [vmem:[%s120 + $0x4a] sm:%s112] %v195
                %v197 = vld [vmem:[%s119 + $0x98] sm:%s112]
                %198 = vst [vmem:[%s120 + $0x4c] sm:%s112] %v197
                %v199 = vld [vmem:[%s119 + $0x9c] sm:%s112]
                %200 = vst [vmem:[%s120 + $0x4e] sm:%s112] %v199
                %v201 = vld [vmem:[%s119 + $0xa0] sm:%s112]
                %202 = vst [vmem:[%s120 + $0x50] sm:%s112] %v201
                %v203 = vld [vmem:[%s119 + $0xa4] sm:%s112]
                %204 = vst [vmem:[%s120 + $0x52] sm:%s112] %v203
                %v205 = vld [vmem:[%s119 + $0xa8] sm:%s112]
                %206 = vst [vmem:[%s120 + $0x54] sm:%s112] %v205
                %v207 = vld [vmem:[%s119 + $0xac] sm:%s112]
                %208 = vst [vmem:[%s120 + $0x56] sm:%s112] %v207
                %v209 = vld [vmem:[%s119 + $0xb0] sm:%s112]
                %210 = vst [vmem:[%s120 + $0x58] sm:%s112] %v209
                %v211 = vld [vmem:[%s119 + $0xb4] sm:%s112]
                %212 = vst [vmem:[%s120 + $0x5a] sm:%s112] %v211
                %v213 = vld [vmem:[%s119 + $0xb8] sm:%s112]
                %214 = vst [vmem:[%s120 + $0x5c] sm:%s112] %v213
                %v215 = vld [vmem:[%s119 + $0xbc] sm:%s112]
                %216 = vst [vmem:[%s120 + $0x5e] sm:%s112] %v215
              $region37: #{fd_attention_forward.4} parent=31 // loop_footer
                %s118 = sadd.s32 1, %s114
              $region38: #{fd_attention_forward.4} parent=31 // loop_footer_branch
                %113 = sbr.rel target = $region34
              $region39: #{fd_attention_forward.4} parent=31 // loop_exit
                _
            $region32: #{fd_attention_forward.4} parent=23 // pred_fallthru
              _
          $region24: #{fd_attention_forward.4} parent=19 // pred_fallthru
            _
          %333 = vnop
        $region20: #{fd_attention_forward.4} parent=15 // pred_fallthru
          _
      $region16: #{fd_attention_forward.4} parent=5 // pred_fallthru
        _
      %p334 = scmp.le.s32.totalorder 1, %s7
      %p335 = scmp.lt.s32.totalorder %s7, 5
      %p336 = pnand %p334, %p335
      %p337 = pneg %p336
      // Predicated region
      $region58: #{fd_attention_forward.4} parent=5 // pred_check
        _
      $region59: #{fd_attention_forward.4} parent=5 // pred_check_branch
        %339 = sbr.rel (%p336) target = $region61
      $region60: #{fd_attention_forward.4} parent=5 // pred_region
        %s340 = ssub.s32 %s7, 1
        %s341 = sand.u32 %s34, 1
        %s342 = sand.u32 %s34, 1
        %s343 = smul.addr %s342, 96
        %s344 = scalar_lea.vmem [#allocation2], %s343
        // Predicated region
        $region62: #{fd_attention_forward.4} parent=60 // pred_check
          %p345 = pneg %p47
        $region63: #{fd_attention_forward.4} parent=60 // pred_check_branch
          %347 = sbr.rel (%p345) target = $region65
        $region64: #{fd_attention_forward.4} parent=60 // pred_region
          _
        $region65: #{fd_attention_forward.4} parent=60 // pred_fallthru
          _
        %s348 = sand.u32 %s34, 1
        %s349 = sand.u32 %s34, 1
        %s350 = smul.addr %s349, 96
        %s351 = scalar_lea.vmem [#allocation2], %s350
        %p352 = pneg %p47
        %p353 = pneg %p44
        %p354 = pneg %p75
        %p355 = pneg %p72
        %s356 = sand.u32 %s62, 1
        %s357 = sand.u32 %s62, 1
        %s358 = smul.addr %s357, 8
        %s359 = scalar_lea.vmem [#allocation3], %s358
        %p362 = scmp.eq.s32.totalorder %s17, 0
        // Predicated region
        $region66: #{fd_attention_forward.4} parent=60 // pred_check
          %p363 = pneg %p362
        $region67: #{fd_attention_forward.4} parent=60 // pred_check_branch
          %365 = sbr.rel (%p363) target = $region69
        $region68: #{fd_attention_forward.4} parent=60 // pred_region
          %v366 = vld [vmem:[%s344] sm:$0x3]
          %v367 = vld [vmem:[%s344 + $0x2] sm:$0x3]
          %v368 = vld [vmem:[%s344 + $0x4] sm:$0x3]
          %v369 = vld [vmem:[%s344 + $0x6] sm:$0x3]
          %v370 = vld [vmem:[%s344 + $0x8] sm:$0x3]
          %v371 = vld [vmem:[%s344 + $0xa] sm:$0x3]
          %v372 = vld [vmem:[%s344 + $0xc] sm:$0x3]
          %v373 = vld [vmem:[%s344 + $0xe] sm:$0x3]
          %v374 = vld [vmem:[%s344 + $0x10] sm:$0x3]
          %v375 = vld [vmem:[%s344 + $0x12] sm:$0x3]
          %v376 = vld [vmem:[%s344 + $0x14] sm:$0x3]
          %v377 = vld [vmem:[%s344 + $0x16] sm:$0x3]
          %v378 = vld [vmem:[%s344 + $0x18] sm:$0x3]
          %v379 = vld [vmem:[%s344 + $0x1a] sm:$0x3]
          %v380 = vld [vmem:[%s344 + $0x1c] sm:$0x3]
          %v381 = vld [vmem:[%s344 + $0x1e] sm:$0x3]
          %v382 = vld [vmem:[%s344 + $0x20] sm:$0x3]
          %v383 = vld [vmem:[%s344 + $0x22] sm:$0x3]
          %v384 = vld [vmem:[%s344 + $0x24] sm:$0x3]
          %v385 = vld [vmem:[%s344 + $0x26] sm:$0x3]
          %v386 = vld [vmem:[%s344 + $0x28] sm:$0x3]
          %v387 = vld [vmem:[%s344 + $0x2a] sm:$0x3]
          %v388 = vld [vmem:[%s344 + $0x2c] sm:$0x3]
          %v389 = vld [vmem:[%s344 + $0x2e] sm:$0x3]
          %v390 = vld [vmem:[%s344 + $0x30] sm:$0x3]
          %v391 = vld [vmem:[%s344 + $0x32] sm:$0x3]
          %v392 = vld [vmem:[%s344 + $0x34] sm:$0x3]
          %v393 = vld [vmem:[%s344 + $0x36] sm:$0x3]
          %v394 = vld [vmem:[%s344 + $0x38] sm:$0x3]
          %v395 = vld [vmem:[%s344 + $0x3a] sm:$0x3]
          %v396 = vld [vmem:[%s344 + $0x3c] sm:$0x3]
          %v397 = vld [vmem:[%s344 + $0x3e] sm:$0x3]
          %v398 = vld [vmem:[%s344 + $0x40] sm:$0x3]
          %v399 = vld [vmem:[%s344 + $0x42] sm:$0x3]
          %v400 = vld [vmem:[%s344 + $0x44] sm:$0x3]
          %v401 = vld [vmem:[%s344 + $0x46] sm:$0x3]
          %v402 = vld [vmem:[%s344 + $0x48] sm:$0x3]
          %v403 = vld [vmem:[%s344 + $0x4a] sm:$0x3]
          %v404 = vld [vmem:[%s344 + $0x4c] sm:$0x3]
          %v405 = vld [vmem:[%s344 + $0x4e] sm:$0x3]
          %v406 = vld [vmem:[%s344 + $0x50] sm:$0x3]
          %v407 = vld [vmem:[%s344 + $0x52] sm:$0x3]
          %v408 = vld [vmem:[%s344 + $0x54] sm:$0x3]
          %v409 = vld [vmem:[%s344 + $0x56] sm:$0x3]
          %v410 = vld [vmem:[%s344 + $0x58] sm:$0x3]
          %v411 = vld [vmem:[%s344 + $0x5a] sm:$0x3]
          %v412 = vld [vmem:[%s344 + $0x5c] sm:$0x3]
          %v413 = vld [vmem:[%s344 + $0x5e] sm:$0x3]
          %v414 = vcombine.low %v366, %v372
          %v416 = vunpack.c.l.s4 1934713408
          %v417 = vunpack.c.0.s8 %v416
          %v418 = vlaneseq
          %v419 = vshrl.u32 %v418, 7
          %v420 = vsub.s32 %v417, %v419
          %v421 = vrot.slane %v414, %v420
          %v422 = vcombine.high %v421, 0
          %v423 = vcombine.low %v369, %v375
          %v425 = vunpack.c.l.s4 1934713408
          %v426 = vunpack.c.0.s8 %v425
          %v427 = vlaneseq
          %v428 = vshrl.u32 %v427, 7
          %v429 = vsub.s32 %v426, %v428
          %v430 = vrot.slane %v423, %v429
          %v431 = vcombine.high %v430, 0
          %v432 = vcombine.low %v378, %v384
          %v434 = vunpack.c.l.s4 1934713408
          %v435 = vunpack.c.0.s8 %v434
          %v436 = vlaneseq
          %v437 = vshrl.u32 %v436, 7
          %v438 = vsub.s32 %v435, %v437
          %v439 = vrot.slane %v432, %v438
          %v440 = vcombine.high %v439, 0
          %v441 = vcombine.low %v381, %v387
          %v443 = vunpack.c.l.s4 1934713408
          %v444 = vunpack.c.0.s8 %v443
          %v445 = vlaneseq
          %v446 = vshrl.u32 %v445, 7
          %v447 = vsub.s32 %v444, %v446
          %v448 = vrot.slane %v441, %v447
          %v449 = vcombine.high %v448, 0
          %v450 = vcombine.low %v390, %v396
          %v452 = vunpack.c.l.s4 1934713408
          %v453 = vunpack.c.0.s8 %v452
          %v454 = vlaneseq
          %v455 = vshrl.u32 %v454, 7
          %v456 = vsub.s32 %v453, %v455
          %v457 = vrot.slane %v450, %v456
          %v458 = vcombine.high %v457, 0
          %v459 = vcombine.low %v393, %v399
          %v461 = vunpack.c.l.s4 1934713408
          %v462 = vunpack.c.0.s8 %v461
          %v463 = vlaneseq
          %v464 = vshrl.u32 %v463, 7
          %v465 = vsub.s32 %v462, %v464
          %v466 = vrot.slane %v459, %v465
          %v467 = vcombine.high %v466, 0
          %v468 = vcombine.low %v402, %v408
          %v470 = vunpack.c.l.s4 1934713408
          %v471 = vunpack.c.0.s8 %v470
          %v472 = vlaneseq
          %v473 = vshrl.u32 %v472, 7
          %v474 = vsub.s32 %v471, %v473
          %v475 = vrot.slane %v468, %v474
          %v476 = vcombine.high %v475, 0
          %v477 = vcombine.low %v405, %v411
          %v479 = vunpack.c.l.s4 1934713408
          %v480 = vunpack.c.0.s8 %v479
          %v481 = vlaneseq
          %v482 = vshrl.u32 %v481, 7
          %v483 = vsub.s32 %v480, %v482
          %v484 = vrot.slane %v477, %v483
          %v485 = vcombine.high %v484, 0
          %v488 = vpack.i.b16 %v430, %v421
          %v490 = vshrl.u32 %v421, 16
          %v491 = vshrl.u32 %v430, 16
          %v492 = vpack.i.b16 %v491, %v490
          %v496 = vpack.i.b16 %v431, %v422
          %v498 = vshrl.u32 %v422, 16
          %v499 = vshrl.u32 %v431, 16
          %v500 = vpack.i.b16 %v499, %v498
          %v504 = vpack.i.b16 %v448, %v439
          %v506 = vshrl.u32 %v439, 16
          %v507 = vshrl.u32 %v448, 16
          %v508 = vpack.i.b16 %v507, %v506
          %v512 = vpack.i.b16 %v449, %v440
          %v514 = vshrl.u32 %v440, 16
          %v515 = vshrl.u32 %v449, 16
          %v516 = vpack.i.b16 %v515, %v514
          %v520 = vpack.i.b16 %v466, %v457
          %v522 = vshrl.u32 %v457, 16
          %v523 = vshrl.u32 %v466, 16
          %v524 = vpack.i.b16 %v523, %v522
          %v528 = vpack.i.b16 %v467, %v458
          %v530 = vshrl.u32 %v458, 16
          %v531 = vshrl.u32 %v467, 16
          %v532 = vpack.i.b16 %v531, %v530
          %v536 = vpack.i.b16 %v484, %v475
          %v538 = vshrl.u32 %v475, 16
          %v539 = vshrl.u32 %v484, 16
          %v540 = vpack.i.b16 %v539, %v538
          %v544 = vpack.i.b16 %v485, %v476
          %v546 = vshrl.u32 %v476, 16
          %v547 = vshrl.u32 %v485, 16
          %v548 = vpack.i.b16 %v547, %v546
          %v550 = vmul.bf16 %v488, 1043676725
          %v551 = vmul.bf16 %v504, 1043676725
          %v552 = vmul.bf16 %v520, 1043676725
          %v553 = vmul.bf16 %v536, 1043676725
          %v554 = vmul.bf16 %v492, 1043676725
          %v555 = vmul.bf16 %v508, 1043676725
          %v556 = vmul.bf16 %v524, 1043676725
          %v557 = vmul.bf16 %v540, 1043676725
          %v558 = vmul.bf16 %v496, 1043676725
          %v559 = vmul.bf16 %v512, 1043676725
          %v560 = vmul.bf16 %v528, 1043676725
          %v561 = vmul.bf16 %v544, 1043676725
          %v562 = vmul.bf16 %v500, 1043676725
          %v563 = vmul.bf16 %v516, 1043676725
          %v564 = vmul.bf16 %v532, 1043676725
          %v565 = vmul.bf16 %v548, 1043676725
          %v566 = vcombine.low %v367, %v373
          %v568 = vunpack.c.l.s4 1934713408
          %v569 = vunpack.c.0.s8 %v568
          %v570 = vlaneseq
          %v571 = vshrl.u32 %v570, 7
          %v572 = vsub.s32 %v569, %v571
          %v573 = vrot.slane %v566, %v572
          %v574 = vcombine.high %v573, 0
          %v575 = vcombine.low %v370, %v376
          %v577 = vunpack.c.l.s4 1934713408
          %v578 = vunpack.c.0.s8 %v577
          %v579 = vlaneseq
          %v580 = vshrl.u32 %v579, 7
          %v581 = vsub.s32 %v578, %v580
          %v582 = vrot.slane %v575, %v581
          %v583 = vcombine.high %v582, 0
          %v584 = vcombine.low %v379, %v385
          %v586 = vunpack.c.l.s4 1934713408
          %v587 = vunpack.c.0.s8 %v586
          %v588 = vlaneseq
          %v589 = vshrl.u32 %v588, 7
          %v590 = vsub.s32 %v587, %v589
          %v591 = vrot.slane %v584, %v590
          %v592 = vcombine.high %v591, 0
          %v593 = vcombine.low %v382, %v388
          %v595 = vunpack.c.l.s4 1934713408
          %v596 = vunpack.c.0.s8 %v595
          %v597 = vlaneseq
          %v598 = vshrl.u32 %v597, 7
          %v599 = vsub.s32 %v596, %v598
          %v600 = vrot.slane %v593, %v599
          %v601 = vcombine.high %v600, 0
          %v602 = vcombine.low %v391, %v397
          %v604 = vunpack.c.l.s4 1934713408
          %v605 = vunpack.c.0.s8 %v604
          %v606 = vlaneseq
          %v607 = vshrl.u32 %v606, 7
          %v608 = vsub.s32 %v605, %v607
          %v609 = vrot.slane %v602, %v608
          %v610 = vcombine.high %v609, 0
          %v611 = vcombine.low %v394, %v400
          %v613 = vunpack.c.l.s4 1934713408
          %v614 = vunpack.c.0.s8 %v613
          %v615 = vlaneseq
          %v616 = vshrl.u32 %v615, 7
          %v617 = vsub.s32 %v614, %v616
          %v618 = vrot.slane %v611, %v617
          %v619 = vcombine.high %v618, 0
          %v620 = vcombine.low %v403, %v409
          %v622 = vunpack.c.l.s4 1934713408
          %v623 = vunpack.c.0.s8 %v622
          %v624 = vlaneseq
          %v625 = vshrl.u32 %v624, 7
          %v626 = vsub.s32 %v623, %v625
          %v627 = vrot.slane %v620, %v626
          %v628 = vcombine.high %v627, 0
          %v629 = vcombine.low %v406, %v412
          %v631 = vunpack.c.l.s4 1934713408
          %v632 = vunpack.c.0.s8 %v631
          %v633 = vlaneseq
          %v634 = vshrl.u32 %v633, 7
          %v635 = vsub.s32 %v632, %v634
          %v636 = vrot.slane %v629, %v635
          %v637 = vcombine.high %v636, 0
          %v640 = vpack.i.b16 %v582, %v573
          %v641 = vshrl.u32 %v573, 16
          %v642 = vshrl.u32 %v582, 16
          %v643 = vpack.i.b16 %v642, %v641
          %v646 = vpack.i.b16 %v583, %v574
          %v647 = vshrl.u32 %v574, 16
          %v648 = vshrl.u32 %v583, 16
          %v649 = vpack.i.b16 %v648, %v647
          %v652 = vpack.i.b16 %v600, %v591
          %v653 = vshrl.u32 %v591, 16
          %v654 = vshrl.u32 %v600, 16
          %v655 = vpack.i.b16 %v654, %v653
          %v658 = vpack.i.b16 %v601, %v592
          %v659 = vshrl.u32 %v592, 16
          %v660 = vshrl.u32 %v601, 16
          %v661 = vpack.i.b16 %v660, %v659
          %v664 = vpack.i.b16 %v618, %v609
          %v665 = vshrl.u32 %v609, 16
          %v666 = vshrl.u32 %v618, 16
          %v667 = vpack.i.b16 %v666, %v665
          %v670 = vpack.i.b16 %v619, %v610
          %v671 = vshrl.u32 %v610, 16
          %v672 = vshrl.u32 %v619, 16
          %v673 = vpack.i.b16 %v672, %v671
          %v676 = vpack.i.b16 %v636, %v627
          %v677 = vshrl.u32 %v627, 16
          %v678 = vshrl.u32 %v636, 16
          %v679 = vpack.i.b16 %v678, %v677
          %v682 = vpack.i.b16 %v637, %v628
          %v683 = vshrl.u32 %v628, 16
          %v684 = vshrl.u32 %v637, 16
          %v685 = vpack.i.b16 %v684, %v683
          %v686 = vcombine.low %v368, %v374
          %v688 = vunpack.c.l.s4 1934713408
          %v689 = vunpack.c.0.s8 %v688
          %v690 = vlaneseq
          %v691 = vshrl.u32 %v690, 7
          %v692 = vsub.s32 %v689, %v691
          %v693 = vrot.slane %v686, %v692
          %v694 = vcombine.high %v693, 0
          %v695 = vcombine.low %v371, %v377
          %v697 = vunpack.c.l.s4 1934713408
          %v698 = vunpack.c.0.s8 %v697
          %v699 = vlaneseq
          %v700 = vshrl.u32 %v699, 7
          %v701 = vsub.s32 %v698, %v700
          %v702 = vrot.slane %v695, %v701
          %v703 = vcombine.high %v702, 0
          %v704 = vcombine.low %v380, %v386
          %v706 = vunpack.c.l.s4 1934713408
          %v707 = vunpack.c.0.s8 %v706
          %v708 = vlaneseq
          %v709 = vshrl.u32 %v708, 7
          %v710 = vsub.s32 %v707, %v709
          %v711 = vrot.slane %v704, %v710
          %v712 = vcombine.high %v711, 0
          %v713 = vcombine.low %v383, %v389
          %v715 = vunpack.c.l.s4 1934713408
          %v716 = vunpack.c.0.s8 %v715
          %v717 = vlaneseq
          %v718 = vshrl.u32 %v717, 7
          %v719 = vsub.s32 %v716, %v718
          %v720 = vrot.slane %v713, %v719
          %v721 = vcombine.high %v720, 0
          %v722 = vcombine.low %v392, %v398
          %v724 = vunpack.c.l.s4 1934713408
          %v725 = vunpack.c.0.s8 %v724
          %v726 = vlaneseq
          %v727 = vshrl.u32 %v726, 7
          %v728 = vsub.s32 %v725, %v727
          %v729 = vrot.slane %v722, %v728
          %v730 = vcombine.high %v729, 0
          %v731 = vcombine.low %v395, %v401
          %v733 = vunpack.c.l.s4 1934713408
          %v734 = vunpack.c.0.s8 %v733
          %v735 = vlaneseq
          %v736 = vshrl.u32 %v735, 7
          %v737 = vsub.s32 %v734, %v736
          %v738 = vrot.slane %v731, %v737
          %v739 = vcombine.high %v738, 0
          %v740 = vcombine.low %v404, %v410
          %v742 = vunpack.c.l.s4 1934713408
          %v743 = vunpack.c.0.s8 %v742
          %v744 = vlaneseq
          %v745 = vshrl.u32 %v744, 7
          %v746 = vsub.s32 %v743, %v745
          %v747 = vrot.slane %v740, %v746
          %v748 = vcombine.high %v747, 0
          %v749 = vcombine.low %v407, %v413
          %v751 = vunpack.c.l.s4 1934713408
          %v752 = vunpack.c.0.s8 %v751
          %v753 = vlaneseq
          %v754 = vshrl.u32 %v753, 7
          %v755 = vsub.s32 %v752, %v754
          %v756 = vrot.slane %v749, %v755
          %v757 = vcombine.high %v756, 0
          %v760 = vpack.i.b16 %v702, %v693
          %v761 = vshrl.u32 %v693, 16
          %v762 = vshrl.u32 %v702, 16
          %v763 = vpack.i.b16 %v762, %v761
          %v766 = vpack.i.b16 %v703, %v694
          %v767 = vshrl.u32 %v694, 16
          %v768 = vshrl.u32 %v703, 16
          %v769 = vpack.i.b16 %v768, %v767
          %v772 = vpack.i.b16 %v720, %v711
          %v773 = vshrl.u32 %v711, 16
          %v774 = vshrl.u32 %v720, 16
          %v775 = vpack.i.b16 %v774, %v773
          %v778 = vpack.i.b16 %v721, %v712
          %v779 = vshrl.u32 %v712, 16
          %v780 = vshrl.u32 %v721, 16
          %v781 = vpack.i.b16 %v780, %v779
          %v784 = vpack.i.b16 %v738, %v729
          %v785 = vshrl.u32 %v729, 16
          %v786 = vshrl.u32 %v738, 16
          %v787 = vpack.i.b16 %v786, %v785
          %v790 = vpack.i.b16 %v739, %v730
          %v791 = vshrl.u32 %v730, 16
          %v792 = vshrl.u32 %v739, 16
          %v793 = vpack.i.b16 %v792, %v791
          %v796 = vpack.i.b16 %v756, %v747
          %v797 = vshrl.u32 %v747, 16
          %v798 = vshrl.u32 %v756, 16
          %v799 = vpack.i.b16 %v798, %v797
          %v802 = vpack.i.b16 %v757, %v748
          %v803 = vshrl.u32 %v748, 16
          %v804 = vshrl.u32 %v757, 16
          %v805 = vpack.i.b16 %v804, %v803
          %vm806 = vcmask 261120
          %v808 = vsel %vm806, %v550, 0
          %v811 = vsel %vm806, %v640, 0
          %813 = vmatprep.subr.bf16.mxu0 0
          %814 = vmatpush1.bf16.xpose.msra.mxu0 0
          %815 = vmatprep.subr.bf16.mxu0 0
          %816 = vmatpush1.bf16.xpose.msra.mxu0 0
          %817 = vmatprep.subr.bf16.mxu0 0
          %818 = vmatpush1.bf16.xpose.msra.mxu0 0
          %819 = vmatprep.subr.bf16.mxu0 0
          %820 = vmatpush1.bf16.xpose.msra.mxu0 0
          %821 = vmatprep.subr.bf16.mxu0 0
          %822 = vmatpush1.bf16.xpose.msra.mxu0 0
          %823 = vmatprep.subr.bf16.mxu0 0
          %824 = vmatpush1.bf16.xpose.msra.mxu0 0
          %825 = vmatprep.subr.bf16.mxu0 0
          %826 = vmatpush1.bf16.xpose.msra.mxu0 0
          %827 = vmatprep.subr.bf16.mxu0 0
          %828 = vmatpush1.bf16.xpose.msra.mxu0 %v811
          %829 = vmatprep.subr.bf16.mxu0 0
          %830 = vmatpush2.bf16.xpose.msra.mxu0 0
          %831 = vmatprep.subr.bf16.mxu0 0
          %832 = vmatpush2.bf16.xpose.msra.mxu0 0
          %833 = vmatprep.subr.bf16.mxu0 0
          %834 = vmatpush2.bf16.xpose.msra.mxu0 0
          %835 = vmatprep.subr.bf16.mxu0 0
          %836 = vmatpush2.bf16.xpose.msra.mxu0 0
          %837 = vmatprep.subr.bf16.mxu0 0
          %838 = vmatpush2.bf16.xpose.msra.mxu0 0
          %839 = vmatprep.subr.bf16.mxu0 0
          %840 = vmatpush2.bf16.xpose.msra.mxu0 0
          %841 = vmatprep.subr.bf16.mxu0 0
          %842 = vmatpush2.bf16.xpose.msra.mxu0 0
          %843 = vmatprep.subr.bf16.mxu0 0
          %844 = vmatpush2.bf16.xpose.msra.mxu0 0
          %845 = vmatprep.mubr.bf16.mxu0 0
          %846 = vmatmul.mubr.bf16.gmra.mxu0 %v808
          %v847 = vpop.f32.mrf.mxu0
          %v848 = vadd.f32 0.0, %v847
          %v849 = vpop.f32.mrf.mxu0
          %v850 = vpop.f32.mrf.mxu0
          %v851 = vpop.f32.mrf.mxu0
          %852 = vdwg.mxu0
          %v854 = vsel %vm806, %v551, 0
          %v857 = vsel %vm806, %v652, 0
          %859 = vmatprep.subr.bf16.mxu0 0
          %860 = vmatpush1.bf16.xpose.msra.mxu0 0
          %861 = vmatprep.subr.bf16.mxu0 0
          %862 = vmatpush1.bf16.xpose.msra.mxu0 0
          %863 = vmatprep.subr.bf16.mxu0 0
          %864 = vmatpush1.bf16.xpose.msra.mxu0 0
          %865 = vmatprep.subr.bf16.mxu0 0
          %866 = vmatpush1.bf16.xpose.msra.mxu0 0
          %867 = vmatprep.subr.bf16.mxu0 0
          %868 = vmatpush1.bf16.xpose.msra.mxu0 0
          %869 = vmatprep.subr.bf16.mxu0 0
          %870 = vmatpush1.bf16.xpose.msra.mxu0 0
          %871 = vmatprep.subr.bf16.mxu0 0
          %872 = vmatpush1.bf16.xpose.msra.mxu0 0
          %873 = vmatprep.subr.bf16.mxu0 0
          %874 = vmatpush1.bf16.xpose.msra.mxu0 %v857
          %875 = vmatprep.subr.bf16.mxu0 0
          %876 = vmatpush2.bf16.xpose.msra.mxu0 0
          %877 = vmatprep.subr.bf16.mxu0 0
          %878 = vmatpush2.bf16.xpose.msra.mxu0 0
          %879 = vmatprep.subr.bf16.mxu0 0
          %880 = vmatpush2.bf16.xpose.msra.mxu0 0
          %881 = vmatprep.subr.bf16.mxu0 0
          %882 = vmatpush2.bf16.xpose.msra.mxu0 0
          %883 = vmatprep.subr.bf16.mxu0 0
          %884 = vmatpush2.bf16.xpose.msra.mxu0 0
          %885 = vmatprep.subr.bf16.mxu0 0
          %886 = vmatpush2.bf16.xpose.msra.mxu0 0
          %887 = vmatprep.subr.bf16.mxu0 0
          %888 = vmatpush2.bf16.xpose.msra.mxu0 0
          %889 = vmatprep.subr.bf16.mxu0 0
          %890 = vmatpush2.bf16.xpose.msra.mxu0 0
          %891 = vmatprep.mubr.bf16.mxu0 0
          %892 = vmatmul.mubr.bf16.gmra.mxu0 %v854
          %v893 = vpop.f32.mrf.mxu0
          %v894 = vadd.f32 0.0, %v893
          %v895 = vpop.f32.mrf.mxu0
          %v896 = vpop.f32.mrf.mxu0
          %v897 = vpop.f32.mrf.mxu0
          %898 = vdwg.mxu0
          %v900 = vsel %vm806, %v552, 0
          %v903 = vsel %vm806, %v664, 0
          %905 = vmatprep.subr.bf16.mxu0 0
          %906 = vmatpush1.bf16.xpose.msra.mxu0 0
          %907 = vmatprep.subr.bf16.mxu0 0
          %908 = vmatpush1.bf16.xpose.msra.mxu0 0
          %909 = vmatprep.subr.bf16.mxu0 0
          %910 = vmatpush1.bf16.xpose.msra.mxu0 0
          %911 = vmatprep.subr.bf16.mxu0 0
          %912 = vmatpush1.bf16.xpose.msra.mxu0 0
          %913 = vmatprep.subr.bf16.mxu0 0
          %914 = vmatpush1.bf16.xpose.msra.mxu0 0
          %915 = vmatprep.subr.bf16.mxu0 0
          %916 = vmatpush1.bf16.xpose.msra.mxu0 0
          %917 = vmatprep.subr.bf16.mxu0 0
          %918 = vmatpush1.bf16.xpose.msra.mxu0 0
          %919 = vmatprep.subr.bf16.mxu0 0
          %920 = vmatpush1.bf16.xpose.msra.mxu0 %v903
          %921 = vmatprep.subr.bf16.mxu0 0
          %922 = vmatpush2.bf16.xpose.msra.mxu0 0
          %923 = vmatprep.subr.bf16.mxu0 0
          %924 = vmatpush2.bf16.xpose.msra.mxu0 0
          %925 = vmatprep.subr.bf16.mxu0 0
          %926 = vmatpush2.bf16.xpose.msra.mxu0 0
          %927 = vmatprep.subr.bf16.mxu0 0
          %928 = vmatpush2.bf16.xpose.msra.mxu0 0
          %929 = vmatprep.subr.bf16.mxu0 0
          %930 = vmatpush2.bf16.xpose.msra.mxu0 0
          %931 = vmatprep.subr.bf16.mxu0 0
          %932 = vmatpush2.bf16.xpose.msra.mxu0 0
          %933 = vmatprep.subr.bf16.mxu0 0
          %934 = vmatpush2.bf16.xpose.msra.mxu0 0
          %935 = vmatprep.subr.bf16.mxu0 0
          %936 = vmatpush2.bf16.xpose.msra.mxu0 0
          %937 = vmatprep.mubr.bf16.mxu0 0
          %938 = vmatmul.mubr.bf16.gmra.mxu0 %v900
          %v939 = vpop.f32.mrf.mxu0
          %v940 = vadd.f32 0.0, %v939
          %v941 = vpop.f32.mrf.mxu0
          %v942 = vpop.f32.mrf.mxu0
          %v943 = vpop.f32.mrf.mxu0
          %944 = vdwg.mxu0
          %v946 = vsel %vm806, %v553, 0
          %v949 = vsel %vm806, %v676, 0
          %951 = vmatprep.subr.bf16.mxu0 0
          %952 = vmatpush1.bf16.xpose.msra.mxu0 0
          %953 = vmatprep.subr.bf16.mxu0 0
          %954 = vmatpush1.bf16.xpose.msra.mxu0 0
          %955 = vmatprep.subr.bf16.mxu0 0
          %956 = vmatpush1.bf16.xpose.msra.mxu0 0
          %957 = vmatprep.subr.bf16.mxu0 0
          %958 = vmatpush1.bf16.xpose.msra.mxu0 0
          %959 = vmatprep.subr.bf16.mxu0 0
          %960 = vmatpush1.bf16.xpose.msra.mxu0 0
          %961 = vmatprep.subr.bf16.mxu0 0
          %962 = vmatpush1.bf16.xpose.msra.mxu0 0
          %963 = vmatprep.subr.bf16.mxu0 0
          %964 = vmatpush1.bf16.xpose.msra.mxu0 0
          %965 = vmatprep.subr.bf16.mxu0 0
          %966 = vmatpush1.bf16.xpose.msra.mxu0 %v949
          %967 = vmatprep.subr.bf16.mxu0 0
          %968 = vmatpush2.bf16.xpose.msra.mxu0 0
          %969 = vmatprep.subr.bf16.mxu0 0
          %970 = vmatpush2.bf16.xpose.msra.mxu0 0
          %971 = vmatprep.subr.bf16.mxu0 0
          %972 = vmatpush2.bf16.xpose.msra.mxu0 0
          %973 = vmatprep.subr.bf16.mxu0 0
          %974 = vmatpush2.bf16.xpose.msra.mxu0 0
          %975 = vmatprep.subr.bf16.mxu0 0
          %976 = vmatpush2.bf16.xpose.msra.mxu0 0
          %977 = vmatprep.subr.bf16.mxu0 0
          %978 = vmatpush2.bf16.xpose.msra.mxu0 0
          %979 = vmatprep.subr.bf16.mxu0 0
          %980 = vmatpush2.bf16.xpose.msra.mxu0 0
          %981 = vmatprep.subr.bf16.mxu0 0
          %982 = vmatpush2.bf16.xpose.msra.mxu0 0
          %983 = vmatprep.mubr.bf16.mxu0 0
          %984 = vmatmul.mubr.bf16.gmra.mxu0 %v946
          %v985 = vpop.f32.mrf.mxu0
          %v986 = vadd.f32 0.0, %v985
          %v987 = vpop.f32.mrf.mxu0
          %v988 = vpop.f32.mrf.mxu0
          %v989 = vpop.f32.mrf.mxu0
          %990 = vdwg.mxu0
          %v992 = vsel %vm806, %v554, 0
          %v995 = vsel %vm806, %v643, 0
          %997 = vmatprep.subr.bf16.mxu0 0
          %998 = vmatpush1.bf16.xpose.msra.mxu0 0
          %999 = vmatprep.subr.bf16.mxu0 0
          %1000 = vmatpush1.bf16.xpose.msra.mxu0 0
          %1001 = vmatprep.subr.bf16.mxu0 0
          %1002 = vmatpush1.bf16.xpose.msra.mxu0 0
          %1003 = vmatprep.subr.bf16.mxu0 0
          %1004 = vmatpush1.bf16.xpose.msra.mxu0 0
          %1005 = vmatprep.subr.bf16.mxu0 0
          %1006 = vmatpush1.bf16.xpose.msra.mxu0 0
          %1007 = vmatprep.subr.bf16.mxu0 0
          %1008 = vmatpush1.bf16.xpose.msra.mxu0 0
          %1009 = vmatprep.subr.bf16.mxu0 0
          %1010 = vmatpush1.bf16.xpose.msra.mxu0 0
          %1011 = vmatprep.subr.bf16.mxu0 0
          %1012 = vmatpush1.bf16.xpose.msra.mxu0 %v995
          %1013 = vmatprep.subr.bf16.mxu0 0
          %1014 = vmatpush2.bf16.xpose.msra.mxu0 0
          %1015 = vmatprep.subr.bf16.mxu0 0
          %1016 = vmatpush2.bf16.xpose.msra.mxu0 0
          %1017 = vmatprep.subr.bf16.mxu0 0
          %1018 = vmatpush2.bf16.xpose.msra.mxu0 0
          %1019 = vmatprep.subr.bf16.mxu0 0
          %1020 = vmatpush2.bf16.xpose.msra.mxu0 0
          %1021 = vmatprep.subr.bf16.mxu0 0
          %1022 = vmatpush2.bf16.xpose.msra.mxu0 0
          %1023 = vmatprep.subr.bf16.mxu0 0
          %1024 = vmatpush2.bf16.xpose.msra.mxu0 0
          %1025 = vmatprep.subr.bf16.mxu0 0
          %1026 = vmatpush2.bf16.xpose.msra.mxu0 0
          %1027 = vmatprep.subr.bf16.mxu0 0
          %1028 = vmatpush2.bf16.xpose.msra.mxu0 0
          %1029 = vmatprep.mubr.bf16.mxu0 0
          %1030 = vmatmul.mubr.bf16.gmra.mxu0 %v992
          %v1031 = vpop.f32.mrf.mxu0
          %v1032 = vadd.f32 0.0, %v1031
          %v1033 = vpop.f32.mrf.mxu0
          %v1034 = vpop.f32.mrf.mxu0
          %v1035 = vpop.f32.mrf.mxu0
          %1036 = vdwg.mxu0
          %v1038 = vsel %vm806, %v555, 0
          %v1041 = vsel %vm806, %v655, 0
          %1043 = vmatprep.subr.bf16.mxu0 0
          %1044 = vmatpush1.bf16.xpose.msra.mxu0 0
          %1045 = vmatprep.subr.bf16.mxu0 0
          %1046 = vmatpush1.bf16.xpose.msra.mxu0 0
          %1047 = vmatprep.subr.bf16.mxu0 0
          %1048 = vmatpush1.bf16.xpose.msra.mxu0 0
          %1049 = vmatprep.subr.bf16.mxu0 0
          %1050 = vmatpush1.bf16.xpose.msra.mxu0 0
          %1051 = vmatprep.subr.bf16.mxu0 0
          %1052 = vmatpush1.bf16.xpose.msra.mxu0 0
          %1053 = vmatprep.subr.bf16.mxu0 0
          %1054 = vmatpush1.bf16.xpose.msra.mxu0 0
          %1055 = vmatprep.subr.bf16.mxu0 0
          %1056 = vmatpush1.bf16.xpose.msra.mxu0 0
          %1057 = vmatprep.subr.bf16.mxu0 0
          %1058 = vmatpush1.bf16.xpose.msra.mxu0 %v1041
          %1059 = vmatprep.subr.bf16.mxu0 0
          %1060 = vmatpush2.bf16.xpose.msra.mxu0 0
          %1061 = vmatprep.subr.bf16.mxu0 0
          %1062 = vmatpush2.bf16.xpose.msra.mxu0 0
          %1063 = vmatprep.subr.bf16.mxu0 0
          %1064 = vmatpush2.bf16.xpose.msra.mxu0 0
          %1065 = vmatprep.subr.bf16.mxu0 0
          %1066 = vmatpush2.bf16.xpose.msra.mxu0 0
          %1067 = vmatprep.subr.bf16.mxu0 0
          %1068 = vmatpush2.bf16.xpose.msra.mxu0 0
          %1069 = vmatprep.subr.bf16.mxu0 0
          %1070 = vmatpush2.bf16.xpose.msra.mxu0 0
          %1071 = vmatprep.subr.bf16.mxu0 0
          %1072 = vmatpush2.bf16.xpose.msra.mxu0 0
          %1073 = vmatprep.subr.bf16.mxu0 0
          %1074 = vmatpush2.bf16.xpose.msra.mxu0 0
          %1075 = vmatprep.mubr.bf16.mxu0 0
          %1076 = vmatmul.mubr.bf16.gmra.mxu0 %v1038
          %v1077 = vpop.f32.mrf.mxu0
          %v1078 = vadd.f32 0.0, %v1077
          %v1079 = vpop.f32.mrf.mxu0
          %v1080 = vpop.f32.mrf.mxu0
          %v1081 = vpop.f32.mrf.mxu0
          %1082 = vdwg.mxu0
          %v1084 = vsel %vm806, %v556, 0
          %v1087 = vsel %vm806, %v667, 0
          %1089 = vmatprep.subr.bf16.mxu0 0
          %1090 = vmatpush1.bf16.xpose.msra.mxu0 0
          %1091 = vmatprep.subr.bf16.mxu0 0
          %1092 = vmatpush1.bf16.xpose.msra.mxu0 0
          %1093 = vmatprep.subr.bf16.mxu0 0
          %1094 = vmatpush1.bf16.xpose.msra.mxu0 0
          %1095 = vmatprep.subr.bf16.mxu0 0
          %1096 = vmatpush1.bf16.xpose.msra.mxu0 0
          %1097 = vmatprep.subr.bf16.mxu0 0
          %1098 = vmatpush1.bf16.xpose.msra.mxu0 0
          %1099 = vmatprep.subr.bf16.mxu0 0
          %1100 = vmatpush1.bf16.xpose.msra.mxu0 0
          %1101 = vmatprep.subr.bf16.mxu0 0
          %1102 = vmatpush1.bf16.xpose.msra.mxu0 0
          %1103 = vmatprep.subr.bf16.mxu0 0
          %1104 = vmatpush1.bf16.xpose.msra.mxu0 %v1087
          %1105 = vmatprep.subr.bf16.mxu0 0
          %1106 = vmatpush2.bf16.xpose.msra.mxu0 0
          %1107 = vmatprep.subr.bf16.mxu0 0
          %1108 = vmatpush2.bf16.xpose.msra.mxu0 0
          %1109 = vmatprep.subr.bf16.mxu0 0
          %1110 = vmatpush2.bf16.xpose.msra.mxu0 0
          %1111 = vmatprep.subr.bf16.mxu0 0
          %1112 = vmatpush2.bf16.xpose.msra.mxu0 0
          %1113 = vmatprep.subr.bf16.mxu0 0
          %1114 = vmatpush2.bf16.xpose.msra.mxu0 0
          %1115 = vmatprep.subr.bf16.mxu0 0
          %1116 = vmatpush2.bf16.xpose.msra.mxu0 0
          %1117 = vmatprep.subr.bf16.mxu0 0
          %1118 = vmatpush2.bf16.xpose.msra.mxu0 0
          %1119 = vmatprep.subr.bf16.mxu0 0
          %1120 = vmatpush2.bf16.xpose.msra.mxu0 0
          %1121 = vmatprep.mubr.bf16.mxu0 0
          %1122 = vmatmul.mubr.bf16.gmra.mxu0 %v1084
          %v1123 = vpop.f32.mrf.mxu0
          %v1124 = vadd.f32 0.0, %v1123
          %v1125 = vpop.f32.mrf.mxu0
          %v1126 = vpop.f32.mrf.mxu0
          %v1127 = vpop.f32.mrf.mxu0
          %1128 = vdwg.mxu0
          %v1130 = vsel %vm806, %v557, 0
          %v1133 = vsel %vm806, %v679, 0
          %1135 = vmatprep.subr.bf16.mxu0 0
          %1136 = vmatpush1.bf16.xpose.msra.mxu0 0
          %1137 = vmatprep.subr.bf16.mxu0 0
          %1138 = vmatpush1.bf16.xpose.msra.mxu0 0
          %1139 = vmatprep.subr.bf16.mxu0 0
          %1140 = vmatpush1.bf16.xpose.msra.mxu0 0
          %1141 = vmatprep.subr.bf16.mxu0 0
          %1142 = vmatpush1.bf16.xpose.msra.mxu0 0
          %1143 = vmatprep.subr.bf16.mxu0 0
          %1144 = vmatpush1.bf16.xpose.msra.mxu0 0
          %1145 = vmatprep.subr.bf16.mxu0 0
          %1146 = vmatpush1.bf16.xpose.msra.mxu0 0
          %1147 = vmatprep.subr.bf16.mxu0 0
          %1148 = vmatpush1.bf16.xpose.msra.mxu0 0
          %1149 = vmatprep.subr.bf16.mxu0 0
          %1150 = vmatpush1.bf16.xpose.msra.mxu0 %v1133
          %1151 = vmatprep.subr.bf16.mxu0 0
          %1152 = vmatpush2.bf16.xpose.msra.mxu0 0
          %1153 = vmatprep.subr.bf16.mxu0 0
          %1154 = vmatpush2.bf16.xpose.msra.mxu0 0
          %1155 = vmatprep.subr.bf16.mxu0 0
          %1156 = vmatpush2.bf16.xpose.msra.mxu0 0
          %1157 = vmatprep.subr.bf16.mxu0 0
          %1158 = vmatpush2.bf16.xpose.msra.mxu0 0
          %1159 = vmatprep.subr.bf16.mxu0 0
          %1160 = vmatpush2.bf16.xpose.msra.mxu0 0
          %1161 = vmatprep.subr.bf16.mxu0 0
          %1162 = vmatpush2.bf16.xpose.msra.mxu0 0
          %1163 = vmatprep.subr.bf16.mxu0 0
          %1164 = vmatpush2.bf16.xpose.msra.mxu0 0
          %1165 = vmatprep.subr.bf16.mxu0 0
          %1166 = vmatpush2.bf16.xpose.msra.mxu0 0
          %1167 = vmatprep.mubr.bf16.mxu0 0
          %1168 = vmatmul.mubr.bf16.gmra.mxu0 %v1130
          %v1169 = vpop.f32.mrf.mxu0
          %v1170 = vadd.f32 0.0, %v1169
          %v1171 = vpop.f32.mrf.mxu0
          %v1172 = vpop.f32.mrf.mxu0
          %v1173 = vpop.f32.mrf.mxu0
          %1174 = vdwg.mxu0
          %v1176 = vsel %vm806, %v558, 0
          %v1179 = vsel %vm806, %v646, 0
          %1181 = vmatprep.subr.bf16.mxu0 0
          %1182 = vmatpush1.bf16.xpose.msra.mxu0 0
          %1183 = vmatprep.subr.bf16.mxu0 0
          %1184 = vmatpush1.bf16.xpose.msra.mxu0 0
          %1185 = vmatprep.subr.bf16.mxu0 0
          %1186 = vmatpush1.bf16.xpose.msra.mxu0 0
          %1187 = vmatprep.subr.bf16.mxu0 0
          %1188 = vmatpush1.bf16.xpose.msra.mxu0 0
          %1189 = vmatprep.subr.bf16.mxu0 0
          %1190 = vmatpush1.bf16.xpose.msra.mxu0 0
          %1191 = vmatprep.subr.bf16.mxu0 0
          %1192 = vmatpush1.bf16.xpose.msra.mxu0 0
          %1193 = vmatprep.subr.bf16.mxu0 0
          %1194 = vmatpush1.bf16.xpose.msra.mxu0 0
          %1195 = vmatprep.subr.bf16.mxu0 0
          %1196 = vmatpush1.bf16.xpose.msra.mxu0 %v1179
          %1197 = vmatprep.subr.bf16.mxu0 0
          %1198 = vmatpush2.bf16.xpose.msra.mxu0 0
          %1199 = vmatprep.subr.bf16.mxu0 0
          %1200 = vmatpush2.bf16.xpose.msra.mxu0 0
          %1201 = vmatprep.subr.bf16.mxu0 0
          %1202 = vmatpush2.bf16.xpose.msra.mxu0 0
          %1203 = vmatprep.subr.bf16.mxu0 0
          %1204 = vmatpush2.bf16.xpose.msra.mxu0 0
          %1205 = vmatprep.subr.bf16.mxu0 0
          %1206 = vmatpush2.bf16.xpose.msra.mxu0 0
          %1207 = vmatprep.subr.bf16.mxu0 0
          %1208 = vmatpush2.bf16.xpose.msra.mxu0 0
          %1209 = vmatprep.subr.bf16.mxu0 0
          %1210 = vmatpush2.bf16.xpose.msra.mxu0 0
          %1211 = vmatprep.subr.bf16.mxu0 0
          %1212 = vmatpush2.bf16.xpose.msra.mxu0 0
          %1213 = vmatprep.mubr.bf16.mxu0 0
          %1214 = vmatmul.mubr.bf16.gmra.mxu0 %v1176
          %v1215 = vpop.f32.mrf.mxu0
          %v1216 = vadd.f32 0.0, %v1215
          %v1217 = vpop.f32.mrf.mxu0
          %v1218 = vpop.f32.mrf.mxu0
          %v1219 = vpop.f32.mrf.mxu0
          %1220 = vdwg.mxu0
          %v1222 = vsel %vm806, %v559, 0
          %v1225 = vsel %vm806, %v658, 0
          %1227 = vmatprep.subr.bf16.mxu0 0
          %1228 = vmatpush1.bf16.xpose.msra.mxu0 0
          %1229 = vmatprep.subr.bf16.mxu0 0
          %1230 = vmatpush1.bf16.xpose.msra.mxu0 0
          %1231 = vmatprep.subr.bf16.mxu0 0
          %1232 = vmatpush1.bf16.xpose.msra.mxu0 0
          %1233 = vmatprep.subr.bf16.mxu0 0
          %1234 = vmatpush1.bf16.xpose.msra.mxu0 0
          %1235 = vmatprep.subr.bf16.mxu0 0
          %1236 = vmatpush1.bf16.xpose.msra.mxu0 0
          %1237 = vmatprep.subr.bf16.mxu0 0
          %1238 = vmatpush1.bf16.xpose.msra.mxu0 0
          %1239 = vmatprep.subr.bf16.mxu0 0
          %1240 = vmatpush1.bf16.xpose.msra.mxu0 0
          %1241 = vmatprep.subr.bf16.mxu0 0
          %1242 = vmatpush1.bf16.xpose.msra.mxu0 %v1225
          %1243 = vmatprep.subr.bf16.mxu0 0
          %1244 = vmatpush2.bf16.xpose.msra.mxu0 0
          %1245 = vmatprep.subr.bf16.mxu0 0
          %1246 = vmatpush2.bf16.xpose.msra.mxu0 0
          %1247 = vmatprep.subr.bf16.mxu0 0
          %1248 = vmatpush2.bf16.xpose.msra.mxu0 0
          %1249 = vmatprep.subr.bf16.mxu0 0
          %1250 = vmatpush2.bf16.xpose.msra.mxu0 0
          %1251 = vmatprep.subr.bf16.mxu0 0
          %1252 = vmatpush2.bf16.xpose.msra.mxu0 0
          %1253 = vmatprep.subr.bf16.mxu0 0
          %1254 = vmatpush2.bf16.xpose.msra.mxu0 0
          %1255 = vmatprep.subr.bf16.mxu0 0
          %1256 = vmatpush2.bf16.xpose.msra.mxu0 0
          %1257 = vmatprep.subr.bf16.mxu0 0
          %1258 = vmatpush2.bf16.xpose.msra.mxu0 0
          %1259 = vmatprep.mubr.bf16.mxu0 0
          %1260 = vmatmul.mubr.bf16.gmra.mxu0 %v1222
          %v1261 = vpop.f32.mrf.mxu0
          %v1262 = vadd.f32 0.0, %v1261
          %v1263 = vpop.f32.mrf.mxu0
          %v1264 = vpop.f32.mrf.mxu0
          %v1265 = vpop.f32.mrf.mxu0
          %1266 = vdwg.mxu0
          %v1268 = vsel %vm806, %v560, 0
          %v1271 = vsel %vm806, %v670, 0
          %1273 = vmatprep.subr.bf16.mxu0 0
          %1274 = vmatpush1.bf16.xpose.msra.mxu0 0
          %1275 = vmatprep.subr.bf16.mxu0 0
          %1276 = vmatpush1.bf16.xpose.msra.mxu0 0
          %1277 = vmatprep.subr.bf16.mxu0 0
          %1278 = vmatpush1.bf16.xpose.msra.mxu0 0
          %1279 = vmatprep.subr.bf16.mxu0 0
          %1280 = vmatpush1.bf16.xpose.msra.mxu0 0
          %1281 = vmatprep.subr.bf16.mxu0 0
          %1282 = vmatpush1.bf16.xpose.msra.mxu0 0
          %1283 = vmatprep.subr.bf16.mxu0 0
          %1284 = vmatpush1.bf16.xpose.msra.mxu0 0
          %1285 = vmatprep.subr.bf16.mxu0 0
          %1286 = vmatpush1.bf16.xpose.msra.mxu0 0
          %1287 = vmatprep.subr.bf16.mxu0 0
          %1288 = vmatpush1.bf16.xpose.msra.mxu0 %v1271
          %1289 = vmatprep.subr.bf16.mxu0 0
          %1290 = vmatpush2.bf16.xpose.msra.mxu0 0
          %1291 = vmatprep.subr.bf16.mxu0 0
          %1292 = vmatpush2.bf16.xpose.msra.mxu0 0
          %1293 = vmatprep.subr.bf16.mxu0 0
          %1294 = vmatpush2.bf16.xpose.msra.mxu0 0
          %1295 = vmatprep.subr.bf16.mxu0 0
          %1296 = vmatpush2.bf16.xpose.msra.mxu0 0
          %1297 = vmatprep.subr.bf16.mxu0 0
          %1298 = vmatpush2.bf16.xpose.msra.mxu0 0
          %1299 = vmatprep.subr.bf16.mxu0 0
          %1300 = vmatpush2.bf16.xpose.msra.mxu0 0
          %1301 = vmatprep.subr.bf16.mxu0 0
          %1302 = vmatpush2.bf16.xpose.msra.mxu0 0
          %1303 = vmatprep.subr.bf16.mxu0 0
          %1304 = vmatpush2.bf16.xpose.msra.mxu0 0
          %1305 = vmatprep.mubr.bf16.mxu0 0
          %1306 = vmatmul.mubr.bf16.gmra.mxu0 %v1268
          %v1307 = vpop.f32.mrf.mxu0
          %v1308 = vadd.f32 0.0, %v1307
          %v1309 = vpop.f32.mrf.mxu0
          %v1310 = vpop.f32.mrf.mxu0
          %v1311 = vpop.f32.mrf.mxu0
          %1312 = vdwg.mxu0
          %v1314 = vsel %vm806, %v561, 0
          %v1317 = vsel %vm806, %v682, 0
          %1319 = vmatprep.subr.bf16.mxu0 0
          %1320 = vmatpush1.bf16.xpose.msra.mxu0 0
          %1321 = vmatprep.subr.bf16.mxu0 0
          %1322 = vmatpush1.bf16.xpose.msra.mxu0 0
          %1323 = vmatprep.subr.bf16.mxu0 0
          %1324 = vmatpush1.bf16.xpose.msra.mxu0 0
          %1325 = vmatprep.subr.bf16.mxu0 0
          %1326 = vmatpush1.bf16.xpose.msra.mxu0 0
          %1327 = vmatprep.subr.bf16.mxu0 0
          %1328 = vmatpush1.bf16.xpose.msra.mxu0 0
          %1329 = vmatprep.subr.bf16.mxu0 0
          %1330 = vmatpush1.bf16.xpose.msra.mxu0 0
          %1331 = vmatprep.subr.bf16.mxu0 0
          %1332 = vmatpush1.bf16.xpose.msra.mxu0 0
          %1333 = vmatprep.subr.bf16.mxu0 0
          %1334 = vmatpush1.bf16.xpose.msra.mxu0 %v1317
          %1335 = vmatprep.subr.bf16.mxu0 0
          %1336 = vmatpush2.bf16.xpose.msra.mxu0 0
          %1337 = vmatprep.subr.bf16.mxu0 0
          %1338 = vmatpush2.bf16.xpose.msra.mxu0 0
          %1339 = vmatprep.subr.bf16.mxu0 0
          %1340 = vmatpush2.bf16.xpose.msra.mxu0 0
          %1341 = vmatprep.subr.bf16.mxu0 0
          %1342 = vmatpush2.bf16.xpose.msra.mxu0 0
          %1343 = vmatprep.subr.bf16.mxu0 0
          %1344 = vmatpush2.bf16.xpose.msra.mxu0 0
          %1345 = vmatprep.subr.bf16.mxu0 0
          %1346 = vmatpush2.bf16.xpose.msra.mxu0 0
          %1347 = vmatprep.subr.bf16.mxu0 0
          %1348 = vmatpush2.bf16.xpose.msra.mxu0 0
          %1349 = vmatprep.subr.bf16.mxu0 0
          %1350 = vmatpush2.bf16.xpose.msra.mxu0 0
          %1351 = vmatprep.mubr.bf16.mxu0 0
          %1352 = vmatmul.mubr.bf16.gmra.mxu0 %v1314
          %v1353 = vpop.f32.mrf.mxu0
          %v1354 = vadd.f32 0.0, %v1353
          %v1355 = vpop.f32.mrf.mxu0
          %v1356 = vpop.f32.mrf.mxu0
          %v1357 = vpop.f32.mrf.mxu0
          %1358 = vdwg.mxu0
          %v1360 = vsel %vm806, %v562, 0
          %v1363 = vsel %vm806, %v649, 0
          %1365 = vmatprep.subr.bf16.mxu0 0
          %1366 = vmatpush1.bf16.xpose.msra.mxu0 0
          %1367 = vmatprep.subr.bf16.mxu0 0
          %1368 = vmatpush1.bf16.xpose.msra.mxu0 0
          %1369 = vmatprep.subr.bf16.mxu0 0
          %1370 = vmatpush1.bf16.xpose.msra.mxu0 0
          %1371 = vmatprep.subr.bf16.mxu0 0
          %1372 = vmatpush1.bf16.xpose.msra.mxu0 0
          %1373 = vmatprep.subr.bf16.mxu0 0
          %1374 = vmatpush1.bf16.xpose.msra.mxu0 0
          %1375 = vmatprep.subr.bf16.mxu0 0
          %1376 = vmatpush1.bf16.xpose.msra.mxu0 0
          %1377 = vmatprep.subr.bf16.mxu0 0
          %1378 = vmatpush1.bf16.xpose.msra.mxu0 0
          %1379 = vmatprep.subr.bf16.mxu0 0
          %1380 = vmatpush1.bf16.xpose.msra.mxu0 %v1363
          %1381 = vmatprep.subr.bf16.mxu0 0
          %1382 = vmatpush2.bf16.xpose.msra.mxu0 0
          %1383 = vmatprep.subr.bf16.mxu0 0
          %1384 = vmatpush2.bf16.xpose.msra.mxu0 0
          %1385 = vmatprep.subr.bf16.mxu0 0
          %1386 = vmatpush2.bf16.xpose.msra.mxu0 0
          %1387 = vmatprep.subr.bf16.mxu0 0
          %1388 = vmatpush2.bf16.xpose.msra.mxu0 0
          %1389 = vmatprep.subr.bf16.mxu0 0
          %1390 = vmatpush2.bf16.xpose.msra.mxu0 0
          %1391 = vmatprep.subr.bf16.mxu0 0
          %1392 = vmatpush2.bf16.xpose.msra.mxu0 0
          %1393 = vmatprep.subr.bf16.mxu0 0
          %1394 = vmatpush2.bf16.xpose.msra.mxu0 0
          %1395 = vmatprep.subr.bf16.mxu0 0
          %1396 = vmatpush2.bf16.xpose.msra.mxu0 0
          %1397 = vmatprep.mubr.bf16.mxu0 0
          %1398 = vmatmul.mubr.bf16.gmra.mxu0 %v1360
          %v1399 = vpop.f32.mrf.mxu0
          %v1400 = vadd.f32 0.0, %v1399
          %v1401 = vpop.f32.mrf.mxu0
          %v1402 = vpop.f32.mrf.mxu0
          %v1403 = vpop.f32.mrf.mxu0
          %1404 = vdwg.mxu0
          %v1406 = vsel %vm806, %v563, 0
          %v1409 = vsel %vm806, %v661, 0
          %1411 = vmatprep.subr.bf16.mxu0 0
          %1412 = vmatpush1.bf16.xpose.msra.mxu0 0
          %1413 = vmatprep.subr.bf16.mxu0 0
          %1414 = vmatpush1.bf16.xpose.msra.mxu0 0
          %1415 = vmatprep.subr.bf16.mxu0 0
          %1416 = vmatpush1.bf16.xpose.msra.mxu0 0
          %1417 = vmatprep.subr.bf16.mxu0 0
          %1418 = vmatpush1.bf16.xpose.msra.mxu0 0
          %1419 = vmatprep.subr.bf16.mxu0 0
          %1420 = vmatpush1.bf16.xpose.msra.mxu0 0
          %1421 = vmatprep.subr.bf16.mxu0 0
          %1422 = vmatpush1.bf16.xpose.msra.mxu0 0
          %1423 = vmatprep.subr.bf16.mxu0 0
          %1424 = vmatpush1.bf16.xpose.msra.mxu0 0
          %1425 = vmatprep.subr.bf16.mxu0 0
          %1426 = vmatpush1.bf16.xpose.msra.mxu0 %v1409
          %1427 = vmatprep.subr.bf16.mxu0 0
          %1428 = vmatpush2.bf16.xpose.msra.mxu0 0
          %1429 = vmatprep.subr.bf16.mxu0 0
          %1430 = vmatpush2.bf16.xpose.msra.mxu0 0
          %1431 = vmatprep.subr.bf16.mxu0 0
          %1432 = vmatpush2.bf16.xpose.msra.mxu0 0
          %1433 = vmatprep.subr.bf16.mxu0 0
          %1434 = vmatpush2.bf16.xpose.msra.mxu0 0
          %1435 = vmatprep.subr.bf16.mxu0 0
          %1436 = vmatpush2.bf16.xpose.msra.mxu0 0
          %1437 = vmatprep.subr.bf16.mxu0 0
          %1438 = vmatpush2.bf16.xpose.msra.mxu0 0
          %1439 = vmatprep.subr.bf16.mxu0 0
          %1440 = vmatpush2.bf16.xpose.msra.mxu0 0
          %1441 = vmatprep.subr.bf16.mxu0 0
          %1442 = vmatpush2.bf16.xpose.msra.mxu0 0
          %1443 = vmatprep.mubr.bf16.mxu0 0
          %1444 = vmatmul.mubr.bf16.gmra.mxu0 %v1406
          %v1445 = vpop.f32.mrf.mxu0
          %v1446 = vadd.f32 0.0, %v1445
          %v1447 = vpop.f32.mrf.mxu0
          %v1448 = vpop.f32.mrf.mxu0
          %v1449 = vpop.f32.mrf.mxu0
          %1450 = vdwg.mxu0
          %v1452 = vsel %vm806, %v564, 0
          %v1455 = vsel %vm806, %v673, 0
          %1457 = vmatprep.subr.bf16.mxu0 0
          %1458 = vmatpush1.bf16.xpose.msra.mxu0 0
          %1459 = vmatprep.subr.bf16.mxu0 0
          %1460 = vmatpush1.bf16.xpose.msra.mxu0 0
          %1461 = vmatprep.subr.bf16.mxu0 0
          %1462 = vmatpush1.bf16.xpose.msra.mxu0 0
          %1463 = vmatprep.subr.bf16.mxu0 0
          %1464 = vmatpush1.bf16.xpose.msra.mxu0 0
          %1465 = vmatprep.subr.bf16.mxu0 0
          %1466 = vmatpush1.bf16.xpose.msra.mxu0 0
          %1467 = vmatprep.subr.bf16.mxu0 0
          %1468 = vmatpush1.bf16.xpose.msra.mxu0 0
          %1469 = vmatprep.subr.bf16.mxu0 0
          %1470 = vmatpush1.bf16.xpose.msra.mxu0 0
          %1471 = vmatprep.subr.bf16.mxu0 0
          %1472 = vmatpush1.bf16.xpose.msra.mxu0 %v1455
          %1473 = vmatprep.subr.bf16.mxu0 0
          %1474 = vmatpush2.bf16.xpose.msra.mxu0 0
          %1475 = vmatprep.subr.bf16.mxu0 0
          %1476 = vmatpush2.bf16.xpose.msra.mxu0 0
          %1477 = vmatprep.subr.bf16.mxu0 0
          %1478 = vmatpush2.bf16.xpose.msra.mxu0 0
          %1479 = vmatprep.subr.bf16.mxu0 0
          %1480 = vmatpush2.bf16.xpose.msra.mxu0 0
          %1481 = vmatprep.subr.bf16.mxu0 0
          %1482 = vmatpush2.bf16.xpose.msra.mxu0 0
          %1483 = vmatprep.subr.bf16.mxu0 0
          %1484 = vmatpush2.bf16.xpose.msra.mxu0 0
          %1485 = vmatprep.subr.bf16.mxu0 0
          %1486 = vmatpush2.bf16.xpose.msra.mxu0 0
          %1487 = vmatprep.subr.bf16.mxu0 0
          %1488 = vmatpush2.bf16.xpose.msra.mxu0 0
          %1489 = vmatprep.mubr.bf16.mxu0 0
          %1490 = vmatmul.mubr.bf16.gmra.mxu0 %v1452
          %v1491 = vpop.f32.mrf.mxu0
          %v1492 = vadd.f32 0.0, %v1491
          %v1493 = vpop.f32.mrf.mxu0
          %v1494 = vpop.f32.mrf.mxu0
          %v1495 = vpop.f32.mrf.mxu0
          %1496 = vdwg.mxu0
          %v1498 = vsel %vm806, %v565, 0
          %v1501 = vsel %vm806, %v685, 0
          %1503 = vmatprep.subr.bf16.mxu0 0
          %1504 = vmatpush1.bf16.xpose.msra.mxu0 0
          %1505 = vmatprep.subr.bf16.mxu0 0
          %1506 = vmatpush1.bf16.xpose.msra.mxu0 0
          %1507 = vmatprep.subr.bf16.mxu0 0
          %1508 = vmatpush1.bf16.xpose.msra.mxu0 0
          %1509 = vmatprep.subr.bf16.mxu0 0
          %1510 = vmatpush1.bf16.xpose.msra.mxu0 0
          %1511 = vmatprep.subr.bf16.mxu0 0
          %1512 = vmatpush1.bf16.xpose.msra.mxu0 0
          %1513 = vmatprep.subr.bf16.mxu0 0
          %1514 = vmatpush1.bf16.xpose.msra.mxu0 0
          %1515 = vmatprep.subr.bf16.mxu0 0
          %1516 = vmatpush1.bf16.xpose.msra.mxu0 0
          %1517 = vmatprep.subr.bf16.mxu0 0
          %1518 = vmatpush1.bf16.xpose.msra.mxu0 %v1501
          %1519 = vmatprep.subr.bf16.mxu0 0
          %1520 = vmatpush2.bf16.xpose.msra.mxu0 0
          %1521 = vmatprep.subr.bf16.mxu0 0
          %1522 = vmatpush2.bf16.xpose.msra.mxu0 0
          %1523 = vmatprep.subr.bf16.mxu0 0
          %1524 = vmatpush2.bf16.xpose.msra.mxu0 0
          %1525 = vmatprep.subr.bf16.mxu0 0
          %1526 = vmatpush2.bf16.xpose.msra.mxu0 0
          %1527 = vmatprep.subr.bf16.mxu0 0
          %1528 = vmatpush2.bf16.xpose.msra.mxu0 0
          %1529 = vmatprep.subr.bf16.mxu0 0
          %1530 = vmatpush2.bf16.xpose.msra.mxu0 0
          %1531 = vmatprep.subr.bf16.mxu0 0
          %1532 = vmatpush2.bf16.xpose.msra.mxu0 0
          %1533 = vmatprep.subr.bf16.mxu0 0
          %1534 = vmatpush2.bf16.xpose.msra.mxu0 0
          %1535 = vmatprep.mubr.bf16.mxu0 0
          %1536 = vmatmul.mubr.bf16.gmra.mxu0 %v1498
          %v1537 = vpop.f32.mrf.mxu0
          %v1538 = vadd.f32 0.0, %v1537
          %v1539 = vpop.f32.mrf.mxu0
          %v1540 = vpop.f32.mrf.mxu0
          %v1541 = vpop.f32.mrf.mxu0
          %1542 = vdwg.mxu0
          %vm1543 = vcmask 27648
          %v1544 = vsel %vm1543, %v848, -inf
          %1545 = vmax.xlane.f32.xlu0 %v1544
          %v1546 = vpop.xlane.xlu0 %1545
          %v1547 = vsel %vm1543, %v894, -inf
          %1548 = vmax.xlane.f32.xlu0 %v1547
          %v1549 = vpop.xlane.xlu0 %1548
          %v1550 = vsel %vm1543, %v940, -inf
          %1551 = vmax.xlane.f32.xlu0 %v1550
          %v1552 = vpop.xlane.xlu0 %1551
          %v1553 = vsel %vm1543, %v986, -inf
          %1554 = vmax.xlane.f32.xlu0 %v1553
          %v1555 = vpop.xlane.xlu0 %1554
          %v1556 = vsel %vm1543, %v1032, -inf
          %1557 = vmax.xlane.f32.xlu0 %v1556
          %v1558 = vpop.xlane.xlu0 %1557
          %v1559 = vsel %vm1543, %v1078, -inf
          %1560 = vmax.xlane.f32.xlu0 %v1559
          %v1561 = vpop.xlane.xlu0 %1560
          %v1562 = vsel %vm1543, %v1124, -inf
          %1563 = vmax.xlane.f32.xlu0 %v1562
          %v1564 = vpop.xlane.xlu0 %1563
          %v1565 = vsel %vm1543, %v1170, -inf
          %1566 = vmax.xlane.f32.xlu0 %v1565
          %v1567 = vpop.xlane.xlu0 %1566
          %v1568 = vsel %vm1543, %v1216, -inf
          %1569 = vmax.xlane.f32.xlu0 %v1568
          %v1570 = vpop.xlane.xlu0 %1569
          %v1571 = vsel %vm1543, %v1262, -inf
          %1572 = vmax.xlane.f32.xlu0 %v1571
          %v1573 = vpop.xlane.xlu0 %1572
          %v1574 = vsel %vm1543, %v1308, -inf
          %1575 = vmax.xlane.f32.xlu0 %v1574
          %v1576 = vpop.xlane.xlu0 %1575
          %v1577 = vsel %vm1543, %v1354, -inf
          %1578 = vmax.xlane.f32.xlu0 %v1577
          %v1579 = vpop.xlane.xlu0 %1578
          %v1580 = vsel %vm1543, %v1400, -inf
          %1581 = vmax.xlane.f32.xlu0 %v1580
          %v1582 = vpop.xlane.xlu0 %1581
          %v1583 = vsel %vm1543, %v1446, -inf
          %1584 = vmax.xlane.f32.xlu0 %v1583
          %v1585 = vpop.xlane.xlu0 %1584
          %v1586 = vsel %vm1543, %v1492, -inf
          %1587 = vmax.xlane.f32.xlu0 %v1586
          %v1588 = vpop.xlane.xlu0 %1587
          %v1589 = vsel %vm1543, %v1538, -inf
          %1590 = vmax.xlane.f32.xlu0 %v1589
          %v1591 = vpop.xlane.xlu0 %1590
          %v1592 = vsub.f32 %v848, %v1546
          %v1593 = vsub.f32 %v894, %v1549
          %v1594 = vsub.f32 %v940, %v1552
          %v1595 = vsub.f32 %v986, %v1555
          %v1596 = vsub.f32 %v1032, %v1558
          %v1597 = vsub.f32 %v1078, %v1561
          %v1598 = vsub.f32 %v1124, %v1564
          %v1599 = vsub.f32 %v1170, %v1567
          %v1600 = vsub.f32 %v1216, %v1570
          %v1601 = vsub.f32 %v1262, %v1573
          %v1602 = vsub.f32 %v1308, %v1576
          %v1603 = vsub.f32 %v1354, %v1579
          %v1604 = vsub.f32 %v1400, %v1582
          %v1605 = vsub.f32 %v1446, %v1585
          %v1606 = vsub.f32 %v1492, %v1588
          %v1607 = vsub.f32 %v1538, %v1591
          %v1608 = vmul.f32 %v1592, 1.442695
          %v1609 = vpow.pop %v1608
          %v1610 = vmul.f32 %v1593, 1.442695
          %v1611 = vpow.pop %v1610
          %v1612 = vmul.f32 %v1594, 1.442695
          %v1613 = vpow.pop %v1612
          %v1614 = vmul.f32 %v1595, 1.442695
          %v1615 = vpow.pop %v1614
          %v1616 = vmul.f32 %v1596, 1.442695
          %v1617 = vpow.pop %v1616
          %v1618 = vmul.f32 %v1597, 1.442695
          %v1619 = vpow.pop %v1618
          %v1620 = vmul.f32 %v1598, 1.442695
          %v1621 = vpow.pop %v1620
          %v1622 = vmul.f32 %v1599, 1.442695
          %v1623 = vpow.pop %v1622
          %v1624 = vmul.f32 %v1600, 1.442695
          %v1625 = vpow.pop %v1624
          %v1626 = vmul.f32 %v1601, 1.442695
          %v1627 = vpow.pop %v1626
          %v1628 = vmul.f32 %v1602, 1.442695
          %v1629 = vpow.pop %v1628
          %v1630 = vmul.f32 %v1603, 1.442695
          %v1631 = vpow.pop %v1630
          %v1632 = vmul.f32 %v1604, 1.442695
          %v1633 = vpow.pop %v1632
          %v1634 = vmul.f32 %v1605, 1.442695
          %v1635 = vpow.pop %v1634
          %v1636 = vmul.f32 %v1606, 1.442695
          %v1637 = vpow.pop %v1636
          %v1638 = vmul.f32 %v1607, 1.442695
          %v1639 = vpow.pop %v1638
          %v1640 = vsel %vm1543, %v1609, 0.0
          %1641 = vadd.xlane.f32.xlu0 %v1640
          %v1642 = vpop.xlane.xlu0 %1641
          %v1643 = vsel %vm1543, %v1611, 0.0
          %1644 = vadd.xlane.f32.xlu0 %v1643
          %v1645 = vpop.xlane.xlu0 %1644
          %v1646 = vsel %vm1543, %v1613, 0.0
          %1647 = vadd.xlane.f32.xlu0 %v1646
          %v1648 = vpop.xlane.xlu0 %1647
          %v1649 = vsel %vm1543, %v1615, 0.0
          %1650 = vadd.xlane.f32.xlu0 %v1649
          %v1651 = vpop.xlane.xlu0 %1650
          %v1652 = vsel %vm1543, %v1617, 0.0
          %1653 = vadd.xlane.f32.xlu0 %v1652
          %v1654 = vpop.xlane.xlu0 %1653
          %v1655 = vsel %vm1543, %v1619, 0.0
          %1656 = vadd.xlane.f32.xlu0 %v1655
          %v1657 = vpop.xlane.xlu0 %1656
          %v1658 = vsel %vm1543, %v1621, 0.0
          %1659 = vadd.xlane.f32.xlu0 %v1658
          %v1660 = vpop.xlane.xlu0 %1659
          %v1661 = vsel %vm1543, %v1623, 0.0
          %1662 = vadd.xlane.f32.xlu0 %v1661
          %v1663 = vpop.xlane.xlu0 %1662
          %v1664 = vsel %vm1543, %v1625, 0.0
          %1665 = vadd.xlane.f32.xlu0 %v1664
          %v1666 = vpop.xlane.xlu0 %1665
          %v1667 = vsel %vm1543, %v1627, 0.0
          %1668 = vadd.xlane.f32.xlu0 %v1667
          %v1669 = vpop.xlane.xlu0 %1668
          %v1670 = vsel %vm1543, %v1629, 0.0
          %1671 = vadd.xlane.f32.xlu0 %v1670
          %v1672 = vpop.xlane.xlu0 %1671
          %v1673 = vsel %vm1543, %v1631, 0.0
          %1674 = vadd.xlane.f32.xlu0 %v1673
          %v1675 = vpop.xlane.xlu0 %1674
          %v1676 = vsel %vm1543, %v1633, 0.0
          %1677 = vadd.xlane.f32.xlu0 %v1676
          %v1678 = vpop.xlane.xlu0 %1677
          %v1679 = vsel %vm1543, %v1635, 0.0
          %1680 = vadd.xlane.f32.xlu0 %v1679
          %v1681 = vpop.xlane.xlu0 %1680
          %v1682 = vsel %vm1543, %v1637, 0.0
          %1683 = vadd.xlane.f32.xlu0 %v1682
          %v1684 = vpop.xlane.xlu0 %1683
          %v1685 = vsel %vm1543, %v1639, 0.0
          %1686 = vadd.xlane.f32.xlu0 %v1685
          %v1687 = vpop.xlane.xlu0 %1686
          %v1688 = vrcp.pop %v1642
          %v1689 = vrcp.pop %v1645
          %v1690 = vrcp.pop %v1648
          %v1691 = vrcp.pop %v1651
          %v1692 = vrcp.pop %v1654
          %v1693 = vrcp.pop %v1657
          %v1694 = vrcp.pop %v1660
          %v1695 = vrcp.pop %v1663
          %v1696 = vrcp.pop %v1666
          %v1697 = vrcp.pop %v1669
          %v1698 = vrcp.pop %v1672
          %v1699 = vrcp.pop %v1675
          %v1700 = vrcp.pop %v1678
          %v1701 = vrcp.pop %v1681
          %v1702 = vrcp.pop %v1684
          %v1703 = vrcp.pop %v1687
          %v1704 = vmul.f32 %v1609, %v1688
          %v1705 = vmul.f32 %v1611, %v1689
          %v1706 = vmul.f32 %v1613, %v1690
          %v1707 = vmul.f32 %v1615, %v1691
          %v1708 = vmul.f32 %v1617, %v1692
          %v1709 = vmul.f32 %v1619, %v1693
          %v1710 = vmul.f32 %v1621, %v1694
          %v1711 = vmul.f32 %v1623, %v1695
          %v1712 = vmul.f32 %v1625, %v1696
          %v1713 = vmul.f32 %v1627, %v1697
          %v1714 = vmul.f32 %v1629, %v1698
          %v1715 = vmul.f32 %v1631, %v1699
          %v1716 = vmul.f32 %v1633, %v1700
          %v1717 = vmul.f32 %v1635, %v1701
          %v1718 = vmul.f32 %v1637, %v1702
          %v1719 = vmul.f32 %v1639, %v1703
          %v1720 = vpack.c.bf16 %v1704, %v1704
          %v1721 = vpack.c.bf16 %v1705, %v1705
          %v1722 = vpack.c.bf16 %v1706, %v1706
          %v1723 = vpack.c.bf16 %v1707, %v1707
          %v1724 = vpack.c.bf16 %v1708, %v1708
          %v1725 = vpack.c.bf16 %v1709, %v1709
          %v1726 = vpack.c.bf16 %v1710, %v1710
          %v1727 = vpack.c.bf16 %v1711, %v1711
          %v1728 = vpack.c.bf16 %v1712, %v1712
          %v1729 = vpack.c.bf16 %v1713, %v1713
          %v1730 = vpack.c.bf16 %v1714, %v1714
          %v1731 = vpack.c.bf16 %v1715, %v1715
          %v1732 = vpack.c.bf16 %v1716, %v1716
          %v1733 = vpack.c.bf16 %v1717, %v1717
          %v1734 = vpack.c.bf16 %v1718, %v1718
          %v1735 = vpack.c.bf16 %v1719, %v1719
          %vm1736 = vcmask 31744
          %v1738 = vsel %vm1736, %v1720, 0
          %vm1740 = vcmask 1041408
          %v1742 = vsel %vm1740, %v760, 0
          %1744 = vmatprep.subr.bf16.mxu0 0
          %1745 = vmatpush1.bf16.msra.mxu0 0
          %1746 = vmatprep.subr.bf16.mxu0 0
          %1747 = vmatpush1.bf16.msra.mxu0 0
          %1748 = vmatprep.subr.bf16.mxu0 0
          %1749 = vmatpush1.bf16.msra.mxu0 0
          %1750 = vmatprep.subr.bf16.mxu0 0
          %1751 = vmatpush1.bf16.msra.mxu0 0
          %1752 = vmatprep.subr.bf16.mxu0 0
          %1753 = vmatpush1.bf16.msra.mxu0 0
          %1754 = vmatprep.subr.bf16.mxu0 0
          %1755 = vmatpush1.bf16.msra.mxu0 0
          %1756 = vmatprep.subr.bf16.mxu0 0
          %1757 = vmatpush1.bf16.msra.mxu0 0
          %1758 = vmatprep.subr.bf16.mxu0 0
          %1759 = vmatpush1.bf16.msra.mxu0 %v1742
          %1760 = vmatprep.subr.bf16.mxu0 0
          %1761 = vmatpush2.bf16.msra.mxu0 0
          %1762 = vmatprep.subr.bf16.mxu0 0
          %1763 = vmatpush2.bf16.msra.mxu0 0
          %1764 = vmatprep.subr.bf16.mxu0 0
          %1765 = vmatpush2.bf16.msra.mxu0 0
          %1766 = vmatprep.subr.bf16.mxu0 0
          %1767 = vmatpush2.bf16.msra.mxu0 0
          %1768 = vmatprep.subr.bf16.mxu0 0
          %1769 = vmatpush2.bf16.msra.mxu0 0
          %1770 = vmatprep.subr.bf16.mxu0 0
          %1771 = vmatpush2.bf16.msra.mxu0 0
          %1772 = vmatprep.subr.bf16.mxu0 0
          %1773 = vmatpush2.bf16.msra.mxu0 0
          %1774 = vmatprep.subr.bf16.mxu0 0
          %1775 = vmatpush2.bf16.msra.mxu0 0
          %1776 = vmatprep.mubr.bf16.mxu0 0
          %1777 = vmatmul.mubr.bf16.gmra.mxu0 %v1738
          %v1778 = vpop.f32.mrf.mxu0
          %v1779 = vadd.f32 0.0, %v1778
          %v1780 = vpop.f32.mrf.mxu0
          %v1781 = vpop.f32.mrf.mxu0
          %v1782 = vpop.f32.mrf.mxu0
          %1783 = vdwg.mxu0
          %v1785 = vsel %vm1736, %v1721, 0
          %v1788 = vsel %vm1740, %v772, 0
          %1790 = vmatprep.subr.bf16.mxu0 0
          %1791 = vmatpush1.bf16.msra.mxu0 0
          %1792 = vmatprep.subr.bf16.mxu0 0
          %1793 = vmatpush1.bf16.msra.mxu0 0
          %1794 = vmatprep.subr.bf16.mxu0 0
          %1795 = vmatpush1.bf16.msra.mxu0 0
          %1796 = vmatprep.subr.bf16.mxu0 0
          %1797 = vmatpush1.bf16.msra.mxu0 0
          %1798 = vmatprep.subr.bf16.mxu0 0
          %1799 = vmatpush1.bf16.msra.mxu0 0
          %1800 = vmatprep.subr.bf16.mxu0 0
          %1801 = vmatpush1.bf16.msra.mxu0 0
          %1802 = vmatprep.subr.bf16.mxu0 0
          %1803 = vmatpush1.bf16.msra.mxu0 0
          %1804 = vmatprep.subr.bf16.mxu0 0
          %1805 = vmatpush1.bf16.msra.mxu0 %v1788
          %1806 = vmatprep.subr.bf16.mxu0 0
          %1807 = vmatpush2.bf16.msra.mxu0 0
          %1808 = vmatprep.subr.bf16.mxu0 0
          %1809 = vmatpush2.bf16.msra.mxu0 0
          %1810 = vmatprep.subr.bf16.mxu0 0
          %1811 = vmatpush2.bf16.msra.mxu0 0
          %1812 = vmatprep.subr.bf16.mxu0 0
          %1813 = vmatpush2.bf16.msra.mxu0 0
          %1814 = vmatprep.subr.bf16.mxu0 0
          %1815 = vmatpush2.bf16.msra.mxu0 0
          %1816 = vmatprep.subr.bf16.mxu0 0
          %1817 = vmatpush2.bf16.msra.mxu0 0
          %1818 = vmatprep.subr.bf16.mxu0 0
          %1819 = vmatpush2.bf16.msra.mxu0 0
          %1820 = vmatprep.subr.bf16.mxu0 0
          %1821 = vmatpush2.bf16.msra.mxu0 0
          %1822 = vmatprep.mubr.bf16.mxu0 0
          %1823 = vmatmul.mubr.bf16.gmra.mxu0 %v1785
          %v1824 = vpop.f32.mrf.mxu0
          %v1825 = vadd.f32 0.0, %v1824
          %v1826 = vpop.f32.mrf.mxu0
          %v1827 = vpop.f32.mrf.mxu0
          %v1828 = vpop.f32.mrf.mxu0
          %1829 = vdwg.mxu0
          %v1831 = vsel %vm1736, %v1722, 0
          %v1834 = vsel %vm1740, %v784, 0
          %1836 = vmatprep.subr.bf16.mxu0 0
          %1837 = vmatpush1.bf16.msra.mxu0 0
          %1838 = vmatprep.subr.bf16.mxu0 0
          %1839 = vmatpush1.bf16.msra.mxu0 0
          %1840 = vmatprep.subr.bf16.mxu0 0
          %1841 = vmatpush1.bf16.msra.mxu0 0
          %1842 = vmatprep.subr.bf16.mxu0 0
          %1843 = vmatpush1.bf16.msra.mxu0 0
          %1844 = vmatprep.subr.bf16.mxu0 0
          %1845 = vmatpush1.bf16.msra.mxu0 0
          %1846 = vmatprep.subr.bf16.mxu0 0
          %1847 = vmatpush1.bf16.msra.mxu0 0
          %1848 = vmatprep.subr.bf16.mxu0 0
          %1849 = vmatpush1.bf16.msra.mxu0 0
          %1850 = vmatprep.subr.bf16.mxu0 0
          %1851 = vmatpush1.bf16.msra.mxu0 %v1834
          %1852 = vmatprep.subr.bf16.mxu0 0
          %1853 = vmatpush2.bf16.msra.mxu0 0
          %1854 = vmatprep.subr.bf16.mxu0 0
          %1855 = vmatpush2.bf16.msra.mxu0 0
          %1856 = vmatprep.subr.bf16.mxu0 0
          %1857 = vmatpush2.bf16.msra.mxu0 0
          %1858 = vmatprep.subr.bf16.mxu0 0
          %1859 = vmatpush2.bf16.msra.mxu0 0
          %1860 = vmatprep.subr.bf16.mxu0 0
          %1861 = vmatpush2.bf16.msra.mxu0 0
          %1862 = vmatprep.subr.bf16.mxu0 0
          %1863 = vmatpush2.bf16.msra.mxu0 0
          %1864 = vmatprep.subr.bf16.mxu0 0
          %1865 = vmatpush2.bf16.msra.mxu0 0
          %1866 = vmatprep.subr.bf16.mxu0 0
          %1867 = vmatpush2.bf16.msra.mxu0 0
          %1868 = vmatprep.mubr.bf16.mxu0 0
          %1869 = vmatmul.mubr.bf16.gmra.mxu0 %v1831
          %v1870 = vpop.f32.mrf.mxu0
          %v1871 = vadd.f32 0.0, %v1870
          %v1872 = vpop.f32.mrf.mxu0
          %v1873 = vpop.f32.mrf.mxu0
          %v1874 = vpop.f32.mrf.mxu0
          %1875 = vdwg.mxu0
          %v1877 = vsel %vm1736, %v1723, 0
          %v1880 = vsel %vm1740, %v796, 0
          %1882 = vmatprep.subr.bf16.mxu0 0
          %1883 = vmatpush1.bf16.msra.mxu0 0
          %1884 = vmatprep.subr.bf16.mxu0 0
          %1885 = vmatpush1.bf16.msra.mxu0 0
          %1886 = vmatprep.subr.bf16.mxu0 0
          %1887 = vmatpush1.bf16.msra.mxu0 0
          %1888 = vmatprep.subr.bf16.mxu0 0
          %1889 = vmatpush1.bf16.msra.mxu0 0
          %1890 = vmatprep.subr.bf16.mxu0 0
          %1891 = vmatpush1.bf16.msra.mxu0 0
          %1892 = vmatprep.subr.bf16.mxu0 0
          %1893 = vmatpush1.bf16.msra.mxu0 0
          %1894 = vmatprep.subr.bf16.mxu0 0
          %1895 = vmatpush1.bf16.msra.mxu0 0
          %1896 = vmatprep.subr.bf16.mxu0 0
          %1897 = vmatpush1.bf16.msra.mxu0 %v1880
          %1898 = vmatprep.subr.bf16.mxu0 0
          %1899 = vmatpush2.bf16.msra.mxu0 0
          %1900 = vmatprep.subr.bf16.mxu0 0
          %1901 = vmatpush2.bf16.msra.mxu0 0
          %1902 = vmatprep.subr.bf16.mxu0 0
          %1903 = vmatpush2.bf16.msra.mxu0 0
          %1904 = vmatprep.subr.bf16.mxu0 0
          %1905 = vmatpush2.bf16.msra.mxu0 0
          %1906 = vmatprep.subr.bf16.mxu0 0
          %1907 = vmatpush2.bf16.msra.mxu0 0
          %1908 = vmatprep.subr.bf16.mxu0 0
          %1909 = vmatpush2.bf16.msra.mxu0 0
          %1910 = vmatprep.subr.bf16.mxu0 0
          %1911 = vmatpush2.bf16.msra.mxu0 0
          %1912 = vmatprep.subr.bf16.mxu0 0
          %1913 = vmatpush2.bf16.msra.mxu0 0
          %1914 = vmatprep.mubr.bf16.mxu0 0
          %1915 = vmatmul.mubr.bf16.gmra.mxu0 %v1877
          %v1916 = vpop.f32.mrf.mxu0
          %v1917 = vadd.f32 0.0, %v1916
          %v1918 = vpop.f32.mrf.mxu0
          %v1919 = vpop.f32.mrf.mxu0
          %v1920 = vpop.f32.mrf.mxu0
          %1921 = vdwg.mxu0
          %v1923 = vsel %vm1736, %v1724, 0
          %v1926 = vsel %vm1740, %v763, 0
          %1928 = vmatprep.subr.bf16.mxu0 0
          %1929 = vmatpush1.bf16.msra.mxu0 0
          %1930 = vmatprep.subr.bf16.mxu0 0
          %1931 = vmatpush1.bf16.msra.mxu0 0
          %1932 = vmatprep.subr.bf16.mxu0 0
          %1933 = vmatpush1.bf16.msra.mxu0 0
          %1934 = vmatprep.subr.bf16.mxu0 0
          %1935 = vmatpush1.bf16.msra.mxu0 0
          %1936 = vmatprep.subr.bf16.mxu0 0
          %1937 = vmatpush1.bf16.msra.mxu0 0
          %1938 = vmatprep.subr.bf16.mxu0 0
          %1939 = vmatpush1.bf16.msra.mxu0 0
          %1940 = vmatprep.subr.bf16.mxu0 0
          %1941 = vmatpush1.bf16.msra.mxu0 0
          %1942 = vmatprep.subr.bf16.mxu0 0
          %1943 = vmatpush1.bf16.msra.mxu0 %v1926
          %1944 = vmatprep.subr.bf16.mxu0 0
          %1945 = vmatpush2.bf16.msra.mxu0 0
          %1946 = vmatprep.subr.bf16.mxu0 0
          %1947 = vmatpush2.bf16.msra.mxu0 0
          %1948 = vmatprep.subr.bf16.mxu0 0
          %1949 = vmatpush2.bf16.msra.mxu0 0
          %1950 = vmatprep.subr.bf16.mxu0 0
          %1951 = vmatpush2.bf16.msra.mxu0 0
          %1952 = vmatprep.subr.bf16.mxu0 0
          %1953 = vmatpush2.bf16.msra.mxu0 0
          %1954 = vmatprep.subr.bf16.mxu0 0
          %1955 = vmatpush2.bf16.msra.mxu0 0
          %1956 = vmatprep.subr.bf16.mxu0 0
          %1957 = vmatpush2.bf16.msra.mxu0 0
          %1958 = vmatprep.subr.bf16.mxu0 0
          %1959 = vmatpush2.bf16.msra.mxu0 0
          %1960 = vmatprep.mubr.bf16.mxu0 0
          %1961 = vmatmul.mubr.bf16.gmra.mxu0 %v1923
          %v1962 = vpop.f32.mrf.mxu0
          %v1963 = vadd.f32 0.0, %v1962
          %v1964 = vpop.f32.mrf.mxu0
          %v1965 = vpop.f32.mrf.mxu0
          %v1966 = vpop.f32.mrf.mxu0
          %1967 = vdwg.mxu0
          %v1969 = vsel %vm1736, %v1725, 0
          %v1972 = vsel %vm1740, %v775, 0
          %1974 = vmatprep.subr.bf16.mxu0 0
          %1975 = vmatpush1.bf16.msra.mxu0 0
          %1976 = vmatprep.subr.bf16.mxu0 0
          %1977 = vmatpush1.bf16.msra.mxu0 0
          %1978 = vmatprep.subr.bf16.mxu0 0
          %1979 = vmatpush1.bf16.msra.mxu0 0
          %1980 = vmatprep.subr.bf16.mxu0 0
          %1981 = vmatpush1.bf16.msra.mxu0 0
          %1982 = vmatprep.subr.bf16.mxu0 0
          %1983 = vmatpush1.bf16.msra.mxu0 0
          %1984 = vmatprep.subr.bf16.mxu0 0
          %1985 = vmatpush1.bf16.msra.mxu0 0
          %1986 = vmatprep.subr.bf16.mxu0 0
          %1987 = vmatpush1.bf16.msra.mxu0 0
          %1988 = vmatprep.subr.bf16.mxu0 0
          %1989 = vmatpush1.bf16.msra.mxu0 %v1972
          %1990 = vmatprep.subr.bf16.mxu0 0
          %1991 = vmatpush2.bf16.msra.mxu0 0
          %1992 = vmatprep.subr.bf16.mxu0 0
          %1993 = vmatpush2.bf16.msra.mxu0 0
          %1994 = vmatprep.subr.bf16.mxu0 0
          %1995 = vmatpush2.bf16.msra.mxu0 0
          %1996 = vmatprep.subr.bf16.mxu0 0
          %1997 = vmatpush2.bf16.msra.mxu0 0
          %1998 = vmatprep.subr.bf16.mxu0 0
          %1999 = vmatpush2.bf16.msra.mxu0 0
          %2000 = vmatprep.subr.bf16.mxu0 0
          %2001 = vmatpush2.bf16.msra.mxu0 0
          %2002 = vmatprep.subr.bf16.mxu0 0
          %2003 = vmatpush2.bf16.msra.mxu0 0
          %2004 = vmatprep.subr.bf16.mxu0 0
          %2005 = vmatpush2.bf16.msra.mxu0 0
          %2006 = vmatprep.mubr.bf16.mxu0 0
          %2007 = vmatmul.mubr.bf16.gmra.mxu0 %v1969
          %v2008 = vpop.f32.mrf.mxu0
          %v2009 = vadd.f32 0.0, %v2008
          %v2010 = vpop.f32.mrf.mxu0
          %v2011 = vpop.f32.mrf.mxu0
          %v2012 = vpop.f32.mrf.mxu0
          %2013 = vdwg.mxu0
          %v2015 = vsel %vm1736, %v1726, 0
          %v2018 = vsel %vm1740, %v787, 0
          %2020 = vmatprep.subr.bf16.mxu0 0
          %2021 = vmatpush1.bf16.msra.mxu0 0
          %2022 = vmatprep.subr.bf16.mxu0 0
          %2023 = vmatpush1.bf16.msra.mxu0 0
          %2024 = vmatprep.subr.bf16.mxu0 0
          %2025 = vmatpush1.bf16.msra.mxu0 0
          %2026 = vmatprep.subr.bf16.mxu0 0
          %2027 = vmatpush1.bf16.msra.mxu0 0
          %2028 = vmatprep.subr.bf16.mxu0 0
          %2029 = vmatpush1.bf16.msra.mxu0 0
          %2030 = vmatprep.subr.bf16.mxu0 0
          %2031 = vmatpush1.bf16.msra.mxu0 0
          %2032 = vmatprep.subr.bf16.mxu0 0
          %2033 = vmatpush1.bf16.msra.mxu0 0
          %2034 = vmatprep.subr.bf16.mxu0 0
          %2035 = vmatpush1.bf16.msra.mxu0 %v2018
          %2036 = vmatprep.subr.bf16.mxu0 0
          %2037 = vmatpush2.bf16.msra.mxu0 0
          %2038 = vmatprep.subr.bf16.mxu0 0
          %2039 = vmatpush2.bf16.msra.mxu0 0
          %2040 = vmatprep.subr.bf16.mxu0 0
          %2041 = vmatpush2.bf16.msra.mxu0 0
          %2042 = vmatprep.subr.bf16.mxu0 0
          %2043 = vmatpush2.bf16.msra.mxu0 0
          %2044 = vmatprep.subr.bf16.mxu0 0
          %2045 = vmatpush2.bf16.msra.mxu0 0
          %2046 = vmatprep.subr.bf16.mxu0 0
          %2047 = vmatpush2.bf16.msra.mxu0 0
          %2048 = vmatprep.subr.bf16.mxu0 0
          %2049 = vmatpush2.bf16.msra.mxu0 0
          %2050 = vmatprep.subr.bf16.mxu0 0
          %2051 = vmatpush2.bf16.msra.mxu0 0
          %2052 = vmatprep.mubr.bf16.mxu0 0
          %2053 = vmatmul.mubr.bf16.gmra.mxu0 %v2015
          %v2054 = vpop.f32.mrf.mxu0
          %v2055 = vadd.f32 0.0, %v2054
          %v2056 = vpop.f32.mrf.mxu0
          %v2057 = vpop.f32.mrf.mxu0
          %v2058 = vpop.f32.mrf.mxu0
          %2059 = vdwg.mxu0
          %v2061 = vsel %vm1736, %v1727, 0
          %v2064 = vsel %vm1740, %v799, 0
          %2066 = vmatprep.subr.bf16.mxu0 0
          %2067 = vmatpush1.bf16.msra.mxu0 0
          %2068 = vmatprep.subr.bf16.mxu0 0
          %2069 = vmatpush1.bf16.msra.mxu0 0
          %2070 = vmatprep.subr.bf16.mxu0 0
          %2071 = vmatpush1.bf16.msra.mxu0 0
          %2072 = vmatprep.subr.bf16.mxu0 0
          %2073 = vmatpush1.bf16.msra.mxu0 0
          %2074 = vmatprep.subr.bf16.mxu0 0
          %2075 = vmatpush1.bf16.msra.mxu0 0
          %2076 = vmatprep.subr.bf16.mxu0 0
          %2077 = vmatpush1.bf16.msra.mxu0 0
          %2078 = vmatprep.subr.bf16.mxu0 0
          %2079 = vmatpush1.bf16.msra.mxu0 0
          %2080 = vmatprep.subr.bf16.mxu0 0
          %2081 = vmatpush1.bf16.msra.mxu0 %v2064
          %2082 = vmatprep.subr.bf16.mxu0 0
          %2083 = vmatpush2.bf16.msra.mxu0 0
          %2084 = vmatprep.subr.bf16.mxu0 0
          %2085 = vmatpush2.bf16.msra.mxu0 0
          %2086 = vmatprep.subr.bf16.mxu0 0
          %2087 = vmatpush2.bf16.msra.mxu0 0
          %2088 = vmatprep.subr.bf16.mxu0 0
          %2089 = vmatpush2.bf16.msra.mxu0 0
          %2090 = vmatprep.subr.bf16.mxu0 0
          %2091 = vmatpush2.bf16.msra.mxu0 0
          %2092 = vmatprep.subr.bf16.mxu0 0
          %2093 = vmatpush2.bf16.msra.mxu0 0
          %2094 = vmatprep.subr.bf16.mxu0 0
          %2095 = vmatpush2.bf16.msra.mxu0 0
          %2096 = vmatprep.subr.bf16.mxu0 0
          %2097 = vmatpush2.bf16.msra.mxu0 0
          %2098 = vmatprep.mubr.bf16.mxu0 0
          %2099 = vmatmul.mubr.bf16.gmra.mxu0 %v2061
          %v2100 = vpop.f32.mrf.mxu0
          %v2101 = vadd.f32 0.0, %v2100
          %v2102 = vpop.f32.mrf.mxu0
          %v2103 = vpop.f32.mrf.mxu0
          %v2104 = vpop.f32.mrf.mxu0
          %2105 = vdwg.mxu0
          %v2107 = vsel %vm1736, %v1728, 0
          %v2110 = vsel %vm1740, %v766, 0
          %2112 = vmatprep.subr.bf16.mxu0 0
          %2113 = vmatpush1.bf16.msra.mxu0 0
          %2114 = vmatprep.subr.bf16.mxu0 0
          %2115 = vmatpush1.bf16.msra.mxu0 0
          %2116 = vmatprep.subr.bf16.mxu0 0
          %2117 = vmatpush1.bf16.msra.mxu0 0
          %2118 = vmatprep.subr.bf16.mxu0 0
          %2119 = vmatpush1.bf16.msra.mxu0 0
          %2120 = vmatprep.subr.bf16.mxu0 0
          %2121 = vmatpush1.bf16.msra.mxu0 0
          %2122 = vmatprep.subr.bf16.mxu0 0
          %2123 = vmatpush1.bf16.msra.mxu0 0
          %2124 = vmatprep.subr.bf16.mxu0 0
          %2125 = vmatpush1.bf16.msra.mxu0 0
          %2126 = vmatprep.subr.bf16.mxu0 0
          %2127 = vmatpush1.bf16.msra.mxu0 %v2110
          %2128 = vmatprep.subr.bf16.mxu0 0
          %2129 = vmatpush2.bf16.msra.mxu0 0
          %2130 = vmatprep.subr.bf16.mxu0 0
          %2131 = vmatpush2.bf16.msra.mxu0 0
          %2132 = vmatprep.subr.bf16.mxu0 0
          %2133 = vmatpush2.bf16.msra.mxu0 0
          %2134 = vmatprep.subr.bf16.mxu0 0
          %2135 = vmatpush2.bf16.msra.mxu0 0
          %2136 = vmatprep.subr.bf16.mxu0 0
          %2137 = vmatpush2.bf16.msra.mxu0 0
          %2138 = vmatprep.subr.bf16.mxu0 0
          %2139 = vmatpush2.bf16.msra.mxu0 0
          %2140 = vmatprep.subr.bf16.mxu0 0
          %2141 = vmatpush2.bf16.msra.mxu0 0
          %2142 = vmatprep.subr.bf16.mxu0 0
          %2143 = vmatpush2.bf16.msra.mxu0 0
          %2144 = vmatprep.mubr.bf16.mxu0 0
          %2145 = vmatmul.mubr.bf16.gmra.mxu0 %v2107
          %v2146 = vpop.f32.mrf.mxu0
          %v2147 = vadd.f32 0.0, %v2146
          %v2148 = vpop.f32.mrf.mxu0
          %v2149 = vpop.f32.mrf.mxu0
          %v2150 = vpop.f32.mrf.mxu0
          %2151 = vdwg.mxu0
          %v2153 = vsel %vm1736, %v1729, 0
          %v2156 = vsel %vm1740, %v778, 0
          %2158 = vmatprep.subr.bf16.mxu0 0
          %2159 = vmatpush1.bf16.msra.mxu0 0
          %2160 = vmatprep.subr.bf16.mxu0 0
          %2161 = vmatpush1.bf16.msra.mxu0 0
          %2162 = vmatprep.subr.bf16.mxu0 0
          %2163 = vmatpush1.bf16.msra.mxu0 0
          %2164 = vmatprep.subr.bf16.mxu0 0
          %2165 = vmatpush1.bf16.msra.mxu0 0
          %2166 = vmatprep.subr.bf16.mxu0 0
          %2167 = vmatpush1.bf16.msra.mxu0 0
          %2168 = vmatprep.subr.bf16.mxu0 0
          %2169 = vmatpush1.bf16.msra.mxu0 0
          %2170 = vmatprep.subr.bf16.mxu0 0
          %2171 = vmatpush1.bf16.msra.mxu0 0
          %2172 = vmatprep.subr.bf16.mxu0 0
          %2173 = vmatpush1.bf16.msra.mxu0 %v2156
          %2174 = vmatprep.subr.bf16.mxu0 0
          %2175 = vmatpush2.bf16.msra.mxu0 0
          %2176 = vmatprep.subr.bf16.mxu0 0
          %2177 = vmatpush2.bf16.msra.mxu0 0
          %2178 = vmatprep.subr.bf16.mxu0 0
          %2179 = vmatpush2.bf16.msra.mxu0 0
          %2180 = vmatprep.subr.bf16.mxu0 0
          %2181 = vmatpush2.bf16.msra.mxu0 0
          %2182 = vmatprep.subr.bf16.mxu0 0
          %2183 = vmatpush2.bf16.msra.mxu0 0
          %2184 = vmatprep.subr.bf16.mxu0 0
          %2185 = vmatpush2.bf16.msra.mxu0 0
          %2186 = vmatprep.subr.bf16.mxu0 0
          %2187 = vmatpush2.bf16.msra.mxu0 0
          %2188 = vmatprep.subr.bf16.mxu0 0
          %2189 = vmatpush2.bf16.msra.mxu0 0
          %2190 = vmatprep.mubr.bf16.mxu0 0
          %2191 = vmatmul.mubr.bf16.gmra.mxu0 %v2153
          %v2192 = vpop.f32.mrf.mxu0
          %v2193 = vadd.f32 0.0, %v2192
          %v2194 = vpop.f32.mrf.mxu0
          %v2195 = vpop.f32.mrf.mxu0
          %v2196 = vpop.f32.mrf.mxu0
          %2197 = vdwg.mxu0
          %v2199 = vsel %vm1736, %v1730, 0
          %v2202 = vsel %vm1740, %v790, 0
          %2204 = vmatprep.subr.bf16.mxu0 0
          %2205 = vmatpush1.bf16.msra.mxu0 0
          %2206 = vmatprep.subr.bf16.mxu0 0
          %2207 = vmatpush1.bf16.msra.mxu0 0
          %2208 = vmatprep.subr.bf16.mxu0 0
          %2209 = vmatpush1.bf16.msra.mxu0 0
          %2210 = vmatprep.subr.bf16.mxu0 0
          %2211 = vmatpush1.bf16.msra.mxu0 0
          %2212 = vmatprep.subr.bf16.mxu0 0
          %2213 = vmatpush1.bf16.msra.mxu0 0
          %2214 = vmatprep.subr.bf16.mxu0 0
          %2215 = vmatpush1.bf16.msra.mxu0 0
          %2216 = vmatprep.subr.bf16.mxu0 0
          %2217 = vmatpush1.bf16.msra.mxu0 0
          %2218 = vmatprep.subr.bf16.mxu0 0
          %2219 = vmatpush1.bf16.msra.mxu0 %v2202
          %2220 = vmatprep.subr.bf16.mxu0 0
          %2221 = vmatpush2.bf16.msra.mxu0 0
          %2222 = vmatprep.subr.bf16.mxu0 0
          %2223 = vmatpush2.bf16.msra.mxu0 0
          %2224 = vmatprep.subr.bf16.mxu0 0
          %2225 = vmatpush2.bf16.msra.mxu0 0
          %2226 = vmatprep.subr.bf16.mxu0 0
          %2227 = vmatpush2.bf16.msra.mxu0 0
          %2228 = vmatprep.subr.bf16.mxu0 0
          %2229 = vmatpush2.bf16.msra.mxu0 0
          %2230 = vmatprep.subr.bf16.mxu0 0
          %2231 = vmatpush2.bf16.msra.mxu0 0
          %2232 = vmatprep.subr.bf16.mxu0 0
          %2233 = vmatpush2.bf16.msra.mxu0 0
          %2234 = vmatprep.subr.bf16.mxu0 0
          %2235 = vmatpush2.bf16.msra.mxu0 0
          %2236 = vmatprep.mubr.bf16.mxu0 0
          %2237 = vmatmul.mubr.bf16.gmra.mxu0 %v2199
          %v2238 = vpop.f32.mrf.mxu0
          %v2239 = vadd.f32 0.0, %v2238
          %v2240 = vpop.f32.mrf.mxu0
          %v2241 = vpop.f32.mrf.mxu0
          %v2242 = vpop.f32.mrf.mxu0
          %2243 = vdwg.mxu0
          %v2245 = vsel %vm1736, %v1731, 0
          %v2248 = vsel %vm1740, %v802, 0
          %2250 = vmatprep.subr.bf16.mxu0 0
          %2251 = vmatpush1.bf16.msra.mxu0 0
          %2252 = vmatprep.subr.bf16.mxu0 0
          %2253 = vmatpush1.bf16.msra.mxu0 0
          %2254 = vmatprep.subr.bf16.mxu0 0
          %2255 = vmatpush1.bf16.msra.mxu0 0
          %2256 = vmatprep.subr.bf16.mxu0 0
          %2257 = vmatpush1.bf16.msra.mxu0 0
          %2258 = vmatprep.subr.bf16.mxu0 0
          %2259 = vmatpush1.bf16.msra.mxu0 0
          %2260 = vmatprep.subr.bf16.mxu0 0
          %2261 = vmatpush1.bf16.msra.mxu0 0
          %2262 = vmatprep.subr.bf16.mxu0 0
          %2263 = vmatpush1.bf16.msra.mxu0 0
          %2264 = vmatprep.subr.bf16.mxu0 0
          %2265 = vmatpush1.bf16.msra.mxu0 %v2248
          %2266 = vmatprep.subr.bf16.mxu0 0
          %2267 = vmatpush2.bf16.msra.mxu0 0
          %2268 = vmatprep.subr.bf16.mxu0 0
          %2269 = vmatpush2.bf16.msra.mxu0 0
          %2270 = vmatprep.subr.bf16.mxu0 0
          %2271 = vmatpush2.bf16.msra.mxu0 0
          %2272 = vmatprep.subr.bf16.mxu0 0
          %2273 = vmatpush2.bf16.msra.mxu0 0
          %2274 = vmatprep.subr.bf16.mxu0 0
          %2275 = vmatpush2.bf16.msra.mxu0 0
          %2276 = vmatprep.subr.bf16.mxu0 0
          %2277 = vmatpush2.bf16.msra.mxu0 0
          %2278 = vmatprep.subr.bf16.mxu0 0
          %2279 = vmatpush2.bf16.msra.mxu0 0
          %2280 = vmatprep.subr.bf16.mxu0 0
          %2281 = vmatpush2.bf16.msra.mxu0 0
          %2282 = vmatprep.mubr.bf16.mxu0 0
          %2283 = vmatmul.mubr.bf16.gmra.mxu0 %v2245
          %v2284 = vpop.f32.mrf.mxu0
          %v2285 = vadd.f32 0.0, %v2284
          %v2286 = vpop.f32.mrf.mxu0
          %v2287 = vpop.f32.mrf.mxu0
          %v2288 = vpop.f32.mrf.mxu0
          %2289 = vdwg.mxu0
          %v2291 = vsel %vm1736, %v1732, 0
          %v2294 = vsel %vm1740, %v769, 0
          %2296 = vmatprep.subr.bf16.mxu0 0
          %2297 = vmatpush1.bf16.msra.mxu0 0
          %2298 = vmatprep.subr.bf16.mxu0 0
          %2299 = vmatpush1.bf16.msra.mxu0 0
          %2300 = vmatprep.subr.bf16.mxu0 0
          %2301 = vmatpush1.bf16.msra.mxu0 0
          %2302 = vmatprep.subr.bf16.mxu0 0
          %2303 = vmatpush1.bf16.msra.mxu0 0
          %2304 = vmatprep.subr.bf16.mxu0 0
          %2305 = vmatpush1.bf16.msra.mxu0 0
          %2306 = vmatprep.subr.bf16.mxu0 0
          %2307 = vmatpush1.bf16.msra.mxu0 0
          %2308 = vmatprep.subr.bf16.mxu0 0
          %2309 = vmatpush1.bf16.msra.mxu0 0
          %2310 = vmatprep.subr.bf16.mxu0 0
          %2311 = vmatpush1.bf16.msra.mxu0 %v2294
          %2312 = vmatprep.subr.bf16.mxu0 0
          %2313 = vmatpush2.bf16.msra.mxu0 0
          %2314 = vmatprep.subr.bf16.mxu0 0
          %2315 = vmatpush2.bf16.msra.mxu0 0
          %2316 = vmatprep.subr.bf16.mxu0 0
          %2317 = vmatpush2.bf16.msra.mxu0 0
          %2318 = vmatprep.subr.bf16.mxu0 0
          %2319 = vmatpush2.bf16.msra.mxu0 0
          %2320 = vmatprep.subr.bf16.mxu0 0
          %2321 = vmatpush2.bf16.msra.mxu0 0
          %2322 = vmatprep.subr.bf16.mxu0 0
          %2323 = vmatpush2.bf16.msra.mxu0 0
          %2324 = vmatprep.subr.bf16.mxu0 0
          %2325 = vmatpush2.bf16.msra.mxu0 0
          %2326 = vmatprep.subr.bf16.mxu0 0
          %2327 = vmatpush2.bf16.msra.mxu0 0
          %2328 = vmatprep.mubr.bf16.mxu0 0
          %2329 = vmatmul.mubr.bf16.gmra.mxu0 %v2291
          %v2330 = vpop.f32.mrf.mxu0
          %v2331 = vadd.f32 0.0, %v2330
          %v2332 = vpop.f32.mrf.mxu0
          %v2333 = vpop.f32.mrf.mxu0
          %v2334 = vpop.f32.mrf.mxu0
          %2335 = vdwg.mxu0
          %v2337 = vsel %vm1736, %v1733, 0
          %v2340 = vsel %vm1740, %v781, 0
          %2342 = vmatprep.subr.bf16.mxu0 0
          %2343 = vmatpush1.bf16.msra.mxu0 0
          %2344 = vmatprep.subr.bf16.mxu0 0
          %2345 = vmatpush1.bf16.msra.mxu0 0
          %2346 = vmatprep.subr.bf16.mxu0 0
          %2347 = vmatpush1.bf16.msra.mxu0 0
          %2348 = vmatprep.subr.bf16.mxu0 0
          %2349 = vmatpush1.bf16.msra.mxu0 0
          %2350 = vmatprep.subr.bf16.mxu0 0
          %2351 = vmatpush1.bf16.msra.mxu0 0
          %2352 = vmatprep.subr.bf16.mxu0 0
          %2353 = vmatpush1.bf16.msra.mxu0 0
          %2354 = vmatprep.subr.bf16.mxu0 0
          %2355 = vmatpush1.bf16.msra.mxu0 0
          %2356 = vmatprep.subr.bf16.mxu0 0
          %2357 = vmatpush1.bf16.msra.mxu0 %v2340
          %2358 = vmatprep.subr.bf16.mxu0 0
          %2359 = vmatpush2.bf16.msra.mxu0 0
          %2360 = vmatprep.subr.bf16.mxu0 0
          %2361 = vmatpush2.bf16.msra.mxu0 0
          %2362 = vmatprep.subr.bf16.mxu0 0
          %2363 = vmatpush2.bf16.msra.mxu0 0
          %2364 = vmatprep.subr.bf16.mxu0 0
          %2365 = vmatpush2.bf16.msra.mxu0 0
          %2366 = vmatprep.subr.bf16.mxu0 0
          %2367 = vmatpush2.bf16.msra.mxu0 0
          %2368 = vmatprep.subr.bf16.mxu0 0
          %2369 = vmatpush2.bf16.msra.mxu0 0
          %2370 = vmatprep.subr.bf16.mxu0 0
          %2371 = vmatpush2.bf16.msra.mxu0 0
          %2372 = vmatprep.subr.bf16.mxu0 0
          %2373 = vmatpush2.bf16.msra.mxu0 0
          %2374 = vmatprep.mubr.bf16.mxu0 0
          %2375 = vmatmul.mubr.bf16.gmra.mxu0 %v2337
          %v2376 = vpop.f32.mrf.mxu0
          %v2377 = vadd.f32 0.0, %v2376
          %v2378 = vpop.f32.mrf.mxu0
          %v2379 = vpop.f32.mrf.mxu0
          %v2380 = vpop.f32.mrf.mxu0
          %2381 = vdwg.mxu0
          %v2383 = vsel %vm1736, %v1734, 0
          %v2386 = vsel %vm1740, %v793, 0
          %2388 = vmatprep.subr.bf16.mxu0 0
          %2389 = vmatpush1.bf16.msra.mxu0 0
          %2390 = vmatprep.subr.bf16.mxu0 0
          %2391 = vmatpush1.bf16.msra.mxu0 0
          %2392 = vmatprep.subr.bf16.mxu0 0
          %2393 = vmatpush1.bf16.msra.mxu0 0
          %2394 = vmatprep.subr.bf16.mxu0 0
          %2395 = vmatpush1.bf16.msra.mxu0 0
          %2396 = vmatprep.subr.bf16.mxu0 0
          %2397 = vmatpush1.bf16.msra.mxu0 0
          %2398 = vmatprep.subr.bf16.mxu0 0
          %2399 = vmatpush1.bf16.msra.mxu0 0
          %2400 = vmatprep.subr.bf16.mxu0 0
          %2401 = vmatpush1.bf16.msra.mxu0 0
          %2402 = vmatprep.subr.bf16.mxu0 0
          %2403 = vmatpush1.bf16.msra.mxu0 %v2386
          %2404 = vmatprep.subr.bf16.mxu0 0
          %2405 = vmatpush2.bf16.msra.mxu0 0
          %2406 = vmatprep.subr.bf16.mxu0 0
          %2407 = vmatpush2.bf16.msra.mxu0 0
          %2408 = vmatprep.subr.bf16.mxu0 0
          %2409 = vmatpush2.bf16.msra.mxu0 0
          %2410 = vmatprep.subr.bf16.mxu0 0
          %2411 = vmatpush2.bf16.msra.mxu0 0
          %2412 = vmatprep.subr.bf16.mxu0 0
          %2413 = vmatpush2.bf16.msra.mxu0 0
          %2414 = vmatprep.subr.bf16.mxu0 0
          %2415 = vmatpush2.bf16.msra.mxu0 0
          %2416 = vmatprep.subr.bf16.mxu0 0
          %2417 = vmatpush2.bf16.msra.mxu0 0
          %2418 = vmatprep.subr.bf16.mxu0 0
          %2419 = vmatpush2.bf16.msra.mxu0 0
          %2420 = vmatprep.mubr.bf16.mxu0 0
          %2421 = vmatmul.mubr.bf16.gmra.mxu0 %v2383
          %v2422 = vpop.f32.mrf.mxu0
          %v2423 = vadd.f32 0.0, %v2422
          %v2424 = vpop.f32.mrf.mxu0
          %v2425 = vpop.f32.mrf.mxu0
          %v2426 = vpop.f32.mrf.mxu0
          %2427 = vdwg.mxu0
          %v2429 = vsel %vm1736, %v1735, 0
          %v2432 = vsel %vm1740, %v805, 0
          %2434 = vmatprep.subr.bf16.mxu0 0
          %2435 = vmatpush1.bf16.msra.mxu0 0
          %2436 = vmatprep.subr.bf16.mxu0 0
          %2437 = vmatpush1.bf16.msra.mxu0 0
          %2438 = vmatprep.subr.bf16.mxu0 0
          %2439 = vmatpush1.bf16.msra.mxu0 0
          %2440 = vmatprep.subr.bf16.mxu0 0
          %2441 = vmatpush1.bf16.msra.mxu0 0
          %2442 = vmatprep.subr.bf16.mxu0 0
          %2443 = vmatpush1.bf16.msra.mxu0 0
          %2444 = vmatprep.subr.bf16.mxu0 0
          %2445 = vmatpush1.bf16.msra.mxu0 0
          %2446 = vmatprep.subr.bf16.mxu0 0
          %2447 = vmatpush1.bf16.msra.mxu0 0
          %2448 = vmatprep.subr.bf16.mxu0 0
          %2449 = vmatpush1.bf16.msra.mxu0 %v2432
          %2450 = vmatprep.subr.bf16.mxu0 0
          %2451 = vmatpush2.bf16.msra.mxu0 0
          %2452 = vmatprep.subr.bf16.mxu0 0
          %2453 = vmatpush2.bf16.msra.mxu0 0
          %2454 = vmatprep.subr.bf16.mxu0 0
          %2455 = vmatpush2.bf16.msra.mxu0 0
          %2456 = vmatprep.subr.bf16.mxu0 0
          %2457 = vmatpush2.bf16.msra.mxu0 0
          %2458 = vmatprep.subr.bf16.mxu0 0
          %2459 = vmatpush2.bf16.msra.mxu0 0
          %2460 = vmatprep.subr.bf16.mxu0 0
          %2461 = vmatpush2.bf16.msra.mxu0 0
          %2462 = vmatprep.subr.bf16.mxu0 0
          %2463 = vmatpush2.bf16.msra.mxu0 0
          %2464 = vmatprep.subr.bf16.mxu0 0
          %2465 = vmatpush2.bf16.msra.mxu0 0
          %2466 = vmatprep.mubr.bf16.mxu0 0
          %2467 = vmatmul.mubr.bf16.gmra.mxu0 %v2429
          %v2468 = vpop.f32.mrf.mxu0
          %v2469 = vadd.f32 0.0, %v2468
          %v2470 = vpop.f32.mrf.mxu0
          %v2471 = vpop.f32.mrf.mxu0
          %v2472 = vpop.f32.mrf.mxu0
          %2473 = vdwg.mxu0
          %v2474 = vcombine.low %v1779, %v2147
          %v2476 = vunpack.c.l.s4 1983009808
          %v2477 = vunpack.c.0.s8 %v2476
          %v2478 = vlaneseq
          %v2479 = vshrl.u32 %v2478, 7
          %v2480 = vsub.s32 %v2477, %v2479
          %v2481 = vrot.slane %v2474, %v2480
          %v2482 = vcombine.low %v1963, %v2331
          %v2484 = vunpack.c.l.s4 1983009808
          %v2485 = vunpack.c.0.s8 %v2484
          %v2486 = vlaneseq
          %v2487 = vshrl.u32 %v2486, 7
          %v2488 = vsub.s32 %v2485, %v2487
          %v2489 = vrot.slane %v2482, %v2488
          %v2490 = vcombine.low %v2481, %v2489
          %v2491 = vcombine.high %v2481, %v2489
          %v2493 = vunpack.c.l.s4 1934713408
          %v2494 = vunpack.c.0.s8 %v2493
          %v2495 = vlaneseq
          %v2496 = vshrl.u32 %v2495, 7
          %v2497 = vsub.s32 %v2494, %v2496
          %v2498 = vrot.slane %v2490, %v2497
          %v2500 = vunpack.c.l.s4 1934713408
          %v2501 = vunpack.c.0.s8 %v2500
          %v2502 = vlaneseq
          %v2503 = vshrl.u32 %v2502, 7
          %v2504 = vsub.s32 %v2501, %v2503
          %v2505 = vrot.slane %v2491, %v2504
          %v2506 = vcombine.high %v2498, 0.0
          %v2507 = vcombine.high %v2505, 0.0
          %v2508 = vcombine.low %v1825, %v2193
          %v2510 = vunpack.c.l.s4 1983009808
          %v2511 = vunpack.c.0.s8 %v2510
          %v2512 = vlaneseq
          %v2513 = vshrl.u32 %v2512, 7
          %v2514 = vsub.s32 %v2511, %v2513
          %v2515 = vrot.slane %v2508, %v2514
          %v2516 = vcombine.low %v2009, %v2377
          %v2518 = vunpack.c.l.s4 1983009808
          %v2519 = vunpack.c.0.s8 %v2518
          %v2520 = vlaneseq
          %v2521 = vshrl.u32 %v2520, 7
          %v2522 = vsub.s32 %v2519, %v2521
          %v2523 = vrot.slane %v2516, %v2522
          %v2524 = vcombine.low %v2515, %v2523
          %v2525 = vcombine.high %v2515, %v2523
          %v2527 = vunpack.c.l.s4 1934713408
          %v2528 = vunpack.c.0.s8 %v2527
          %v2529 = vlaneseq
          %v2530 = vshrl.u32 %v2529, 7
          %v2531 = vsub.s32 %v2528, %v2530
          %v2532 = vrot.slane %v2524, %v2531
          %v2534 = vunpack.c.l.s4 1934713408
          %v2535 = vunpack.c.0.s8 %v2534
          %v2536 = vlaneseq
          %v2537 = vshrl.u32 %v2536, 7
          %v2538 = vsub.s32 %v2535, %v2537
          %v2539 = vrot.slane %v2525, %v2538
          %v2540 = vcombine.high %v2532, 0.0
          %v2541 = vcombine.high %v2539, 0.0
          %v2542 = vcombine.low %v1871, %v2239
          %v2544 = vunpack.c.l.s4 1983009808
          %v2545 = vunpack.c.0.s8 %v2544
          %v2546 = vlaneseq
          %v2547 = vshrl.u32 %v2546, 7
          %v2548 = vsub.s32 %v2545, %v2547
          %v2549 = vrot.slane %v2542, %v2548
          %v2550 = vcombine.low %v2055, %v2423
          %v2552 = vunpack.c.l.s4 1983009808
          %v2553 = vunpack.c.0.s8 %v2552
          %v2554 = vlaneseq
          %v2555 = vshrl.u32 %v2554, 7
          %v2556 = vsub.s32 %v2553, %v2555
          %v2557 = vrot.slane %v2550, %v2556
          %v2558 = vcombine.low %v2549, %v2557
          %v2559 = vcombine.high %v2549, %v2557
          %v2561 = vunpack.c.l.s4 1934713408
          %v2562 = vunpack.c.0.s8 %v2561
          %v2563 = vlaneseq
          %v2564 = vshrl.u32 %v2563, 7
          %v2565 = vsub.s32 %v2562, %v2564
          %v2566 = vrot.slane %v2558, %v2565
          %v2568 = vunpack.c.l.s4 1934713408
          %v2569 = vunpack.c.0.s8 %v2568
          %v2570 = vlaneseq
          %v2571 = vshrl.u32 %v2570, 7
          %v2572 = vsub.s32 %v2569, %v2571
          %v2573 = vrot.slane %v2559, %v2572
          %v2574 = vcombine.high %v2566, 0.0
          %v2575 = vcombine.high %v2573, 0.0
          %v2576 = vcombine.low %v1917, %v2285
          %v2578 = vunpack.c.l.s4 1983009808
          %v2579 = vunpack.c.0.s8 %v2578
          %v2580 = vlaneseq
          %v2581 = vshrl.u32 %v2580, 7
          %v2582 = vsub.s32 %v2579, %v2581
          %v2583 = vrot.slane %v2576, %v2582
          %v2584 = vcombine.low %v2101, %v2469
          %v2586 = vunpack.c.l.s4 1983009808
          %v2587 = vunpack.c.0.s8 %v2586
          %v2588 = vlaneseq
          %v2589 = vshrl.u32 %v2588, 7
          %v2590 = vsub.s32 %v2587, %v2589
          %v2591 = vrot.slane %v2584, %v2590
          %v2592 = vcombine.low %v2583, %v2591
          %v2593 = vcombine.high %v2583, %v2591
          %v2595 = vunpack.c.l.s4 1934713408
          %v2596 = vunpack.c.0.s8 %v2595
          %v2597 = vlaneseq
          %v2598 = vshrl.u32 %v2597, 7
          %v2599 = vsub.s32 %v2596, %v2598
          %v2600 = vrot.slane %v2592, %v2599
          %v2602 = vunpack.c.l.s4 1934713408
          %v2603 = vunpack.c.0.s8 %v2602
          %v2604 = vlaneseq
          %v2605 = vshrl.u32 %v2604, 7
          %v2606 = vsub.s32 %v2603, %v2605
          %v2607 = vrot.slane %v2593, %v2606
          %v2608 = vcombine.high %v2600, 0.0
          %v2609 = vcombine.high %v2607, 0.0
          %v2610 = vcombine.low %v2498, %v2505
          %v2612 = vunpack.c.l.s4 1983009808
          %v2613 = vunpack.c.0.s8 %v2612
          %v2614 = vlaneseq
          %v2615 = vshrl.u32 %v2614, 7
          %v2616 = vsub.s32 %v2613, %v2615
          %v2617 = vrot.slane %v2610, %v2616
          %v2618 = vcombine.low %v2506, %v2507
          %v2620 = vunpack.c.l.s4 1983009808
          %v2621 = vunpack.c.0.s8 %v2620
          %v2622 = vlaneseq
          %v2623 = vshrl.u32 %v2622, 7
          %v2624 = vsub.s32 %v2621, %v2623
          %v2625 = vrot.slane %v2618, %v2624
          %v2626 = vcombine.low %v2617, %v2625
          %v2627 = vcombine.high %v2617, %v2625
          %v2629 = vunpack.c.l.s4 1934713408
          %v2630 = vunpack.c.0.s8 %v2629
          %v2631 = vlaneseq
          %v2632 = vshrl.u32 %v2631, 7
          %v2633 = vsub.s32 %v2630, %v2632
          %v2634 = vrot.slane %v2626, %v2633
          %v2636 = vunpack.c.l.s4 1934713408
          %v2637 = vunpack.c.0.s8 %v2636
          %v2638 = vlaneseq
          %v2639 = vshrl.u32 %v2638, 7
          %v2640 = vsub.s32 %v2637, %v2639
          %v2641 = vrot.slane %v2627, %v2640
          %v2642 = vcombine.high %v2634, 0.0
          %v2643 = vcombine.high %v2641, 0.0
          %v2644 = vcombine.low %v2532, %v2539
          %v2646 = vunpack.c.l.s4 1983009808
          %v2647 = vunpack.c.0.s8 %v2646
          %v2648 = vlaneseq
          %v2649 = vshrl.u32 %v2648, 7
          %v2650 = vsub.s32 %v2647, %v2649
          %v2651 = vrot.slane %v2644, %v2650
          %v2652 = vcombine.low %v2540, %v2541
          %v2654 = vunpack.c.l.s4 1983009808
          %v2655 = vunpack.c.0.s8 %v2654
          %v2656 = vlaneseq
          %v2657 = vshrl.u32 %v2656, 7
          %v2658 = vsub.s32 %v2655, %v2657
          %v2659 = vrot.slane %v2652, %v2658
          %v2660 = vcombine.low %v2651, %v2659
          %v2661 = vcombine.high %v2651, %v2659
          %v2663 = vunpack.c.l.s4 1934713408
          %v2664 = vunpack.c.0.s8 %v2663
          %v2665 = vlaneseq
          %v2666 = vshrl.u32 %v2665, 7
          %v2667 = vsub.s32 %v2664, %v2666
          %v2668 = vrot.slane %v2660, %v2667
          %v2670 = vunpack.c.l.s4 1934713408
          %v2671 = vunpack.c.0.s8 %v2670
          %v2672 = vlaneseq
          %v2673 = vshrl.u32 %v2672, 7
          %v2674 = vsub.s32 %v2671, %v2673
          %v2675 = vrot.slane %v2661, %v2674
          %v2676 = vcombine.high %v2668, 0.0
          %v2677 = vcombine.high %v2675, 0.0
          %v2678 = vcombine.low %v2566, %v2573
          %v2680 = vunpack.c.l.s4 1983009808
          %v2681 = vunpack.c.0.s8 %v2680
          %v2682 = vlaneseq
          %v2683 = vshrl.u32 %v2682, 7
          %v2684 = vsub.s32 %v2681, %v2683
          %v2685 = vrot.slane %v2678, %v2684
          %v2686 = vcombine.low %v2574, %v2575
          %v2688 = vunpack.c.l.s4 1983009808
          %v2689 = vunpack.c.0.s8 %v2688
          %v2690 = vlaneseq
          %v2691 = vshrl.u32 %v2690, 7
          %v2692 = vsub.s32 %v2689, %v2691
          %v2693 = vrot.slane %v2686, %v2692
          %v2694 = vcombine.low %v2685, %v2693
          %v2695 = vcombine.high %v2685, %v2693
          %v2697 = vunpack.c.l.s4 1934713408
          %v2698 = vunpack.c.0.s8 %v2697
          %v2699 = vlaneseq
          %v2700 = vshrl.u32 %v2699, 7
          %v2701 = vsub.s32 %v2698, %v2700
          %v2702 = vrot.slane %v2694, %v2701
          %v2704 = vunpack.c.l.s4 1934713408
          %v2705 = vunpack.c.0.s8 %v2704
          %v2706 = vlaneseq
          %v2707 = vshrl.u32 %v2706, 7
          %v2708 = vsub.s32 %v2705, %v2707
          %v2709 = vrot.slane %v2695, %v2708
          %v2710 = vcombine.high %v2702, 0.0
          %v2711 = vcombine.high %v2709, 0.0
          %v2712 = vcombine.low %v2600, %v2607
          %v2714 = vunpack.c.l.s4 1983009808
          %v2715 = vunpack.c.0.s8 %v2714
          %v2716 = vlaneseq
          %v2717 = vshrl.u32 %v2716, 7
          %v2718 = vsub.s32 %v2715, %v2717
          %v2719 = vrot.slane %v2712, %v2718
          %v2720 = vcombine.low %v2608, %v2609
          %v2722 = vunpack.c.l.s4 1983009808
          %v2723 = vunpack.c.0.s8 %v2722
          %v2724 = vlaneseq
          %v2725 = vshrl.u32 %v2724, 7
          %v2726 = vsub.s32 %v2723, %v2725
          %v2727 = vrot.slane %v2720, %v2726
          %v2728 = vcombine.low %v2719, %v2727
          %v2729 = vcombine.high %v2719, %v2727
          %v2731 = vunpack.c.l.s4 1934713408
          %v2732 = vunpack.c.0.s8 %v2731
          %v2733 = vlaneseq
          %v2734 = vshrl.u32 %v2733, 7
          %v2735 = vsub.s32 %v2732, %v2734
          %v2736 = vrot.slane %v2728, %v2735
          %v2738 = vunpack.c.l.s4 1934713408
          %v2739 = vunpack.c.0.s8 %v2738
          %v2740 = vlaneseq
          %v2741 = vshrl.u32 %v2740, 7
          %v2742 = vsub.s32 %v2739, %v2741
          %v2743 = vrot.slane %v2729, %v2742
          %v2744 = vcombine.high %v2736, 0.0
          %v2745 = vcombine.high %v2743, 0.0
          %v2750 = vcombine.low %v2634, %v2668
          %v2751 = vcombine.low %v2702, %v2736
          %v2758 = vcombine.low %v2642, %v2676
          %v2759 = vcombine.low %v2710, %v2744
          %2760 = vrot.lane.b32.xlu0 %v2758, 32
          %v2761 = vpop.permute.xlu0 %2760
          %2762 = vrot.lane.b32.xlu0 %v2759, 32
          %v2763 = vpop.permute.xlu0 %2762
          %v2770 = vcombine.low %v2641, %v2675
          %v2771 = vcombine.low %v2709, %v2743
          %2772 = vrot.lane.b32.xlu0 %v2770, 64
          %v2773 = vpop.permute.xlu0 %2772
          %2774 = vrot.lane.b32.xlu0 %v2771, 64
          %v2775 = vpop.permute.xlu0 %2774
          %v2782 = vcombine.low %v2643, %v2677
          %v2783 = vcombine.low %v2711, %v2745
          %2784 = vrot.lane.b32.xlu0 %v2782, 96
          %v2785 = vpop.permute.xlu0 %2784
          %2786 = vrot.lane.b32.xlu0 %v2783, 96
          %v2787 = vpop.permute.xlu0 %2786
          %v2790 = vsel %vm806, %v2750, %v2761
          %v2791 = vsel %vm806, %v2751, %v2763
          %vm2792 = vcmask 523264
          %v2793 = vsel %vm2792, %v2790, %v2773
          %v2794 = vsel %vm2792, %v2791, %v2775
          %vm2795 = vcmask 785408
          %v2796 = vsel %vm2795, %v2793, %v2785
          %v2797 = vsel %vm2795, %v2794, %v2787
          %v2798 = vpack.c.bf16 %v2797, %v2796
          %v2800 = vunpack.c.l.b16 %v2798
          %v2801 = vunpack.c.h.b16 %v2798
          %v2802 = vpack.c.b16 %v2800, %v2800
          %v2803 = vpack.c.b16 %v2801, %v2801
          %2806 = vst [vmem:[%s359] sm:$0xf] %v2802
          %2807 = vst [vmem:[%s359 + $0x4] sm:$0xf] %v2803
        $region69: #{fd_attention_forward.4} parent=60 // pred_fallthru
          _
        %p2808 = scmp.eq.s32.totalorder %s17, 1
        // Predicated region
        $region70: #{fd_attention_forward.4} parent=60 // pred_check
          %p2809 = pneg %p2808
        $region71: #{fd_attention_forward.4} parent=60 // pred_check_branch
          %2811 = sbr.rel (%p2809) target = $region73
        $region72: #{fd_attention_forward.4} parent=60 // pred_region
          %v2812 = vld [vmem:[%s344] sm:$0x3]
          %v2813 = vld [vmem:[%s344 + $0x2] sm:$0x3]
          %v2814 = vld [vmem:[%s344 + $0x4] sm:$0x3]
          %v2815 = vld [vmem:[%s344 + $0x6] sm:$0x3]
          %v2816 = vld [vmem:[%s344 + $0x8] sm:$0x3]
          %v2817 = vld [vmem:[%s344 + $0xa] sm:$0x3]
          %v2818 = vld [vmem:[%s344 + $0xc] sm:$0x3]
          %v2819 = vld [vmem:[%s344 + $0xe] sm:$0x3]
          %v2820 = vld [vmem:[%s344 + $0x10] sm:$0x3]
          %v2821 = vld [vmem:[%s344 + $0x12] sm:$0x3]
          %v2822 = vld [vmem:[%s344 + $0x14] sm:$0x3]
          %v2823 = vld [vmem:[%s344 + $0x16] sm:$0x3]
          %v2824 = vld [vmem:[%s344 + $0x18] sm:$0x3]
          %v2825 = vld [vmem:[%s344 + $0x1a] sm:$0x3]
          %v2826 = vld [vmem:[%s344 + $0x1c] sm:$0x3]
          %v2827 = vld [vmem:[%s344 + $0x1e] sm:$0x3]
          %v2828 = vld [vmem:[%s344 + $0x20] sm:$0x3]
          %v2829 = vld [vmem:[%s344 + $0x22] sm:$0x3]
          %v2830 = vld [vmem:[%s344 + $0x24] sm:$0x3]
          %v2831 = vld [vmem:[%s344 + $0x26] sm:$0x3]
          %v2832 = vld [vmem:[%s344 + $0x28] sm:$0x3]
          %v2833 = vld [vmem:[%s344 + $0x2a] sm:$0x3]
          %v2834 = vld [vmem:[%s344 + $0x2c] sm:$0x3]
          %v2835 = vld [vmem:[%s344 + $0x2e] sm:$0x3]
          %v2836 = vld [vmem:[%s344 + $0x30] sm:$0x3]
          %v2837 = vld [vmem:[%s344 + $0x32] sm:$0x3]
          %v2838 = vld [vmem:[%s344 + $0x34] sm:$0x3]
          %v2839 = vld [vmem:[%s344 + $0x36] sm:$0x3]
          %v2840 = vld [vmem:[%s344 + $0x38] sm:$0x3]
          %v2841 = vld [vmem:[%s344 + $0x3a] sm:$0x3]
          %v2842 = vld [vmem:[%s344 + $0x3c] sm:$0x3]
          %v2843 = vld [vmem:[%s344 + $0x3e] sm:$0x3]
          %v2844 = vld [vmem:[%s344 + $0x40] sm:$0x3]
          %v2845 = vld [vmem:[%s344 + $0x42] sm:$0x3]
          %v2846 = vld [vmem:[%s344 + $0x44] sm:$0x3]
          %v2847 = vld [vmem:[%s344 + $0x46] sm:$0x3]
          %v2848 = vld [vmem:[%s344 + $0x48] sm:$0x3]
          %v2849 = vld [vmem:[%s344 + $0x4a] sm:$0x3]
          %v2850 = vld [vmem:[%s344 + $0x4c] sm:$0x3]
          %v2851 = vld [vmem:[%s344 + $0x4e] sm:$0x3]
          %v2852 = vld [vmem:[%s344 + $0x50] sm:$0x3]
          %v2853 = vld [vmem:[%s344 + $0x52] sm:$0x3]
          %v2854 = vld [vmem:[%s344 + $0x54] sm:$0x3]
          %v2855 = vld [vmem:[%s344 + $0x56] sm:$0x3]
          %v2856 = vld [vmem:[%s344 + $0x58] sm:$0x3]
          %v2857 = vld [vmem:[%s344 + $0x5a] sm:$0x3]
          %v2858 = vld [vmem:[%s344 + $0x5c] sm:$0x3]
          %v2859 = vld [vmem:[%s344 + $0x5e] sm:$0x3]
          %v2860 = vcombine.low %v2812, %v2818
          %v2862 = vunpack.c.l.s4 1934713408
          %v2863 = vunpack.c.0.s8 %v2862
          %v2864 = vlaneseq
          %v2865 = vshrl.u32 %v2864, 7
          %v2866 = vsub.s32 %v2863, %v2865
          %v2867 = vrot.slane %v2860, %v2866
          %v2868 = vcombine.high %v2867, 0
          %v2869 = vcombine.low %v2815, %v2821
          %v2871 = vunpack.c.l.s4 1934713408
          %v2872 = vunpack.c.0.s8 %v2871
          %v2873 = vlaneseq
          %v2874 = vshrl.u32 %v2873, 7
          %v2875 = vsub.s32 %v2872, %v2874
          %v2876 = vrot.slane %v2869, %v2875
          %v2877 = vcombine.high %v2876, 0
          %v2878 = vcombine.low %v2824, %v2830
          %v2880 = vunpack.c.l.s4 1934713408
          %v2881 = vunpack.c.0.s8 %v2880
          %v2882 = vlaneseq
          %v2883 = vshrl.u32 %v2882, 7
          %v2884 = vsub.s32 %v2881, %v2883
          %v2885 = vrot.slane %v2878, %v2884
          %v2886 = vcombine.high %v2885, 0
          %v2887 = vcombine.low %v2827, %v2833
          %v2889 = vunpack.c.l.s4 1934713408
          %v2890 = vunpack.c.0.s8 %v2889
          %v2891 = vlaneseq
          %v2892 = vshrl.u32 %v2891, 7
          %v2893 = vsub.s32 %v2890, %v2892
          %v2894 = vrot.slane %v2887, %v2893
          %v2895 = vcombine.high %v2894, 0
          %v2896 = vcombine.low %v2836, %v2842
          %v2898 = vunpack.c.l.s4 1934713408
          %v2899 = vunpack.c.0.s8 %v2898
          %v2900 = vlaneseq
          %v2901 = vshrl.u32 %v2900, 7
          %v2902 = vsub.s32 %v2899, %v2901
          %v2903 = vrot.slane %v2896, %v2902
          %v2904 = vcombine.high %v2903, 0
          %v2905 = vcombine.low %v2839, %v2845
          %v2907 = vunpack.c.l.s4 1934713408
          %v2908 = vunpack.c.0.s8 %v2907
          %v2909 = vlaneseq
          %v2910 = vshrl.u32 %v2909, 7
          %v2911 = vsub.s32 %v2908, %v2910
          %v2912 = vrot.slane %v2905, %v2911
          %v2913 = vcombine.high %v2912, 0
          %v2914 = vcombine.low %v2848, %v2854
          %v2916 = vunpack.c.l.s4 1934713408
          %v2917 = vunpack.c.0.s8 %v2916
          %v2918 = vlaneseq
          %v2919 = vshrl.u32 %v2918, 7
          %v2920 = vsub.s32 %v2917, %v2919
          %v2921 = vrot.slane %v2914, %v2920
          %v2922 = vcombine.high %v2921, 0
          %v2923 = vcombine.low %v2851, %v2857
          %v2925 = vunpack.c.l.s4 1934713408
          %v2926 = vunpack.c.0.s8 %v2925
          %v2927 = vlaneseq
          %v2928 = vshrl.u32 %v2927, 7
          %v2929 = vsub.s32 %v2926, %v2928
          %v2930 = vrot.slane %v2923, %v2929
          %v2931 = vcombine.high %v2930, 0
          %v2934 = vpack.i.b16 %v2876, %v2867
          %v2936 = vshrl.u32 %v2867, 16
          %v2937 = vshrl.u32 %v2876, 16
          %v2938 = vpack.i.b16 %v2937, %v2936
          %v2942 = vpack.i.b16 %v2877, %v2868
          %v2944 = vshrl.u32 %v2868, 16
          %v2945 = vshrl.u32 %v2877, 16
          %v2946 = vpack.i.b16 %v2945, %v2944
          %v2950 = vpack.i.b16 %v2894, %v2885
          %v2952 = vshrl.u32 %v2885, 16
          %v2953 = vshrl.u32 %v2894, 16
          %v2954 = vpack.i.b16 %v2953, %v2952
          %v2958 = vpack.i.b16 %v2895, %v2886
          %v2960 = vshrl.u32 %v2886, 16
          %v2961 = vshrl.u32 %v2895, 16
          %v2962 = vpack.i.b16 %v2961, %v2960
          %v2966 = vpack.i.b16 %v2912, %v2903
          %v2968 = vshrl.u32 %v2903, 16
          %v2969 = vshrl.u32 %v2912, 16
          %v2970 = vpack.i.b16 %v2969, %v2968
          %v2974 = vpack.i.b16 %v2913, %v2904
          %v2976 = vshrl.u32 %v2904, 16
          %v2977 = vshrl.u32 %v2913, 16
          %v2978 = vpack.i.b16 %v2977, %v2976
          %v2982 = vpack.i.b16 %v2930, %v2921
          %v2984 = vshrl.u32 %v2921, 16
          %v2985 = vshrl.u32 %v2930, 16
          %v2986 = vpack.i.b16 %v2985, %v2984
          %v2990 = vpack.i.b16 %v2931, %v2922
          %v2992 = vshrl.u32 %v2922, 16
          %v2993 = vshrl.u32 %v2931, 16
          %v2994 = vpack.i.b16 %v2993, %v2992
          %v2996 = vmul.bf16 %v2934, 1043676725
          %v2997 = vmul.bf16 %v2950, 1043676725
          %v2998 = vmul.bf16 %v2966, 1043676725
          %v2999 = vmul.bf16 %v2982, 1043676725
          %v3000 = vmul.bf16 %v2938, 1043676725
          %v3001 = vmul.bf16 %v2954, 1043676725
          %v3002 = vmul.bf16 %v2970, 1043676725
          %v3003 = vmul.bf16 %v2986, 1043676725
          %v3004 = vmul.bf16 %v2942, 1043676725
          %v3005 = vmul.bf16 %v2958, 1043676725
          %v3006 = vmul.bf16 %v2974, 1043676725
          %v3007 = vmul.bf16 %v2990, 1043676725
          %v3008 = vmul.bf16 %v2946, 1043676725
          %v3009 = vmul.bf16 %v2962, 1043676725
          %v3010 = vmul.bf16 %v2978, 1043676725
          %v3011 = vmul.bf16 %v2994, 1043676725
          %v3012 = vcombine.low %v2813, %v2819
          %v3014 = vunpack.c.l.s4 1934713408
          %v3015 = vunpack.c.0.s8 %v3014
          %v3016 = vlaneseq
          %v3017 = vshrl.u32 %v3016, 7
          %v3018 = vsub.s32 %v3015, %v3017
          %v3019 = vrot.slane %v3012, %v3018
          %v3020 = vcombine.high %v3019, 0
          %v3021 = vcombine.low %v2816, %v2822
          %v3023 = vunpack.c.l.s4 1934713408
          %v3024 = vunpack.c.0.s8 %v3023
          %v3025 = vlaneseq
          %v3026 = vshrl.u32 %v3025, 7
          %v3027 = vsub.s32 %v3024, %v3026
          %v3028 = vrot.slane %v3021, %v3027
          %v3029 = vcombine.high %v3028, 0
          %v3030 = vcombine.low %v2825, %v2831
          %v3032 = vunpack.c.l.s4 1934713408
          %v3033 = vunpack.c.0.s8 %v3032
          %v3034 = vlaneseq
          %v3035 = vshrl.u32 %v3034, 7
          %v3036 = vsub.s32 %v3033, %v3035
          %v3037 = vrot.slane %v3030, %v3036
          %v3038 = vcombine.high %v3037, 0
          %v3039 = vcombine.low %v2828, %v2834
          %v3041 = vunpack.c.l.s4 1934713408
          %v3042 = vunpack.c.0.s8 %v3041
          %v3043 = vlaneseq
          %v3044 = vshrl.u32 %v3043, 7
          %v3045 = vsub.s32 %v3042, %v3044
          %v3046 = vrot.slane %v3039, %v3045
          %v3047 = vcombine.high %v3046, 0
          %v3048 = vcombine.low %v2837, %v2843
          %v3050 = vunpack.c.l.s4 1934713408
          %v3051 = vunpack.c.0.s8 %v3050
          %v3052 = vlaneseq
          %v3053 = vshrl.u32 %v3052, 7
          %v3054 = vsub.s32 %v3051, %v3053
          %v3055 = vrot.slane %v3048, %v3054
          %v3056 = vcombine.high %v3055, 0
          %v3057 = vcombine.low %v2840, %v2846
          %v3059 = vunpack.c.l.s4 1934713408
          %v3060 = vunpack.c.0.s8 %v3059
          %v3061 = vlaneseq
          %v3062 = vshrl.u32 %v3061, 7
          %v3063 = vsub.s32 %v3060, %v3062
          %v3064 = vrot.slane %v3057, %v3063
          %v3065 = vcombine.high %v3064, 0
          %v3066 = vcombine.low %v2849, %v2855
          %v3068 = vunpack.c.l.s4 1934713408
          %v3069 = vunpack.c.0.s8 %v3068
          %v3070 = vlaneseq
          %v3071 = vshrl.u32 %v3070, 7
          %v3072 = vsub.s32 %v3069, %v3071
          %v3073 = vrot.slane %v3066, %v3072
          %v3074 = vcombine.high %v3073, 0
          %v3075 = vcombine.low %v2852, %v2858
          %v3077 = vunpack.c.l.s4 1934713408
          %v3078 = vunpack.c.0.s8 %v3077
          %v3079 = vlaneseq
          %v3080 = vshrl.u32 %v3079, 7
          %v3081 = vsub.s32 %v3078, %v3080
          %v3082 = vrot.slane %v3075, %v3081
          %v3083 = vcombine.high %v3082, 0
          %v3086 = vpack.i.b16 %v3028, %v3019
          %v3087 = vshrl.u32 %v3019, 16
          %v3088 = vshrl.u32 %v3028, 16
          %v3089 = vpack.i.b16 %v3088, %v3087
          %v3092 = vpack.i.b16 %v3029, %v3020
          %v3093 = vshrl.u32 %v3020, 16
          %v3094 = vshrl.u32 %v3029, 16
          %v3095 = vpack.i.b16 %v3094, %v3093
          %v3098 = vpack.i.b16 %v3046, %v3037
          %v3099 = vshrl.u32 %v3037, 16
          %v3100 = vshrl.u32 %v3046, 16
          %v3101 = vpack.i.b16 %v3100, %v3099
          %v3104 = vpack.i.b16 %v3047, %v3038
          %v3105 = vshrl.u32 %v3038, 16
          %v3106 = vshrl.u32 %v3047, 16
          %v3107 = vpack.i.b16 %v3106, %v3105
          %v3110 = vpack.i.b16 %v3064, %v3055
          %v3111 = vshrl.u32 %v3055, 16
          %v3112 = vshrl.u32 %v3064, 16
          %v3113 = vpack.i.b16 %v3112, %v3111
          %v3116 = vpack.i.b16 %v3065, %v3056
          %v3117 = vshrl.u32 %v3056, 16
          %v3118 = vshrl.u32 %v3065, 16
          %v3119 = vpack.i.b16 %v3118, %v3117
          %v3122 = vpack.i.b16 %v3082, %v3073
          %v3123 = vshrl.u32 %v3073, 16
          %v3124 = vshrl.u32 %v3082, 16
          %v3125 = vpack.i.b16 %v3124, %v3123
          %v3128 = vpack.i.b16 %v3083, %v3074
          %v3129 = vshrl.u32 %v3074, 16
          %v3130 = vshrl.u32 %v3083, 16
          %v3131 = vpack.i.b16 %v3130, %v3129
          %v3132 = vcombine.low %v2814, %v2820
          %v3134 = vunpack.c.l.s4 1934713408
          %v3135 = vunpack.c.0.s8 %v3134
          %v3136 = vlaneseq
          %v3137 = vshrl.u32 %v3136, 7
          %v3138 = vsub.s32 %v3135, %v3137
          %v3139 = vrot.slane %v3132, %v3138
          %v3140 = vcombine.high %v3139, 0
          %v3141 = vcombine.low %v2817, %v2823
          %v3143 = vunpack.c.l.s4 1934713408
          %v3144 = vunpack.c.0.s8 %v3143
          %v3145 = vlaneseq
          %v3146 = vshrl.u32 %v3145, 7
          %v3147 = vsub.s32 %v3144, %v3146
          %v3148 = vrot.slane %v3141, %v3147
          %v3149 = vcombine.high %v3148, 0
          %v3150 = vcombine.low %v2826, %v2832
          %v3152 = vunpack.c.l.s4 1934713408
          %v3153 = vunpack.c.0.s8 %v3152
          %v3154 = vlaneseq
          %v3155 = vshrl.u32 %v3154, 7
          %v3156 = vsub.s32 %v3153, %v3155
          %v3157 = vrot.slane %v3150, %v3156
          %v3158 = vcombine.high %v3157, 0
          %v3159 = vcombine.low %v2829, %v2835
          %v3161 = vunpack.c.l.s4 1934713408
          %v3162 = vunpack.c.0.s8 %v3161
          %v3163 = vlaneseq
          %v3164 = vshrl.u32 %v3163, 7
          %v3165 = vsub.s32 %v3162, %v3164
          %v3166 = vrot.slane %v3159, %v3165
          %v3167 = vcombine.high %v3166, 0
          %v3168 = vcombine.low %v2838, %v2844
          %v3170 = vunpack.c.l.s4 1934713408
          %v3171 = vunpack.c.0.s8 %v3170
          %v3172 = vlaneseq
          %v3173 = vshrl.u32 %v3172, 7
          %v3174 = vsub.s32 %v3171, %v3173
          %v3175 = vrot.slane %v3168, %v3174
          %v3176 = vcombine.high %v3175, 0
          %v3177 = vcombine.low %v2841, %v2847
          %v3179 = vunpack.c.l.s4 1934713408
          %v3180 = vunpack.c.0.s8 %v3179
          %v3181 = vlaneseq
          %v3182 = vshrl.u32 %v3181, 7
          %v3183 = vsub.s32 %v3180, %v3182
          %v3184 = vrot.slane %v3177, %v3183
          %v3185 = vcombine.high %v3184, 0
          %v3186 = vcombine.low %v2850, %v2856
          %v3188 = vunpack.c.l.s4 1934713408
          %v3189 = vunpack.c.0.s8 %v3188
          %v3190 = vlaneseq
          %v3191 = vshrl.u32 %v3190, 7
          %v3192 = vsub.s32 %v3189, %v3191
          %v3193 = vrot.slane %v3186, %v3192
          %v3194 = vcombine.high %v3193, 0
          %v3195 = vcombine.low %v2853, %v2859
          %v3197 = vunpack.c.l.s4 1934713408
          %v3198 = vunpack.c.0.s8 %v3197
          %v3199 = vlaneseq
          %v3200 = vshrl.u32 %v3199, 7
          %v3201 = vsub.s32 %v3198, %v3200
          %v3202 = vrot.slane %v3195, %v3201
          %v3203 = vcombine.high %v3202, 0
          %v3206 = vpack.i.b16 %v3148, %v3139
          %v3207 = vshrl.u32 %v3139, 16
          %v3208 = vshrl.u32 %v3148, 16
          %v3209 = vpack.i.b16 %v3208, %v3207
          %v3212 = vpack.i.b16 %v3149, %v3140
          %v3213 = vshrl.u32 %v3140, 16
          %v3214 = vshrl.u32 %v3149, 16
          %v3215 = vpack.i.b16 %v3214, %v3213
          %v3218 = vpack.i.b16 %v3166, %v3157
          %v3219 = vshrl.u32 %v3157, 16
          %v3220 = vshrl.u32 %v3166, 16
          %v3221 = vpack.i.b16 %v3220, %v3219
          %v3224 = vpack.i.b16 %v3167, %v3158
          %v3225 = vshrl.u32 %v3158, 16
          %v3226 = vshrl.u32 %v3167, 16
          %v3227 = vpack.i.b16 %v3226, %v3225
          %v3230 = vpack.i.b16 %v3184, %v3175
          %v3231 = vshrl.u32 %v3175, 16
          %v3232 = vshrl.u32 %v3184, 16
          %v3233 = vpack.i.b16 %v3232, %v3231
          %v3236 = vpack.i.b16 %v3185, %v3176
          %v3237 = vshrl.u32 %v3176, 16
          %v3238 = vshrl.u32 %v3185, 16
          %v3239 = vpack.i.b16 %v3238, %v3237
          %v3242 = vpack.i.b16 %v3202, %v3193
          %v3243 = vshrl.u32 %v3193, 16
          %v3244 = vshrl.u32 %v3202, 16
          %v3245 = vpack.i.b16 %v3244, %v3243
          %v3248 = vpack.i.b16 %v3203, %v3194
          %v3249 = vshrl.u32 %v3194, 16
          %v3250 = vshrl.u32 %v3203, 16
          %v3251 = vpack.i.b16 %v3250, %v3249
          %vm3252 = vcmask 261120
          %v3254 = vsel %vm3252, %v2996, 0
          %v3257 = vsel %vm3252, %v3086, 0
          %3259 = vmatprep.subr.bf16.mxu0 0
          %3260 = vmatpush1.bf16.xpose.msra.mxu0 0
          %3261 = vmatprep.subr.bf16.mxu0 0
          %3262 = vmatpush1.bf16.xpose.msra.mxu0 0
          %3263 = vmatprep.subr.bf16.mxu0 0
          %3264 = vmatpush1.bf16.xpose.msra.mxu0 0
          %3265 = vmatprep.subr.bf16.mxu0 0
          %3266 = vmatpush1.bf16.xpose.msra.mxu0 0
          %3267 = vmatprep.subr.bf16.mxu0 0
          %3268 = vmatpush1.bf16.xpose.msra.mxu0 0
          %3269 = vmatprep.subr.bf16.mxu0 0
          %3270 = vmatpush1.bf16.xpose.msra.mxu0 0
          %3271 = vmatprep.subr.bf16.mxu0 0
          %3272 = vmatpush1.bf16.xpose.msra.mxu0 0
          %3273 = vmatprep.subr.bf16.mxu0 0
          %3274 = vmatpush1.bf16.xpose.msra.mxu0 %v3257
          %3275 = vmatprep.subr.bf16.mxu0 0
          %3276 = vmatpush2.bf16.xpose.msra.mxu0 0
          %3277 = vmatprep.subr.bf16.mxu0 0
          %3278 = vmatpush2.bf16.xpose.msra.mxu0 0
          %3279 = vmatprep.subr.bf16.mxu0 0
          %3280 = vmatpush2.bf16.xpose.msra.mxu0 0
          %3281 = vmatprep.subr.bf16.mxu0 0
          %3282 = vmatpush2.bf16.xpose.msra.mxu0 0
          %3283 = vmatprep.subr.bf16.mxu0 0
          %3284 = vmatpush2.bf16.xpose.msra.mxu0 0
          %3285 = vmatprep.subr.bf16.mxu0 0
          %3286 = vmatpush2.bf16.xpose.msra.mxu0 0
          %3287 = vmatprep.subr.bf16.mxu0 0
          %3288 = vmatpush2.bf16.xpose.msra.mxu0 0
          %3289 = vmatprep.subr.bf16.mxu0 0
          %3290 = vmatpush2.bf16.xpose.msra.mxu0 0
          %3291 = vmatprep.mubr.bf16.mxu0 0
          %3292 = vmatmul.mubr.bf16.gmra.mxu0 %v3254
          %v3293 = vpop.f32.mrf.mxu0
          %v3294 = vadd.f32 0.0, %v3293
          %v3295 = vpop.f32.mrf.mxu0
          %v3296 = vpop.f32.mrf.mxu0
          %v3297 = vpop.f32.mrf.mxu0
          %3298 = vdwg.mxu0
          %v3300 = vsel %vm3252, %v2997, 0
          %v3303 = vsel %vm3252, %v3098, 0
          %3305 = vmatprep.subr.bf16.mxu0 0
          %3306 = vmatpush1.bf16.xpose.msra.mxu0 0
          %3307 = vmatprep.subr.bf16.mxu0 0
          %3308 = vmatpush1.bf16.xpose.msra.mxu0 0
          %3309 = vmatprep.subr.bf16.mxu0 0
          %3310 = vmatpush1.bf16.xpose.msra.mxu0 0
          %3311 = vmatprep.subr.bf16.mxu0 0
          %3312 = vmatpush1.bf16.xpose.msra.mxu0 0
          %3313 = vmatprep.subr.bf16.mxu0 0
          %3314 = vmatpush1.bf16.xpose.msra.mxu0 0
          %3315 = vmatprep.subr.bf16.mxu0 0
          %3316 = vmatpush1.bf16.xpose.msra.mxu0 0
          %3317 = vmatprep.subr.bf16.mxu0 0
          %3318 = vmatpush1.bf16.xpose.msra.mxu0 0
          %3319 = vmatprep.subr.bf16.mxu0 0
          %3320 = vmatpush1.bf16.xpose.msra.mxu0 %v3303
          %3321 = vmatprep.subr.bf16.mxu0 0
          %3322 = vmatpush2.bf16.xpose.msra.mxu0 0
          %3323 = vmatprep.subr.bf16.mxu0 0
          %3324 = vmatpush2.bf16.xpose.msra.mxu0 0
          %3325 = vmatprep.subr.bf16.mxu0 0
          %3326 = vmatpush2.bf16.xpose.msra.mxu0 0
          %3327 = vmatprep.subr.bf16.mxu0 0
          %3328 = vmatpush2.bf16.xpose.msra.mxu0 0
          %3329 = vmatprep.subr.bf16.mxu0 0
          %3330 = vmatpush2.bf16.xpose.msra.mxu0 0
          %3331 = vmatprep.subr.bf16.mxu0 0
          %3332 = vmatpush2.bf16.xpose.msra.mxu0 0
          %3333 = vmatprep.subr.bf16.mxu0 0
          %3334 = vmatpush2.bf16.xpose.msra.mxu0 0
          %3335 = vmatprep.subr.bf16.mxu0 0
          %3336 = vmatpush2.bf16.xpose.msra.mxu0 0
          %3337 = vmatprep.mubr.bf16.mxu0 0
          %3338 = vmatmul.mubr.bf16.gmra.mxu0 %v3300
          %v3339 = vpop.f32.mrf.mxu0
          %v3340 = vadd.f32 0.0, %v3339
          %v3341 = vpop.f32.mrf.mxu0
          %v3342 = vpop.f32.mrf.mxu0
          %v3343 = vpop.f32.mrf.mxu0
          %3344 = vdwg.mxu0
          %v3346 = vsel %vm3252, %v2998, 0
          %v3349 = vsel %vm3252, %v3110, 0
          %3351 = vmatprep.subr.bf16.mxu0 0
          %3352 = vmatpush1.bf16.xpose.msra.mxu0 0
          %3353 = vmatprep.subr.bf16.mxu0 0
          %3354 = vmatpush1.bf16.xpose.msra.mxu0 0
          %3355 = vmatprep.subr.bf16.mxu0 0
          %3356 = vmatpush1.bf16.xpose.msra.mxu0 0
          %3357 = vmatprep.subr.bf16.mxu0 0
          %3358 = vmatpush1.bf16.xpose.msra.mxu0 0
          %3359 = vmatprep.subr.bf16.mxu0 0
          %3360 = vmatpush1.bf16.xpose.msra.mxu0 0
          %3361 = vmatprep.subr.bf16.mxu0 0
          %3362 = vmatpush1.bf16.xpose.msra.mxu0 0
          %3363 = vmatprep.subr.bf16.mxu0 0
          %3364 = vmatpush1.bf16.xpose.msra.mxu0 0
          %3365 = vmatprep.subr.bf16.mxu0 0
          %3366 = vmatpush1.bf16.xpose.msra.mxu0 %v3349
          %3367 = vmatprep.subr.bf16.mxu0 0
          %3368 = vmatpush2.bf16.xpose.msra.mxu0 0
          %3369 = vmatprep.subr.bf16.mxu0 0
          %3370 = vmatpush2.bf16.xpose.msra.mxu0 0
          %3371 = vmatprep.subr.bf16.mxu0 0
          %3372 = vmatpush2.bf16.xpose.msra.mxu0 0
          %3373 = vmatprep.subr.bf16.mxu0 0
          %3374 = vmatpush2.bf16.xpose.msra.mxu0 0
          %3375 = vmatprep.subr.bf16.mxu0 0
          %3376 = vmatpush2.bf16.xpose.msra.mxu0 0
          %3377 = vmatprep.subr.bf16.mxu0 0
          %3378 = vmatpush2.bf16.xpose.msra.mxu0 0
          %3379 = vmatprep.subr.bf16.mxu0 0
          %3380 = vmatpush2.bf16.xpose.msra.mxu0 0
          %3381 = vmatprep.subr.bf16.mxu0 0
          %3382 = vmatpush2.bf16.xpose.msra.mxu0 0
          %3383 = vmatprep.mubr.bf16.mxu0 0
          %3384 = vmatmul.mubr.bf16.gmra.mxu0 %v3346
          %v3385 = vpop.f32.mrf.mxu0
          %v3386 = vadd.f32 0.0, %v3385
          %v3387 = vpop.f32.mrf.mxu0
          %v3388 = vpop.f32.mrf.mxu0
          %v3389 = vpop.f32.mrf.mxu0
          %3390 = vdwg.mxu0
          %v3392 = vsel %vm3252, %v2999, 0
          %v3395 = vsel %vm3252, %v3122, 0
          %3397 = vmatprep.subr.bf16.mxu0 0
          %3398 = vmatpush1.bf16.xpose.msra.mxu0 0
          %3399 = vmatprep.subr.bf16.mxu0 0
          %3400 = vmatpush1.bf16.xpose.msra.mxu0 0
          %3401 = vmatprep.subr.bf16.mxu0 0
          %3402 = vmatpush1.bf16.xpose.msra.mxu0 0
          %3403 = vmatprep.subr.bf16.mxu0 0
          %3404 = vmatpush1.bf16.xpose.msra.mxu0 0
          %3405 = vmatprep.subr.bf16.mxu0 0
          %3406 = vmatpush1.bf16.xpose.msra.mxu0 0
          %3407 = vmatprep.subr.bf16.mxu0 0
          %3408 = vmatpush1.bf16.xpose.msra.mxu0 0
          %3409 = vmatprep.subr.bf16.mxu0 0
          %3410 = vmatpush1.bf16.xpose.msra.mxu0 0
          %3411 = vmatprep.subr.bf16.mxu0 0
          %3412 = vmatpush1.bf16.xpose.msra.mxu0 %v3395
          %3413 = vmatprep.subr.bf16.mxu0 0
          %3414 = vmatpush2.bf16.xpose.msra.mxu0 0
          %3415 = vmatprep.subr.bf16.mxu0 0
          %3416 = vmatpush2.bf16.xpose.msra.mxu0 0
          %3417 = vmatprep.subr.bf16.mxu0 0
          %3418 = vmatpush2.bf16.xpose.msra.mxu0 0
          %3419 = vmatprep.subr.bf16.mxu0 0
          %3420 = vmatpush2.bf16.xpose.msra.mxu0 0
          %3421 = vmatprep.subr.bf16.mxu0 0
          %3422 = vmatpush2.bf16.xpose.msra.mxu0 0
          %3423 = vmatprep.subr.bf16.mxu0 0
          %3424 = vmatpush2.bf16.xpose.msra.mxu0 0
          %3425 = vmatprep.subr.bf16.mxu0 0
          %3426 = vmatpush2.bf16.xpose.msra.mxu0 0
          %3427 = vmatprep.subr.bf16.mxu0 0
          %3428 = vmatpush2.bf16.xpose.msra.mxu0 0
          %3429 = vmatprep.mubr.bf16.mxu0 0
          %3430 = vmatmul.mubr.bf16.gmra.mxu0 %v3392
          %v3431 = vpop.f32.mrf.mxu0
          %v3432 = vadd.f32 0.0, %v3431
          %v3433 = vpop.f32.mrf.mxu0
          %v3434 = vpop.f32.mrf.mxu0
          %v3435 = vpop.f32.mrf.mxu0
          %3436 = vdwg.mxu0
          %v3438 = vsel %vm3252, %v3000, 0
          %v3441 = vsel %vm3252, %v3089, 0
          %3443 = vmatprep.subr.bf16.mxu0 0
          %3444 = vmatpush1.bf16.xpose.msra.mxu0 0
          %3445 = vmatprep.subr.bf16.mxu0 0
          %3446 = vmatpush1.bf16.xpose.msra.mxu0 0
          %3447 = vmatprep.subr.bf16.mxu0 0
          %3448 = vmatpush1.bf16.xpose.msra.mxu0 0
          %3449 = vmatprep.subr.bf16.mxu0 0
          %3450 = vmatpush1.bf16.xpose.msra.mxu0 0
          %3451 = vmatprep.subr.bf16.mxu0 0
          %3452 = vmatpush1.bf16.xpose.msra.mxu0 0
          %3453 = vmatprep.subr.bf16.mxu0 0
          %3454 = vmatpush1.bf16.xpose.msra.mxu0 0
          %3455 = vmatprep.subr.bf16.mxu0 0
          %3456 = vmatpush1.bf16.xpose.msra.mxu0 0
          %3457 = vmatprep.subr.bf16.mxu0 0
          %3458 = vmatpush1.bf16.xpose.msra.mxu0 %v3441
          %3459 = vmatprep.subr.bf16.mxu0 0
          %3460 = vmatpush2.bf16.xpose.msra.mxu0 0
          %3461 = vmatprep.subr.bf16.mxu0 0
          %3462 = vmatpush2.bf16.xpose.msra.mxu0 0
          %3463 = vmatprep.subr.bf16.mxu0 0
          %3464 = vmatpush2.bf16.xpose.msra.mxu0 0
          %3465 = vmatprep.subr.bf16.mxu0 0
          %3466 = vmatpush2.bf16.xpose.msra.mxu0 0
          %3467 = vmatprep.subr.bf16.mxu0 0
          %3468 = vmatpush2.bf16.xpose.msra.mxu0 0
          %3469 = vmatprep.subr.bf16.mxu0 0
          %3470 = vmatpush2.bf16.xpose.msra.mxu0 0
          %3471 = vmatprep.subr.bf16.mxu0 0
          %3472 = vmatpush2.bf16.xpose.msra.mxu0 0
          %3473 = vmatprep.subr.bf16.mxu0 0
          %3474 = vmatpush2.bf16.xpose.msra.mxu0 0
          %3475 = vmatprep.mubr.bf16.mxu0 0
          %3476 = vmatmul.mubr.bf16.gmra.mxu0 %v3438
          %v3477 = vpop.f32.mrf.mxu0
          %v3478 = vadd.f32 0.0, %v3477
          %v3479 = vpop.f32.mrf.mxu0
          %v3480 = vpop.f32.mrf.mxu0
          %v3481 = vpop.f32.mrf.mxu0
          %3482 = vdwg.mxu0
          %v3484 = vsel %vm3252, %v3001, 0
          %v3487 = vsel %vm3252, %v3101, 0
          %3489 = vmatprep.subr.bf16.mxu0 0
          %3490 = vmatpush1.bf16.xpose.msra.mxu0 0
          %3491 = vmatprep.subr.bf16.mxu0 0
          %3492 = vmatpush1.bf16.xpose.msra.mxu0 0
          %3493 = vmatprep.subr.bf16.mxu0 0
          %3494 = vmatpush1.bf16.xpose.msra.mxu0 0
          %3495 = vmatprep.subr.bf16.mxu0 0
          %3496 = vmatpush1.bf16.xpose.msra.mxu0 0
          %3497 = vmatprep.subr.bf16.mxu0 0
          %3498 = vmatpush1.bf16.xpose.msra.mxu0 0
          %3499 = vmatprep.subr.bf16.mxu0 0
          %3500 = vmatpush1.bf16.xpose.msra.mxu0 0
          %3501 = vmatprep.subr.bf16.mxu0 0
          %3502 = vmatpush1.bf16.xpose.msra.mxu0 0
          %3503 = vmatprep.subr.bf16.mxu0 0
          %3504 = vmatpush1.bf16.xpose.msra.mxu0 %v3487
          %3505 = vmatprep.subr.bf16.mxu0 0
          %3506 = vmatpush2.bf16.xpose.msra.mxu0 0
          %3507 = vmatprep.subr.bf16.mxu0 0
          %3508 = vmatpush2.bf16.xpose.msra.mxu0 0
          %3509 = vmatprep.subr.bf16.mxu0 0
          %3510 = vmatpush2.bf16.xpose.msra.mxu0 0
          %3511 = vmatprep.subr.bf16.mxu0 0
          %3512 = vmatpush2.bf16.xpose.msra.mxu0 0
          %3513 = vmatprep.subr.bf16.mxu0 0
          %3514 = vmatpush2.bf16.xpose.msra.mxu0 0
          %3515 = vmatprep.subr.bf16.mxu0 0
          %3516 = vmatpush2.bf16.xpose.msra.mxu0 0
          %3517 = vmatprep.subr.bf16.mxu0 0
          %3518 = vmatpush2.bf16.xpose.msra.mxu0 0
          %3519 = vmatprep.subr.bf16.mxu0 0
          %3520 = vmatpush2.bf16.xpose.msra.mxu0 0
          %3521 = vmatprep.mubr.bf16.mxu0 0
          %3522 = vmatmul.mubr.bf16.gmra.mxu0 %v3484
          %v3523 = vpop.f32.mrf.mxu0
          %v3524 = vadd.f32 0.0, %v3523
          %v3525 = vpop.f32.mrf.mxu0
          %v3526 = vpop.f32.mrf.mxu0
          %v3527 = vpop.f32.mrf.mxu0
          %3528 = vdwg.mxu0
          %v3530 = vsel %vm3252, %v3002, 0
          %v3533 = vsel %vm3252, %v3113, 0
          %3535 = vmatprep.subr.bf16.mxu0 0
          %3536 = vmatpush1.bf16.xpose.msra.mxu0 0
          %3537 = vmatprep.subr.bf16.mxu0 0
          %3538 = vmatpush1.bf16.xpose.msra.mxu0 0
          %3539 = vmatprep.subr.bf16.mxu0 0
          %3540 = vmatpush1.bf16.xpose.msra.mxu0 0
          %3541 = vmatprep.subr.bf16.mxu0 0
          %3542 = vmatpush1.bf16.xpose.msra.mxu0 0
          %3543 = vmatprep.subr.bf16.mxu0 0
          %3544 = vmatpush1.bf16.xpose.msra.mxu0 0
          %3545 = vmatprep.subr.bf16.mxu0 0
          %3546 = vmatpush1.bf16.xpose.msra.mxu0 0
          %3547 = vmatprep.subr.bf16.mxu0 0
          %3548 = vmatpush1.bf16.xpose.msra.mxu0 0
          %3549 = vmatprep.subr.bf16.mxu0 0
          %3550 = vmatpush1.bf16.xpose.msra.mxu0 %v3533
          %3551 = vmatprep.subr.bf16.mxu0 0
          %3552 = vmatpush2.bf16.xpose.msra.mxu0 0
          %3553 = vmatprep.subr.bf16.mxu0 0
          %3554 = vmatpush2.bf16.xpose.msra.mxu0 0
          %3555 = vmatprep.subr.bf16.mxu0 0
          %3556 = vmatpush2.bf16.xpose.msra.mxu0 0
          %3557 = vmatprep.subr.bf16.mxu0 0
          %3558 = vmatpush2.bf16.xpose.msra.mxu0 0
          %3559 = vmatprep.subr.bf16.mxu0 0
          %3560 = vmatpush2.bf16.xpose.msra.mxu0 0
          %3561 = vmatprep.subr.bf16.mxu0 0
          %3562 = vmatpush2.bf16.xpose.msra.mxu0 0
          %3563 = vmatprep.subr.bf16.mxu0 0
          %3564 = vmatpush2.bf16.xpose.msra.mxu0 0
          %3565 = vmatprep.subr.bf16.mxu0 0
          %3566 = vmatpush2.bf16.xpose.msra.mxu0 0
          %3567 = vmatprep.mubr.bf16.mxu0 0
          %3568 = vmatmul.mubr.bf16.gmra.mxu0 %v3530
          %v3569 = vpop.f32.mrf.mxu0
          %v3570 = vadd.f32 0.0, %v3569
          %v3571 = vpop.f32.mrf.mxu0
          %v3572 = vpop.f32.mrf.mxu0
          %v3573 = vpop.f32.mrf.mxu0
          %3574 = vdwg.mxu0
          %v3576 = vsel %vm3252, %v3003, 0
          %v3579 = vsel %vm3252, %v3125, 0
          %3581 = vmatprep.subr.bf16.mxu0 0
          %3582 = vmatpush1.bf16.xpose.msra.mxu0 0
          %3583 = vmatprep.subr.bf16.mxu0 0
          %3584 = vmatpush1.bf16.xpose.msra.mxu0 0
          %3585 = vmatprep.subr.bf16.mxu0 0
          %3586 = vmatpush1.bf16.xpose.msra.mxu0 0
          %3587 = vmatprep.subr.bf16.mxu0 0
          %3588 = vmatpush1.bf16.xpose.msra.mxu0 0
          %3589 = vmatprep.subr.bf16.mxu0 0
          %3590 = vmatpush1.bf16.xpose.msra.mxu0 0
          %3591 = vmatprep.subr.bf16.mxu0 0
          %3592 = vmatpush1.bf16.xpose.msra.mxu0 0
          %3593 = vmatprep.subr.bf16.mxu0 0
          %3594 = vmatpush1.bf16.xpose.msra.mxu0 0
          %3595 = vmatprep.subr.bf16.mxu0 0
          %3596 = vmatpush1.bf16.xpose.msra.mxu0 %v3579
          %3597 = vmatprep.subr.bf16.mxu0 0
          %3598 = vmatpush2.bf16.xpose.msra.mxu0 0
          %3599 = vmatprep.subr.bf16.mxu0 0
          %3600 = vmatpush2.bf16.xpose.msra.mxu0 0
          %3601 = vmatprep.subr.bf16.mxu0 0
          %3602 = vmatpush2.bf16.xpose.msra.mxu0 0
          %3603 = vmatprep.subr.bf16.mxu0 0
          %3604 = vmatpush2.bf16.xpose.msra.mxu0 0
          %3605 = vmatprep.subr.bf16.mxu0 0
          %3606 = vmatpush2.bf16.xpose.msra.mxu0 0
          %3607 = vmatprep.subr.bf16.mxu0 0
          %3608 = vmatpush2.bf16.xpose.msra.mxu0 0
          %3609 = vmatprep.subr.bf16.mxu0 0
          %3610 = vmatpush2.bf16.xpose.msra.mxu0 0
          %3611 = vmatprep.subr.bf16.mxu0 0
          %3612 = vmatpush2.bf16.xpose.msra.mxu0 0
          %3613 = vmatprep.mubr.bf16.mxu0 0
          %3614 = vmatmul.mubr.bf16.gmra.mxu0 %v3576
          %v3615 = vpop.f32.mrf.mxu0
          %v3616 = vadd.f32 0.0, %v3615
          %v3617 = vpop.f32.mrf.mxu0
          %v3618 = vpop.f32.mrf.mxu0
          %v3619 = vpop.f32.mrf.mxu0
          %3620 = vdwg.mxu0
          %v3622 = vsel %vm3252, %v3004, 0
          %v3625 = vsel %vm3252, %v3092, 0
          %3627 = vmatprep.subr.bf16.mxu0 0
          %3628 = vmatpush1.bf16.xpose.msra.mxu0 0
          %3629 = vmatprep.subr.bf16.mxu0 0
          %3630 = vmatpush1.bf16.xpose.msra.mxu0 0
          %3631 = vmatprep.subr.bf16.mxu0 0
          %3632 = vmatpush1.bf16.xpose.msra.mxu0 0
          %3633 = vmatprep.subr.bf16.mxu0 0
          %3634 = vmatpush1.bf16.xpose.msra.mxu0 0
          %3635 = vmatprep.subr.bf16.mxu0 0
          %3636 = vmatpush1.bf16.xpose.msra.mxu0 0
          %3637 = vmatprep.subr.bf16.mxu0 0
          %3638 = vmatpush1.bf16.xpose.msra.mxu0 0
          %3639 = vmatprep.subr.bf16.mxu0 0
          %3640 = vmatpush1.bf16.xpose.msra.mxu0 0
          %3641 = vmatprep.subr.bf16.mxu0 0
          %3642 = vmatpush1.bf16.xpose.msra.mxu0 %v3625
          %3643 = vmatprep.subr.bf16.mxu0 0
          %3644 = vmatpush2.bf16.xpose.msra.mxu0 0
          %3645 = vmatprep.subr.bf16.mxu0 0
          %3646 = vmatpush2.bf16.xpose.msra.mxu0 0
          %3647 = vmatprep.subr.bf16.mxu0 0
          %3648 = vmatpush2.bf16.xpose.msra.mxu0 0
          %3649 = vmatprep.subr.bf16.mxu0 0
          %3650 = vmatpush2.bf16.xpose.msra.mxu0 0
          %3651 = vmatprep.subr.bf16.mxu0 0
          %3652 = vmatpush2.bf16.xpose.msra.mxu0 0
          %3653 = vmatprep.subr.bf16.mxu0 0
          %3654 = vmatpush2.bf16.xpose.msra.mxu0 0
          %3655 = vmatprep.subr.bf16.mxu0 0
          %3656 = vmatpush2.bf16.xpose.msra.mxu0 0
          %3657 = vmatprep.subr.bf16.mxu0 0
          %3658 = vmatpush2.bf16.xpose.msra.mxu0 0
          %3659 = vmatprep.mubr.bf16.mxu0 0
          %3660 = vmatmul.mubr.bf16.gmra.mxu0 %v3622
          %v3661 = vpop.f32.mrf.mxu0
          %v3662 = vadd.f32 0.0, %v3661
          %v3663 = vpop.f32.mrf.mxu0
          %v3664 = vpop.f32.mrf.mxu0
          %v3665 = vpop.f32.mrf.mxu0
          %3666 = vdwg.mxu0
          %v3668 = vsel %vm3252, %v3005, 0
          %v3671 = vsel %vm3252, %v3104, 0
          %3673 = vmatprep.subr.bf16.mxu0 0
          %3674 = vmatpush1.bf16.xpose.msra.mxu0 0
          %3675 = vmatprep.subr.bf16.mxu0 0
          %3676 = vmatpush1.bf16.xpose.msra.mxu0 0
          %3677 = vmatprep.subr.bf16.mxu0 0
          %3678 = vmatpush1.bf16.xpose.msra.mxu0 0
          %3679 = vmatprep.subr.bf16.mxu0 0
          %3680 = vmatpush1.bf16.xpose.msra.mxu0 0
          %3681 = vmatprep.subr.bf16.mxu0 0
          %3682 = vmatpush1.bf16.xpose.msra.mxu0 0
          %3683 = vmatprep.subr.bf16.mxu0 0
          %3684 = vmatpush1.bf16.xpose.msra.mxu0 0
          %3685 = vmatprep.subr.bf16.mxu0 0
          %3686 = vmatpush1.bf16.xpose.msra.mxu0 0
          %3687 = vmatprep.subr.bf16.mxu0 0
          %3688 = vmatpush1.bf16.xpose.msra.mxu0 %v3671
          %3689 = vmatprep.subr.bf16.mxu0 0
          %3690 = vmatpush2.bf16.xpose.msra.mxu0 0
          %3691 = vmatprep.subr.bf16.mxu0 0
          %3692 = vmatpush2.bf16.xpose.msra.mxu0 0
          %3693 = vmatprep.subr.bf16.mxu0 0
          %3694 = vmatpush2.bf16.xpose.msra.mxu0 0
          %3695 = vmatprep.subr.bf16.mxu0 0
          %3696 = vmatpush2.bf16.xpose.msra.mxu0 0
          %3697 = vmatprep.subr.bf16.mxu0 0
          %3698 = vmatpush2.bf16.xpose.msra.mxu0 0
          %3699 = vmatprep.subr.bf16.mxu0 0
          %3700 = vmatpush2.bf16.xpose.msra.mxu0 0
          %3701 = vmatprep.subr.bf16.mxu0 0
          %3702 = vmatpush2.bf16.xpose.msra.mxu0 0
          %3703 = vmatprep.subr.bf16.mxu0 0
          %3704 = vmatpush2.bf16.xpose.msra.mxu0 0
          %3705 = vmatprep.mubr.bf16.mxu0 0
          %3706 = vmatmul.mubr.bf16.gmra.mxu0 %v3668
          %v3707 = vpop.f32.mrf.mxu0
          %v3708 = vadd.f32 0.0, %v3707
          %v3709 = vpop.f32.mrf.mxu0
          %v3710 = vpop.f32.mrf.mxu0
          %v3711 = vpop.f32.mrf.mxu0
          %3712 = vdwg.mxu0
          %v3714 = vsel %vm3252, %v3006, 0
          %v3717 = vsel %vm3252, %v3116, 0
          %3719 = vmatprep.subr.bf16.mxu0 0
          %3720 = vmatpush1.bf16.xpose.msra.mxu0 0
          %3721 = vmatprep.subr.bf16.mxu0 0
          %3722 = vmatpush1.bf16.xpose.msra.mxu0 0
          %3723 = vmatprep.subr.bf16.mxu0 0
          %3724 = vmatpush1.bf16.xpose.msra.mxu0 0
          %3725 = vmatprep.subr.bf16.mxu0 0
          %3726 = vmatpush1.bf16.xpose.msra.mxu0 0
          %3727 = vmatprep.subr.bf16.mxu0 0
          %3728 = vmatpush1.bf16.xpose.msra.mxu0 0
          %3729 = vmatprep.subr.bf16.mxu0 0
          %3730 = vmatpush1.bf16.xpose.msra.mxu0 0
          %3731 = vmatprep.subr.bf16.mxu0 0
          %3732 = vmatpush1.bf16.xpose.msra.mxu0 0
          %3733 = vmatprep.subr.bf16.mxu0 0
          %3734 = vmatpush1.bf16.xpose.msra.mxu0 %v3717
          %3735 = vmatprep.subr.bf16.mxu0 0
          %3736 = vmatpush2.bf16.xpose.msra.mxu0 0
          %3737 = vmatprep.subr.bf16.mxu0 0
          %3738 = vmatpush2.bf16.xpose.msra.mxu0 0
          %3739 = vmatprep.subr.bf16.mxu0 0
          %3740 = vmatpush2.bf16.xpose.msra.mxu0 0
          %3741 = vmatprep.subr.bf16.mxu0 0
          %3742 = vmatpush2.bf16.xpose.msra.mxu0 0
          %3743 = vmatprep.subr.bf16.mxu0 0
          %3744 = vmatpush2.bf16.xpose.msra.mxu0 0
          %3745 = vmatprep.subr.bf16.mxu0 0
          %3746 = vmatpush2.bf16.xpose.msra.mxu0 0
          %3747 = vmatprep.subr.bf16.mxu0 0
          %3748 = vmatpush2.bf16.xpose.msra.mxu0 0
          %3749 = vmatprep.subr.bf16.mxu0 0
          %3750 = vmatpush2.bf16.xpose.msra.mxu0 0
          %3751 = vmatprep.mubr.bf16.mxu0 0
          %3752 = vmatmul.mubr.bf16.gmra.mxu0 %v3714
          %v3753 = vpop.f32.mrf.mxu0
          %v3754 = vadd.f32 0.0, %v3753
          %v3755 = vpop.f32.mrf.mxu0
          %v3756 = vpop.f32.mrf.mxu0
          %v3757 = vpop.f32.mrf.mxu0
          %3758 = vdwg.mxu0
          %v3760 = vsel %vm3252, %v3007, 0
          %v3763 = vsel %vm3252, %v3128, 0
          %3765 = vmatprep.subr.bf16.mxu0 0
          %3766 = vmatpush1.bf16.xpose.msra.mxu0 0
          %3767 = vmatprep.subr.bf16.mxu0 0
          %3768 = vmatpush1.bf16.xpose.msra.mxu0 0
          %3769 = vmatprep.subr.bf16.mxu0 0
          %3770 = vmatpush1.bf16.xpose.msra.mxu0 0
          %3771 = vmatprep.subr.bf16.mxu0 0
          %3772 = vmatpush1.bf16.xpose.msra.mxu0 0
          %3773 = vmatprep.subr.bf16.mxu0 0
          %3774 = vmatpush1.bf16.xpose.msra.mxu0 0
          %3775 = vmatprep.subr.bf16.mxu0 0
          %3776 = vmatpush1.bf16.xpose.msra.mxu0 0
          %3777 = vmatprep.subr.bf16.mxu0 0
          %3778 = vmatpush1.bf16.xpose.msra.mxu0 0
          %3779 = vmatprep.subr.bf16.mxu0 0
          %3780 = vmatpush1.bf16.xpose.msra.mxu0 %v3763
          %3781 = vmatprep.subr.bf16.mxu0 0
          %3782 = vmatpush2.bf16.xpose.msra.mxu0 0
          %3783 = vmatprep.subr.bf16.mxu0 0
          %3784 = vmatpush2.bf16.xpose.msra.mxu0 0
          %3785 = vmatprep.subr.bf16.mxu0 0
          %3786 = vmatpush2.bf16.xpose.msra.mxu0 0
          %3787 = vmatprep.subr.bf16.mxu0 0
          %3788 = vmatpush2.bf16.xpose.msra.mxu0 0
          %3789 = vmatprep.subr.bf16.mxu0 0
          %3790 = vmatpush2.bf16.xpose.msra.mxu0 0
          %3791 = vmatprep.subr.bf16.mxu0 0
          %3792 = vmatpush2.bf16.xpose.msra.mxu0 0
          %3793 = vmatprep.subr.bf16.mxu0 0
          %3794 = vmatpush2.bf16.xpose.msra.mxu0 0
          %3795 = vmatprep.subr.bf16.mxu0 0
          %3796 = vmatpush2.bf16.xpose.msra.mxu0 0
          %3797 = vmatprep.mubr.bf16.mxu0 0
          %3798 = vmatmul.mubr.bf16.gmra.mxu0 %v3760
          %v3799 = vpop.f32.mrf.mxu0
          %v3800 = vadd.f32 0.0, %v3799
          %v3801 = vpop.f32.mrf.mxu0
          %v3802 = vpop.f32.mrf.mxu0
          %v3803 = vpop.f32.mrf.mxu0
          %3804 = vdwg.mxu0
          %v3806 = vsel %vm3252, %v3008, 0
          %v3809 = vsel %vm3252, %v3095, 0
          %3811 = vmatprep.subr.bf16.mxu0 0
          %3812 = vmatpush1.bf16.xpose.msra.mxu0 0
          %3813 = vmatprep.subr.bf16.mxu0 0
          %3814 = vmatpush1.bf16.xpose.msra.mxu0 0
          %3815 = vmatprep.subr.bf16.mxu0 0
          %3816 = vmatpush1.bf16.xpose.msra.mxu0 0
          %3817 = vmatprep.subr.bf16.mxu0 0
          %3818 = vmatpush1.bf16.xpose.msra.mxu0 0
          %3819 = vmatprep.subr.bf16.mxu0 0
          %3820 = vmatpush1.bf16.xpose.msra.mxu0 0
          %3821 = vmatprep.subr.bf16.mxu0 0
          %3822 = vmatpush1.bf16.xpose.msra.mxu0 0
          %3823 = vmatprep.subr.bf16.mxu0 0
          %3824 = vmatpush1.bf16.xpose.msra.mxu0 0
          %3825 = vmatprep.subr.bf16.mxu0 0
          %3826 = vmatpush1.bf16.xpose.msra.mxu0 %v3809
          %3827 = vmatprep.subr.bf16.mxu0 0
          %3828 = vmatpush2.bf16.xpose.msra.mxu0 0
          %3829 = vmatprep.subr.bf16.mxu0 0
          %3830 = vmatpush2.bf16.xpose.msra.mxu0 0
          %3831 = vmatprep.subr.bf16.mxu0 0
          %3832 = vmatpush2.bf16.xpose.msra.mxu0 0
          %3833 = vmatprep.subr.bf16.mxu0 0
          %3834 = vmatpush2.bf16.xpose.msra.mxu0 0
          %3835 = vmatprep.subr.bf16.mxu0 0
          %3836 = vmatpush2.bf16.xpose.msra.mxu0 0
          %3837 = vmatprep.subr.bf16.mxu0 0
          %3838 = vmatpush2.bf16.xpose.msra.mxu0 0
          %3839 = vmatprep.subr.bf16.mxu0 0
          %3840 = vmatpush2.bf16.xpose.msra.mxu0 0
          %3841 = vmatprep.subr.bf16.mxu0 0
          %3842 = vmatpush2.bf16.xpose.msra.mxu0 0
          %3843 = vmatprep.mubr.bf16.mxu0 0
          %3844 = vmatmul.mubr.bf16.gmra.mxu0 %v3806
          %v3845 = vpop.f32.mrf.mxu0
          %v3846 = vadd.f32 0.0, %v3845
          %v3847 = vpop.f32.mrf.mxu0
          %v3848 = vpop.f32.mrf.mxu0
          %v3849 = vpop.f32.mrf.mxu0
          %3850 = vdwg.mxu0
          %v3852 = vsel %vm3252, %v3009, 0
          %v3855 = vsel %vm3252, %v3107, 0
          %3857 = vmatprep.subr.bf16.mxu0 0
          %3858 = vmatpush1.bf16.xpose.msra.mxu0 0
          %3859 = vmatprep.subr.bf16.mxu0 0
          %3860 = vmatpush1.bf16.xpose.msra.mxu0 0
          %3861 = vmatprep.subr.bf16.mxu0 0
          %3862 = vmatpush1.bf16.xpose.msra.mxu0 0
          %3863 = vmatprep.subr.bf16.mxu0 0
          %3864 = vmatpush1.bf16.xpose.msra.mxu0 0
          %3865 = vmatprep.subr.bf16.mxu0 0
          %3866 = vmatpush1.bf16.xpose.msra.mxu0 0
          %3867 = vmatprep.subr.bf16.mxu0 0
          %3868 = vmatpush1.bf16.xpose.msra.mxu0 0
          %3869 = vmatprep.subr.bf16.mxu0 0
          %3870 = vmatpush1.bf16.xpose.msra.mxu0 0
          %3871 = vmatprep.subr.bf16.mxu0 0
          %3872 = vmatpush1.bf16.xpose.msra.mxu0 %v3855
          %3873 = vmatprep.subr.bf16.mxu0 0
          %3874 = vmatpush2.bf16.xpose.msra.mxu0 0
          %3875 = vmatprep.subr.bf16.mxu0 0
          %3876 = vmatpush2.bf16.xpose.msra.mxu0 0
          %3877 = vmatprep.subr.bf16.mxu0 0
          %3878 = vmatpush2.bf16.xpose.msra.mxu0 0
          %3879 = vmatprep.subr.bf16.mxu0 0
          %3880 = vmatpush2.bf16.xpose.msra.mxu0 0
          %3881 = vmatprep.subr.bf16.mxu0 0
          %3882 = vmatpush2.bf16.xpose.msra.mxu0 0
          %3883 = vmatprep.subr.bf16.mxu0 0
          %3884 = vmatpush2.bf16.xpose.msra.mxu0 0
          %3885 = vmatprep.subr.bf16.mxu0 0
          %3886 = vmatpush2.bf16.xpose.msra.mxu0 0
          %3887 = vmatprep.subr.bf16.mxu0 0
          %3888 = vmatpush2.bf16.xpose.msra.mxu0 0
          %3889 = vmatprep.mubr.bf16.mxu0 0
          %3890 = vmatmul.mubr.bf16.gmra.mxu0 %v3852
          %v3891 = vpop.f32.mrf.mxu0
          %v3892 = vadd.f32 0.0, %v3891
          %v3893 = vpop.f32.mrf.mxu0
          %v3894 = vpop.f32.mrf.mxu0
          %v3895 = vpop.f32.mrf.mxu0
          %3896 = vdwg.mxu0
          %v3898 = vsel %vm3252, %v3010, 0
          %v3901 = vsel %vm3252, %v3119, 0
          %3903 = vmatprep.subr.bf16.mxu0 0
          %3904 = vmatpush1.bf16.xpose.msra.mxu0 0
          %3905 = vmatprep.subr.bf16.mxu0 0
          %3906 = vmatpush1.bf16.xpose.msra.mxu0 0
          %3907 = vmatprep.subr.bf16.mxu0 0
          %3908 = vmatpush1.bf16.xpose.msra.mxu0 0
          %3909 = vmatprep.subr.bf16.mxu0 0
          %3910 = vmatpush1.bf16.xpose.msra.mxu0 0
          %3911 = vmatprep.subr.bf16.mxu0 0
          %3912 = vmatpush1.bf16.xpose.msra.mxu0 0
          %3913 = vmatprep.subr.bf16.mxu0 0
          %3914 = vmatpush1.bf16.xpose.msra.mxu0 0
          %3915 = vmatprep.subr.bf16.mxu0 0
          %3916 = vmatpush1.bf16.xpose.msra.mxu0 0
          %3917 = vmatprep.subr.bf16.mxu0 0
          %3918 = vmatpush1.bf16.xpose.msra.mxu0 %v3901
          %3919 = vmatprep.subr.bf16.mxu0 0
          %3920 = vmatpush2.bf16.xpose.msra.mxu0 0
          %3921 = vmatprep.subr.bf16.mxu0 0
          %3922 = vmatpush2.bf16.xpose.msra.mxu0 0
          %3923 = vmatprep.subr.bf16.mxu0 0
          %3924 = vmatpush2.bf16.xpose.msra.mxu0 0
          %3925 = vmatprep.subr.bf16.mxu0 0
          %3926 = vmatpush2.bf16.xpose.msra.mxu0 0
          %3927 = vmatprep.subr.bf16.mxu0 0
          %3928 = vmatpush2.bf16.xpose.msra.mxu0 0
          %3929 = vmatprep.subr.bf16.mxu0 0
          %3930 = vmatpush2.bf16.xpose.msra.mxu0 0
          %3931 = vmatprep.subr.bf16.mxu0 0
          %3932 = vmatpush2.bf16.xpose.msra.mxu0 0
          %3933 = vmatprep.subr.bf16.mxu0 0
          %3934 = vmatpush2.bf16.xpose.msra.mxu0 0
          %3935 = vmatprep.mubr.bf16.mxu0 0
          %3936 = vmatmul.mubr.bf16.gmra.mxu0 %v3898
          %v3937 = vpop.f32.mrf.mxu0
          %v3938 = vadd.f32 0.0, %v3937
          %v3939 = vpop.f32.mrf.mxu0
          %v3940 = vpop.f32.mrf.mxu0
          %v3941 = vpop.f32.mrf.mxu0
          %3942 = vdwg.mxu0
          %v3944 = vsel %vm3252, %v3011, 0
          %v3947 = vsel %vm3252, %v3131, 0
          %3949 = vmatprep.subr.bf16.mxu0 0
          %3950 = vmatpush1.bf16.xpose.msra.mxu0 0
          %3951 = vmatprep.subr.bf16.mxu0 0
          %3952 = vmatpush1.bf16.xpose.msra.mxu0 0
          %3953 = vmatprep.subr.bf16.mxu0 0
          %3954 = vmatpush1.bf16.xpose.msra.mxu0 0
          %3955 = vmatprep.subr.bf16.mxu0 0
          %3956 = vmatpush1.bf16.xpose.msra.mxu0 0
          %3957 = vmatprep.subr.bf16.mxu0 0
          %3958 = vmatpush1.bf16.xpose.msra.mxu0 0
          %3959 = vmatprep.subr.bf16.mxu0 0
          %3960 = vmatpush1.bf16.xpose.msra.mxu0 0
          %3961 = vmatprep.subr.bf16.mxu0 0
          %3962 = vmatpush1.bf16.xpose.msra.mxu0 0
          %3963 = vmatprep.subr.bf16.mxu0 0
          %3964 = vmatpush1.bf16.xpose.msra.mxu0 %v3947
          %3965 = vmatprep.subr.bf16.mxu0 0
          %3966 = vmatpush2.bf16.xpose.msra.mxu0 0
          %3967 = vmatprep.subr.bf16.mxu0 0
          %3968 = vmatpush2.bf16.xpose.msra.mxu0 0
          %3969 = vmatprep.subr.bf16.mxu0 0
          %3970 = vmatpush2.bf16.xpose.msra.mxu0 0
          %3971 = vmatprep.subr.bf16.mxu0 0
          %3972 = vmatpush2.bf16.xpose.msra.mxu0 0
          %3973 = vmatprep.subr.bf16.mxu0 0
          %3974 = vmatpush2.bf16.xpose.msra.mxu0 0
          %3975 = vmatprep.subr.bf16.mxu0 0
          %3976 = vmatpush2.bf16.xpose.msra.mxu0 0
          %3977 = vmatprep.subr.bf16.mxu0 0
          %3978 = vmatpush2.bf16.xpose.msra.mxu0 0
          %3979 = vmatprep.subr.bf16.mxu0 0
          %3980 = vmatpush2.bf16.xpose.msra.mxu0 0
          %3981 = vmatprep.mubr.bf16.mxu0 0
          %3982 = vmatmul.mubr.bf16.gmra.mxu0 %v3944
          %v3983 = vpop.f32.mrf.mxu0
          %v3984 = vadd.f32 0.0, %v3983
          %v3985 = vpop.f32.mrf.mxu0
          %v3986 = vpop.f32.mrf.mxu0
          %v3987 = vpop.f32.mrf.mxu0
          %3988 = vdwg.mxu0
          %vm3989 = vcmask 27648
          %v3990 = vsel %vm3989, %v3294, -inf
          %3991 = vmax.xlane.f32.xlu0 %v3990
          %v3992 = vpop.xlane.xlu0 %3991
          %v3993 = vsel %vm3989, %v3340, -inf
          %3994 = vmax.xlane.f32.xlu0 %v3993
          %v3995 = vpop.xlane.xlu0 %3994
          %v3996 = vsel %vm3989, %v3386, -inf
          %3997 = vmax.xlane.f32.xlu0 %v3996
          %v3998 = vpop.xlane.xlu0 %3997
          %v3999 = vsel %vm3989, %v3432, -inf
          %4000 = vmax.xlane.f32.xlu0 %v3999
          %v4001 = vpop.xlane.xlu0 %4000
          %v4002 = vsel %vm3989, %v3478, -inf
          %4003 = vmax.xlane.f32.xlu0 %v4002
          %v4004 = vpop.xlane.xlu0 %4003
          %v4005 = vsel %vm3989, %v3524, -inf
          %4006 = vmax.xlane.f32.xlu0 %v4005
          %v4007 = vpop.xlane.xlu0 %4006
          %v4008 = vsel %vm3989, %v3570, -inf
          %4009 = vmax.xlane.f32.xlu0 %v4008
          %v4010 = vpop.xlane.xlu0 %4009
          %v4011 = vsel %vm3989, %v3616, -inf
          %4012 = vmax.xlane.f32.xlu0 %v4011
          %v4013 = vpop.xlane.xlu0 %4012
          %v4014 = vsel %vm3989, %v3662, -inf
          %4015 = vmax.xlane.f32.xlu0 %v4014
          %v4016 = vpop.xlane.xlu0 %4015
          %v4017 = vsel %vm3989, %v3708, -inf
          %4018 = vmax.xlane.f32.xlu0 %v4017
          %v4019 = vpop.xlane.xlu0 %4018
          %v4020 = vsel %vm3989, %v3754, -inf
          %4021 = vmax.xlane.f32.xlu0 %v4020
          %v4022 = vpop.xlane.xlu0 %4021
          %v4023 = vsel %vm3989, %v3800, -inf
          %4024 = vmax.xlane.f32.xlu0 %v4023
          %v4025 = vpop.xlane.xlu0 %4024
          %v4026 = vsel %vm3989, %v3846, -inf
          %4027 = vmax.xlane.f32.xlu0 %v4026
          %v4028 = vpop.xlane.xlu0 %4027
          %v4029 = vsel %vm3989, %v3892, -inf
          %4030 = vmax.xlane.f32.xlu0 %v4029
          %v4031 = vpop.xlane.xlu0 %4030
          %v4032 = vsel %vm3989, %v3938, -inf
          %4033 = vmax.xlane.f32.xlu0 %v4032
          %v4034 = vpop.xlane.xlu0 %4033
          %v4035 = vsel %vm3989, %v3984, -inf
          %4036 = vmax.xlane.f32.xlu0 %v4035
          %v4037 = vpop.xlane.xlu0 %4036
          %v4038 = vsub.f32 %v3294, %v3992
          %v4039 = vsub.f32 %v3340, %v3995
          %v4040 = vsub.f32 %v3386, %v3998
          %v4041 = vsub.f32 %v3432, %v4001
          %v4042 = vsub.f32 %v3478, %v4004
          %v4043 = vsub.f32 %v3524, %v4007
          %v4044 = vsub.f32 %v3570, %v4010
          %v4045 = vsub.f32 %v3616, %v4013
          %v4046 = vsub.f32 %v3662, %v4016
          %v4047 = vsub.f32 %v3708, %v4019
          %v4048 = vsub.f32 %v3754, %v4022
          %v4049 = vsub.f32 %v3800, %v4025
          %v4050 = vsub.f32 %v3846, %v4028
          %v4051 = vsub.f32 %v3892, %v4031
          %v4052 = vsub.f32 %v3938, %v4034
          %v4053 = vsub.f32 %v3984, %v4037
          %v4054 = vmul.f32 %v4038, 1.442695
          %v4055 = vpow.pop %v4054
          %v4056 = vmul.f32 %v4039, 1.442695
          %v4057 = vpow.pop %v4056
          %v4058 = vmul.f32 %v4040, 1.442695
          %v4059 = vpow.pop %v4058
          %v4060 = vmul.f32 %v4041, 1.442695
          %v4061 = vpow.pop %v4060
          %v4062 = vmul.f32 %v4042, 1.442695
          %v4063 = vpow.pop %v4062
          %v4064 = vmul.f32 %v4043, 1.442695
          %v4065 = vpow.pop %v4064
          %v4066 = vmul.f32 %v4044, 1.442695
          %v4067 = vpow.pop %v4066
          %v4068 = vmul.f32 %v4045, 1.442695
          %v4069 = vpow.pop %v4068
          %v4070 = vmul.f32 %v4046, 1.442695
          %v4071 = vpow.pop %v4070
          %v4072 = vmul.f32 %v4047, 1.442695
          %v4073 = vpow.pop %v4072
          %v4074 = vmul.f32 %v4048, 1.442695
          %v4075 = vpow.pop %v4074
          %v4076 = vmul.f32 %v4049, 1.442695
          %v4077 = vpow.pop %v4076
          %v4078 = vmul.f32 %v4050, 1.442695
          %v4079 = vpow.pop %v4078
          %v4080 = vmul.f32 %v4051, 1.442695
          %v4081 = vpow.pop %v4080
          %v4082 = vmul.f32 %v4052, 1.442695
          %v4083 = vpow.pop %v4082
          %v4084 = vmul.f32 %v4053, 1.442695
          %v4085 = vpow.pop %v4084
          %v4086 = vsel %vm3989, %v4055, 0.0
          %4087 = vadd.xlane.f32.xlu0 %v4086
          %v4088 = vpop.xlane.xlu0 %4087
          %v4089 = vsel %vm3989, %v4057, 0.0
          %4090 = vadd.xlane.f32.xlu0 %v4089
          %v4091 = vpop.xlane.xlu0 %4090
          %v4092 = vsel %vm3989, %v4059, 0.0
          %4093 = vadd.xlane.f32.xlu0 %v4092
          %v4094 = vpop.xlane.xlu0 %4093
          %v4095 = vsel %vm3989, %v4061, 0.0
          %4096 = vadd.xlane.f32.xlu0 %v4095
          %v4097 = vpop.xlane.xlu0 %4096
          %v4098 = vsel %vm3989, %v4063, 0.0
          %4099 = vadd.xlane.f32.xlu0 %v4098
          %v4100 = vpop.xlane.xlu0 %4099
          %v4101 = vsel %vm3989, %v4065, 0.0
          %4102 = vadd.xlane.f32.xlu0 %v4101
          %v4103 = vpop.xlane.xlu0 %4102
          %v4104 = vsel %vm3989, %v4067, 0.0
          %4105 = vadd.xlane.f32.xlu0 %v4104
          %v4106 = vpop.xlane.xlu0 %4105
          %v4107 = vsel %vm3989, %v4069, 0.0
          %4108 = vadd.xlane.f32.xlu0 %v4107
          %v4109 = vpop.xlane.xlu0 %4108
          %v4110 = vsel %vm3989, %v4071, 0.0
          %4111 = vadd.xlane.f32.xlu0 %v4110
          %v4112 = vpop.xlane.xlu0 %4111
          %v4113 = vsel %vm3989, %v4073, 0.0
          %4114 = vadd.xlane.f32.xlu0 %v4113
          %v4115 = vpop.xlane.xlu0 %4114
          %v4116 = vsel %vm3989, %v4075, 0.0
          %4117 = vadd.xlane.f32.xlu0 %v4116
          %v4118 = vpop.xlane.xlu0 %4117
          %v4119 = vsel %vm3989, %v4077, 0.0
          %4120 = vadd.xlane.f32.xlu0 %v4119
          %v4121 = vpop.xlane.xlu0 %4120
          %v4122 = vsel %vm3989, %v4079, 0.0
          %4123 = vadd.xlane.f32.xlu0 %v4122
          %v4124 = vpop.xlane.xlu0 %4123
          %v4125 = vsel %vm3989, %v4081, 0.0
          %4126 = vadd.xlane.f32.xlu0 %v4125
          %v4127 = vpop.xlane.xlu0 %4126
          %v4128 = vsel %vm3989, %v4083, 0.0
          %4129 = vadd.xlane.f32.xlu0 %v4128
          %v4130 = vpop.xlane.xlu0 %4129
          %v4131 = vsel %vm3989, %v4085, 0.0
          %4132 = vadd.xlane.f32.xlu0 %v4131
          %v4133 = vpop.xlane.xlu0 %4132
          %v4134 = vrcp.pop %v4088
          %v4135 = vrcp.pop %v4091
          %v4136 = vrcp.pop %v4094
          %v4137 = vrcp.pop %v4097
          %v4138 = vrcp.pop %v4100
          %v4139 = vrcp.pop %v4103
          %v4140 = vrcp.pop %v4106
          %v4141 = vrcp.pop %v4109
          %v4142 = vrcp.pop %v4112
          %v4143 = vrcp.pop %v4115
          %v4144 = vrcp.pop %v4118
          %v4145 = vrcp.pop %v4121
          %v4146 = vrcp.pop %v4124
          %v4147 = vrcp.pop %v4127
          %v4148 = vrcp.pop %v4130
          %v4149 = vrcp.pop %v4133
          %v4150 = vmul.f32 %v4055, %v4134
          %v4151 = vmul.f32 %v4057, %v4135
          %v4152 = vmul.f32 %v4059, %v4136
          %v4153 = vmul.f32 %v4061, %v4137
          %v4154 = vmul.f32 %v4063, %v4138
          %v4155 = vmul.f32 %v4065, %v4139
          %v4156 = vmul.f32 %v4067, %v4140
          %v4157 = vmul.f32 %v4069, %v4141
          %v4158 = vmul.f32 %v4071, %v4142
          %v4159 = vmul.f32 %v4073, %v4143
          %v4160 = vmul.f32 %v4075, %v4144
          %v4161 = vmul.f32 %v4077, %v4145
          %v4162 = vmul.f32 %v4079, %v4146
          %v4163 = vmul.f32 %v4081, %v4147
          %v4164 = vmul.f32 %v4083, %v4148
          %v4165 = vmul.f32 %v4085, %v4149
          %v4166 = vpack.c.bf16 %v4150, %v4150
          %v4167 = vpack.c.bf16 %v4151, %v4151
          %v4168 = vpack.c.bf16 %v4152, %v4152
          %v4169 = vpack.c.bf16 %v4153, %v4153
          %v4170 = vpack.c.bf16 %v4154, %v4154
          %v4171 = vpack.c.bf16 %v4155, %v4155
          %v4172 = vpack.c.bf16 %v4156, %v4156
          %v4173 = vpack.c.bf16 %v4157, %v4157
          %v4174 = vpack.c.bf16 %v4158, %v4158
          %v4175 = vpack.c.bf16 %v4159, %v4159
          %v4176 = vpack.c.bf16 %v4160, %v4160
          %v4177 = vpack.c.bf16 %v4161, %v4161
          %v4178 = vpack.c.bf16 %v4162, %v4162
          %v4179 = vpack.c.bf16 %v4163, %v4163
          %v4180 = vpack.c.bf16 %v4164, %v4164
          %v4181 = vpack.c.bf16 %v4165, %v4165
          %vm4182 = vcmask 31744
          %v4184 = vsel %vm4182, %v4166, 0
          %vm4186 = vcmask 1041408
          %v4188 = vsel %vm4186, %v3206, 0
          %4190 = vmatprep.subr.bf16.mxu0 0
          %4191 = vmatpush1.bf16.msra.mxu0 0
          %4192 = vmatprep.subr.bf16.mxu0 0
          %4193 = vmatpush1.bf16.msra.mxu0 0
          %4194 = vmatprep.subr.bf16.mxu0 0
          %4195 = vmatpush1.bf16.msra.mxu0 0
          %4196 = vmatprep.subr.bf16.mxu0 0
          %4197 = vmatpush1.bf16.msra.mxu0 0
          %4198 = vmatprep.subr.bf16.mxu0 0
          %4199 = vmatpush1.bf16.msra.mxu0 0
          %4200 = vmatprep.subr.bf16.mxu0 0
          %4201 = vmatpush1.bf16.msra.mxu0 0
          %4202 = vmatprep.subr.bf16.mxu0 0
          %4203 = vmatpush1.bf16.msra.mxu0 0
          %4204 = vmatprep.subr.bf16.mxu0 0
          %4205 = vmatpush1.bf16.msra.mxu0 %v4188
          %4206 = vmatprep.subr.bf16.mxu0 0
          %4207 = vmatpush2.bf16.msra.mxu0 0
          %4208 = vmatprep.subr.bf16.mxu0 0
          %4209 = vmatpush2.bf16.msra.mxu0 0
          %4210 = vmatprep.subr.bf16.mxu0 0
          %4211 = vmatpush2.bf16.msra.mxu0 0
          %4212 = vmatprep.subr.bf16.mxu0 0
          %4213 = vmatpush2.bf16.msra.mxu0 0
          %4214 = vmatprep.subr.bf16.mxu0 0
          %4215 = vmatpush2.bf16.msra.mxu0 0
          %4216 = vmatprep.subr.bf16.mxu0 0
          %4217 = vmatpush2.bf16.msra.mxu0 0
          %4218 = vmatprep.subr.bf16.mxu0 0
          %4219 = vmatpush2.bf16.msra.mxu0 0
          %4220 = vmatprep.subr.bf16.mxu0 0
          %4221 = vmatpush2.bf16.msra.mxu0 0
          %4222 = vmatprep.mubr.bf16.mxu0 0
          %4223 = vmatmul.mubr.bf16.gmra.mxu0 %v4184
          %v4224 = vpop.f32.mrf.mxu0
          %v4225 = vadd.f32 0.0, %v4224
          %v4226 = vpop.f32.mrf.mxu0
          %v4227 = vpop.f32.mrf.mxu0
          %v4228 = vpop.f32.mrf.mxu0
          %4229 = vdwg.mxu0
          %v4231 = vsel %vm4182, %v4167, 0
          %v4234 = vsel %vm4186, %v3218, 0
          %4236 = vmatprep.subr.bf16.mxu0 0
          %4237 = vmatpush1.bf16.msra.mxu0 0
          %4238 = vmatprep.subr.bf16.mxu0 0
          %4239 = vmatpush1.bf16.msra.mxu0 0
          %4240 = vmatprep.subr.bf16.mxu0 0
          %4241 = vmatpush1.bf16.msra.mxu0 0
          %4242 = vmatprep.subr.bf16.mxu0 0
          %4243 = vmatpush1.bf16.msra.mxu0 0
          %4244 = vmatprep.subr.bf16.mxu0 0
          %4245 = vmatpush1.bf16.msra.mxu0 0
          %4246 = vmatprep.subr.bf16.mxu0 0
          %4247 = vmatpush1.bf16.msra.mxu0 0
          %4248 = vmatprep.subr.bf16.mxu0 0
          %4249 = vmatpush1.bf16.msra.mxu0 0
          %4250 = vmatprep.subr.bf16.mxu0 0
          %4251 = vmatpush1.bf16.msra.mxu0 %v4234
          %4252 = vmatprep.subr.bf16.mxu0 0
          %4253 = vmatpush2.bf16.msra.mxu0 0
          %4254 = vmatprep.subr.bf16.mxu0 0
          %4255 = vmatpush2.bf16.msra.mxu0 0
          %4256 = vmatprep.subr.bf16.mxu0 0
          %4257 = vmatpush2.bf16.msra.mxu0 0
          %4258 = vmatprep.subr.bf16.mxu0 0
          %4259 = vmatpush2.bf16.msra.mxu0 0
          %4260 = vmatprep.subr.bf16.mxu0 0
          %4261 = vmatpush2.bf16.msra.mxu0 0
          %4262 = vmatprep.subr.bf16.mxu0 0
          %4263 = vmatpush2.bf16.msra.mxu0 0
          %4264 = vmatprep.subr.bf16.mxu0 0
          %4265 = vmatpush2.bf16.msra.mxu0 0
          %4266 = vmatprep.subr.bf16.mxu0 0
          %4267 = vmatpush2.bf16.msra.mxu0 0
          %4268 = vmatprep.mubr.bf16.mxu0 0
          %4269 = vmatmul.mubr.bf16.gmra.mxu0 %v4231
          %v4270 = vpop.f32.mrf.mxu0
          %v4271 = vadd.f32 0.0, %v4270
          %v4272 = vpop.f32.mrf.mxu0
          %v4273 = vpop.f32.mrf.mxu0
          %v4274 = vpop.f32.mrf.mxu0
          %4275 = vdwg.mxu0
          %v4277 = vsel %vm4182, %v4168, 0
          %v4280 = vsel %vm4186, %v3230, 0
          %4282 = vmatprep.subr.bf16.mxu0 0
          %4283 = vmatpush1.bf16.msra.mxu0 0
          %4284 = vmatprep.subr.bf16.mxu0 0
          %4285 = vmatpush1.bf16.msra.mxu0 0
          %4286 = vmatprep.subr.bf16.mxu0 0
          %4287 = vmatpush1.bf16.msra.mxu0 0
          %4288 = vmatprep.subr.bf16.mxu0 0
          %4289 = vmatpush1.bf16.msra.mxu0 0
          %4290 = vmatprep.subr.bf16.mxu0 0
          %4291 = vmatpush1.bf16.msra.mxu0 0
          %4292 = vmatprep.subr.bf16.mxu0 0
          %4293 = vmatpush1.bf16.msra.mxu0 0
          %4294 = vmatprep.subr.bf16.mxu0 0
          %4295 = vmatpush1.bf16.msra.mxu0 0
          %4296 = vmatprep.subr.bf16.mxu0 0
          %4297 = vmatpush1.bf16.msra.mxu0 %v4280
          %4298 = vmatprep.subr.bf16.mxu0 0
          %4299 = vmatpush2.bf16.msra.mxu0 0
          %4300 = vmatprep.subr.bf16.mxu0 0
          %4301 = vmatpush2.bf16.msra.mxu0 0
          %4302 = vmatprep.subr.bf16.mxu0 0
          %4303 = vmatpush2.bf16.msra.mxu0 0
          %4304 = vmatprep.subr.bf16.mxu0 0
          %4305 = vmatpush2.bf16.msra.mxu0 0
          %4306 = vmatprep.subr.bf16.mxu0 0
          %4307 = vmatpush2.bf16.msra.mxu0 0
          %4308 = vmatprep.subr.bf16.mxu0 0
          %4309 = vmatpush2.bf16.msra.mxu0 0
          %4310 = vmatprep.subr.bf16.mxu0 0
          %4311 = vmatpush2.bf16.msra.mxu0 0
          %4312 = vmatprep.subr.bf16.mxu0 0
          %4313 = vmatpush2.bf16.msra.mxu0 0
          %4314 = vmatprep.mubr.bf16.mxu0 0
          %4315 = vmatmul.mubr.bf16.gmra.mxu0 %v4277
          %v4316 = vpop.f32.mrf.mxu0
          %v4317 = vadd.f32 0.0, %v4316
          %v4318 = vpop.f32.mrf.mxu0
          %v4319 = vpop.f32.mrf.mxu0
          %v4320 = vpop.f32.mrf.mxu0
          %4321 = vdwg.mxu0
          %v4323 = vsel %vm4182, %v4169, 0
          %v4326 = vsel %vm4186, %v3242, 0
          %4328 = vmatprep.subr.bf16.mxu0 0
          %4329 = vmatpush1.bf16.msra.mxu0 0
          %4330 = vmatprep.subr.bf16.mxu0 0
          %4331 = vmatpush1.bf16.msra.mxu0 0
          %4332 = vmatprep.subr.bf16.mxu0 0
          %4333 = vmatpush1.bf16.msra.mxu0 0
          %4334 = vmatprep.subr.bf16.mxu0 0
          %4335 = vmatpush1.bf16.msra.mxu0 0
          %4336 = vmatprep.subr.bf16.mxu0 0
          %4337 = vmatpush1.bf16.msra.mxu0 0
          %4338 = vmatprep.subr.bf16.mxu0 0
          %4339 = vmatpush1.bf16.msra.mxu0 0
          %4340 = vmatprep.subr.bf16.mxu0 0
          %4341 = vmatpush1.bf16.msra.mxu0 0
          %4342 = vmatprep.subr.bf16.mxu0 0
          %4343 = vmatpush1.bf16.msra.mxu0 %v4326
          %4344 = vmatprep.subr.bf16.mxu0 0
          %4345 = vmatpush2.bf16.msra.mxu0 0
          %4346 = vmatprep.subr.bf16.mxu0 0
          %4347 = vmatpush2.bf16.msra.mxu0 0
          %4348 = vmatprep.subr.bf16.mxu0 0
          %4349 = vmatpush2.bf16.msra.mxu0 0
          %4350 = vmatprep.subr.bf16.mxu0 0
          %4351 = vmatpush2.bf16.msra.mxu0 0
          %4352 = vmatprep.subr.bf16.mxu0 0
          %4353 = vmatpush2.bf16.msra.mxu0 0
          %4354 = vmatprep.subr.bf16.mxu0 0
          %4355 = vmatpush2.bf16.msra.mxu0 0
          %4356 = vmatprep.subr.bf16.mxu0 0
          %4357 = vmatpush2.bf16.msra.mxu0 0
          %4358 = vmatprep.subr.bf16.mxu0 0
          %4359 = vmatpush2.bf16.msra.mxu0 0
          %4360 = vmatprep.mubr.bf16.mxu0 0
          %4361 = vmatmul.mubr.bf16.gmra.mxu0 %v4323
          %v4362 = vpop.f32.mrf.mxu0
          %v4363 = vadd.f32 0.0, %v4362
          %v4364 = vpop.f32.mrf.mxu0
          %v4365 = vpop.f32.mrf.mxu0
          %v4366 = vpop.f32.mrf.mxu0
          %4367 = vdwg.mxu0
          %v4369 = vsel %vm4182, %v4170, 0
          %v4372 = vsel %vm4186, %v3209, 0
          %4374 = vmatprep.subr.bf16.mxu0 0
          %4375 = vmatpush1.bf16.msra.mxu0 0
          %4376 = vmatprep.subr.bf16.mxu0 0
          %4377 = vmatpush1.bf16.msra.mxu0 0
          %4378 = vmatprep.subr.bf16.mxu0 0
          %4379 = vmatpush1.bf16.msra.mxu0 0
          %4380 = vmatprep.subr.bf16.mxu0 0
          %4381 = vmatpush1.bf16.msra.mxu0 0
          %4382 = vmatprep.subr.bf16.mxu0 0
          %4383 = vmatpush1.bf16.msra.mxu0 0
          %4384 = vmatprep.subr.bf16.mxu0 0
          %4385 = vmatpush1.bf16.msra.mxu0 0
          %4386 = vmatprep.subr.bf16.mxu0 0
          %4387 = vmatpush1.bf16.msra.mxu0 0
          %4388 = vmatprep.subr.bf16.mxu0 0
          %4389 = vmatpush1.bf16.msra.mxu0 %v4372
          %4390 = vmatprep.subr.bf16.mxu0 0
          %4391 = vmatpush2.bf16.msra.mxu0 0
          %4392 = vmatprep.subr.bf16.mxu0 0
          %4393 = vmatpush2.bf16.msra.mxu0 0
          %4394 = vmatprep.subr.bf16.mxu0 0
          %4395 = vmatpush2.bf16.msra.mxu0 0
          %4396 = vmatprep.subr.bf16.mxu0 0
          %4397 = vmatpush2.bf16.msra.mxu0 0
          %4398 = vmatprep.subr.bf16.mxu0 0
          %4399 = vmatpush2.bf16.msra.mxu0 0
          %4400 = vmatprep.subr.bf16.mxu0 0
          %4401 = vmatpush2.bf16.msra.mxu0 0
          %4402 = vmatprep.subr.bf16.mxu0 0
          %4403 = vmatpush2.bf16.msra.mxu0 0
          %4404 = vmatprep.subr.bf16.mxu0 0
          %4405 = vmatpush2.bf16.msra.mxu0 0
          %4406 = vmatprep.mubr.bf16.mxu0 0
          %4407 = vmatmul.mubr.bf16.gmra.mxu0 %v4369
          %v4408 = vpop.f32.mrf.mxu0
          %v4409 = vadd.f32 0.0, %v4408
          %v4410 = vpop.f32.mrf.mxu0
          %v4411 = vpop.f32.mrf.mxu0
          %v4412 = vpop.f32.mrf.mxu0
          %4413 = vdwg.mxu0
          %v4415 = vsel %vm4182, %v4171, 0
          %v4418 = vsel %vm4186, %v3221, 0
          %4420 = vmatprep.subr.bf16.mxu0 0
          %4421 = vmatpush1.bf16.msra.mxu0 0
          %4422 = vmatprep.subr.bf16.mxu0 0
          %4423 = vmatpush1.bf16.msra.mxu0 0
          %4424 = vmatprep.subr.bf16.mxu0 0
          %4425 = vmatpush1.bf16.msra.mxu0 0
          %4426 = vmatprep.subr.bf16.mxu0 0
          %4427 = vmatpush1.bf16.msra.mxu0 0
          %4428 = vmatprep.subr.bf16.mxu0 0
          %4429 = vmatpush1.bf16.msra.mxu0 0
          %4430 = vmatprep.subr.bf16.mxu0 0
          %4431 = vmatpush1.bf16.msra.mxu0 0
          %4432 = vmatprep.subr.bf16.mxu0 0
          %4433 = vmatpush1.bf16.msra.mxu0 0
          %4434 = vmatprep.subr.bf16.mxu0 0
          %4435 = vmatpush1.bf16.msra.mxu0 %v4418
          %4436 = vmatprep.subr.bf16.mxu0 0
          %4437 = vmatpush2.bf16.msra.mxu0 0
          %4438 = vmatprep.subr.bf16.mxu0 0
          %4439 = vmatpush2.bf16.msra.mxu0 0
          %4440 = vmatprep.subr.bf16.mxu0 0
          %4441 = vmatpush2.bf16.msra.mxu0 0
          %4442 = vmatprep.subr.bf16.mxu0 0
          %4443 = vmatpush2.bf16.msra.mxu0 0
          %4444 = vmatprep.subr.bf16.mxu0 0
          %4445 = vmatpush2.bf16.msra.mxu0 0
          %4446 = vmatprep.subr.bf16.mxu0 0
          %4447 = vmatpush2.bf16.msra.mxu0 0
          %4448 = vmatprep.subr.bf16.mxu0 0
          %4449 = vmatpush2.bf16.msra.mxu0 0
          %4450 = vmatprep.subr.bf16.mxu0 0
          %4451 = vmatpush2.bf16.msra.mxu0 0
          %4452 = vmatprep.mubr.bf16.mxu0 0
          %4453 = vmatmul.mubr.bf16.gmra.mxu0 %v4415
          %v4454 = vpop.f32.mrf.mxu0
          %v4455 = vadd.f32 0.0, %v4454
          %v4456 = vpop.f32.mrf.mxu0
          %v4457 = vpop.f32.mrf.mxu0
          %v4458 = vpop.f32.mrf.mxu0
          %4459 = vdwg.mxu0
          %v4461 = vsel %vm4182, %v4172, 0
          %v4464 = vsel %vm4186, %v3233, 0
          %4466 = vmatprep.subr.bf16.mxu0 0
          %4467 = vmatpush1.bf16.msra.mxu0 0
          %4468 = vmatprep.subr.bf16.mxu0 0
          %4469 = vmatpush1.bf16.msra.mxu0 0
          %4470 = vmatprep.subr.bf16.mxu0 0
          %4471 = vmatpush1.bf16.msra.mxu0 0
          %4472 = vmatprep.subr.bf16.mxu0 0
          %4473 = vmatpush1.bf16.msra.mxu0 0
          %4474 = vmatprep.subr.bf16.mxu0 0
          %4475 = vmatpush1.bf16.msra.mxu0 0
          %4476 = vmatprep.subr.bf16.mxu0 0
          %4477 = vmatpush1.bf16.msra.mxu0 0
          %4478 = vmatprep.subr.bf16.mxu0 0
          %4479 = vmatpush1.bf16.msra.mxu0 0
          %4480 = vmatprep.subr.bf16.mxu0 0
          %4481 = vmatpush1.bf16.msra.mxu0 %v4464
          %4482 = vmatprep.subr.bf16.mxu0 0
          %4483 = vmatpush2.bf16.msra.mxu0 0
          %4484 = vmatprep.subr.bf16.mxu0 0
          %4485 = vmatpush2.bf16.msra.mxu0 0
          %4486 = vmatprep.subr.bf16.mxu0 0
          %4487 = vmatpush2.bf16.msra.mxu0 0
          %4488 = vmatprep.subr.bf16.mxu0 0
          %4489 = vmatpush2.bf16.msra.mxu0 0
          %4490 = vmatprep.subr.bf16.mxu0 0
          %4491 = vmatpush2.bf16.msra.mxu0 0
          %4492 = vmatprep.subr.bf16.mxu0 0
          %4493 = vmatpush2.bf16.msra.mxu0 0
          %4494 = vmatprep.subr.bf16.mxu0 0
          %4495 = vmatpush2.bf16.msra.mxu0 0
          %4496 = vmatprep.subr.bf16.mxu0 0
          %4497 = vmatpush2.bf16.msra.mxu0 0
          %4498 = vmatprep.mubr.bf16.mxu0 0
          %4499 = vmatmul.mubr.bf16.gmra.mxu0 %v4461
          %v4500 = vpop.f32.mrf.mxu0
          %v4501 = vadd.f32 0.0, %v4500
          %v4502 = vpop.f32.mrf.mxu0
          %v4503 = vpop.f32.mrf.mxu0
          %v4504 = vpop.f32.mrf.mxu0
          %4505 = vdwg.mxu0
          %v4507 = vsel %vm4182, %v4173, 0
          %v4510 = vsel %vm4186, %v3245, 0
          %4512 = vmatprep.subr.bf16.mxu0 0
          %4513 = vmatpush1.bf16.msra.mxu0 0
          %4514 = vmatprep.subr.bf16.mxu0 0
          %4515 = vmatpush1.bf16.msra.mxu0 0
          %4516 = vmatprep.subr.bf16.mxu0 0
          %4517 = vmatpush1.bf16.msra.mxu0 0
          %4518 = vmatprep.subr.bf16.mxu0 0
          %4519 = vmatpush1.bf16.msra.mxu0 0
          %4520 = vmatprep.subr.bf16.mxu0 0
          %4521 = vmatpush1.bf16.msra.mxu0 0
          %4522 = vmatprep.subr.bf16.mxu0 0
          %4523 = vmatpush1.bf16.msra.mxu0 0
          %4524 = vmatprep.subr.bf16.mxu0 0
          %4525 = vmatpush1.bf16.msra.mxu0 0
          %4526 = vmatprep.subr.bf16.mxu0 0
          %4527 = vmatpush1.bf16.msra.mxu0 %v4510
          %4528 = vmatprep.subr.bf16.mxu0 0
          %4529 = vmatpush2.bf16.msra.mxu0 0
          %4530 = vmatprep.subr.bf16.mxu0 0
          %4531 = vmatpush2.bf16.msra.mxu0 0
          %4532 = vmatprep.subr.bf16.mxu0 0
          %4533 = vmatpush2.bf16.msra.mxu0 0
          %4534 = vmatprep.subr.bf16.mxu0 0
          %4535 = vmatpush2.bf16.msra.mxu0 0
          %4536 = vmatprep.subr.bf16.mxu0 0
          %4537 = vmatpush2.bf16.msra.mxu0 0
          %4538 = vmatprep.subr.bf16.mxu0 0
          %4539 = vmatpush2.bf16.msra.mxu0 0
          %4540 = vmatprep.subr.bf16.mxu0 0
          %4541 = vmatpush2.bf16.msra.mxu0 0
          %4542 = vmatprep.subr.bf16.mxu0 0
          %4543 = vmatpush2.bf16.msra.mxu0 0
          %4544 = vmatprep.mubr.bf16.mxu0 0
          %4545 = vmatmul.mubr.bf16.gmra.mxu0 %v4507
          %v4546 = vpop.f32.mrf.mxu0
          %v4547 = vadd.f32 0.0, %v4546
          %v4548 = vpop.f32.mrf.mxu0
          %v4549 = vpop.f32.mrf.mxu0
          %v4550 = vpop.f32.mrf.mxu0
          %4551 = vdwg.mxu0
          %v4553 = vsel %vm4182, %v4174, 0
          %v4556 = vsel %vm4186, %v3212, 0
          %4558 = vmatprep.subr.bf16.mxu0 0
          %4559 = vmatpush1.bf16.msra.mxu0 0
          %4560 = vmatprep.subr.bf16.mxu0 0
          %4561 = vmatpush1.bf16.msra.mxu0 0
          %4562 = vmatprep.subr.bf16.mxu0 0
          %4563 = vmatpush1.bf16.msra.mxu0 0
          %4564 = vmatprep.subr.bf16.mxu0 0
          %4565 = vmatpush1.bf16.msra.mxu0 0
          %4566 = vmatprep.subr.bf16.mxu0 0
          %4567 = vmatpush1.bf16.msra.mxu0 0
          %4568 = vmatprep.subr.bf16.mxu0 0
          %4569 = vmatpush1.bf16.msra.mxu0 0
          %4570 = vmatprep.subr.bf16.mxu0 0
          %4571 = vmatpush1.bf16.msra.mxu0 0
          %4572 = vmatprep.subr.bf16.mxu0 0
          %4573 = vmatpush1.bf16.msra.mxu0 %v4556
          %4574 = vmatprep.subr.bf16.mxu0 0
          %4575 = vmatpush2.bf16.msra.mxu0 0
          %4576 = vmatprep.subr.bf16.mxu0 0
          %4577 = vmatpush2.bf16.msra.mxu0 0
          %4578 = vmatprep.subr.bf16.mxu0 0
          %4579 = vmatpush2.bf16.msra.mxu0 0
          %4580 = vmatprep.subr.bf16.mxu0 0
          %4581 = vmatpush2.bf16.msra.mxu0 0
          %4582 = vmatprep.subr.bf16.mxu0 0
          %4583 = vmatpush2.bf16.msra.mxu0 0
          %4584 = vmatprep.subr.bf16.mxu0 0
          %4585 = vmatpush2.bf16.msra.mxu0 0
          %4586 = vmatprep.subr.bf16.mxu0 0
          %4587 = vmatpush2.bf16.msra.mxu0 0
          %4588 = vmatprep.subr.bf16.mxu0 0
          %4589 = vmatpush2.bf16.msra.mxu0 0
          %4590 = vmatprep.mubr.bf16.mxu0 0
          %4591 = vmatmul.mubr.bf16.gmra.mxu0 %v4553
          %v4592 = vpop.f32.mrf.mxu0
          %v4593 = vadd.f32 0.0, %v4592
          %v4594 = vpop.f32.mrf.mxu0
          %v4595 = vpop.f32.mrf.mxu0
          %v4596 = vpop.f32.mrf.mxu0
          %4597 = vdwg.mxu0
          %v4599 = vsel %vm4182, %v4175, 0
          %v4602 = vsel %vm4186, %v3224, 0
          %4604 = vmatprep.subr.bf16.mxu0 0
          %4605 = vmatpush1.bf16.msra.mxu0 0
          %4606 = vmatprep.subr.bf16.mxu0 0
          %4607 = vmatpush1.bf16.msra.mxu0 0
          %4608 = vmatprep.subr.bf16.mxu0 0
          %4609 = vmatpush1.bf16.msra.mxu0 0
          %4610 = vmatprep.subr.bf16.mxu0 0
          %4611 = vmatpush1.bf16.msra.mxu0 0
          %4612 = vmatprep.subr.bf16.mxu0 0
          %4613 = vmatpush1.bf16.msra.mxu0 0
          %4614 = vmatprep.subr.bf16.mxu0 0
          %4615 = vmatpush1.bf16.msra.mxu0 0
          %4616 = vmatprep.subr.bf16.mxu0 0
          %4617 = vmatpush1.bf16.msra.mxu0 0
          %4618 = vmatprep.subr.bf16.mxu0 0
          %4619 = vmatpush1.bf16.msra.mxu0 %v4602
          %4620 = vmatprep.subr.bf16.mxu0 0
          %4621 = vmatpush2.bf16.msra.mxu0 0
          %4622 = vmatprep.subr.bf16.mxu0 0
          %4623 = vmatpush2.bf16.msra.mxu0 0
          %4624 = vmatprep.subr.bf16.mxu0 0
          %4625 = vmatpush2.bf16.msra.mxu0 0
          %4626 = vmatprep.subr.bf16.mxu0 0
          %4627 = vmatpush2.bf16.msra.mxu0 0
          %4628 = vmatprep.subr.bf16.mxu0 0
          %4629 = vmatpush2.bf16.msra.mxu0 0
          %4630 = vmatprep.subr.bf16.mxu0 0
          %4631 = vmatpush2.bf16.msra.mxu0 0
          %4632 = vmatprep.subr.bf16.mxu0 0
          %4633 = vmatpush2.bf16.msra.mxu0 0
          %4634 = vmatprep.subr.bf16.mxu0 0
          %4635 = vmatpush2.bf16.msra.mxu0 0
          %4636 = vmatprep.mubr.bf16.mxu0 0
          %4637 = vmatmul.mubr.bf16.gmra.mxu0 %v4599
          %v4638 = vpop.f32.mrf.mxu0
          %v4639 = vadd.f32 0.0, %v4638
          %v4640 = vpop.f32.mrf.mxu0
          %v4641 = vpop.f32.mrf.mxu0
          %v4642 = vpop.f32.mrf.mxu0
          %4643 = vdwg.mxu0
          %v4645 = vsel %vm4182, %v4176, 0
          %v4648 = vsel %vm4186, %v3236, 0
          %4650 = vmatprep.subr.bf16.mxu0 0
          %4651 = vmatpush1.bf16.msra.mxu0 0
          %4652 = vmatprep.subr.bf16.mxu0 0
          %4653 = vmatpush1.bf16.msra.mxu0 0
          %4654 = vmatprep.subr.bf16.mxu0 0
          %4655 = vmatpush1.bf16.msra.mxu0 0
          %4656 = vmatprep.subr.bf16.mxu0 0
          %4657 = vmatpush1.bf16.msra.mxu0 0
          %4658 = vmatprep.subr.bf16.mxu0 0
          %4659 = vmatpush1.bf16.msra.mxu0 0
          %4660 = vmatprep.subr.bf16.mxu0 0
          %4661 = vmatpush1.bf16.msra.mxu0 0
          %4662 = vmatprep.subr.bf16.mxu0 0
          %4663 = vmatpush1.bf16.msra.mxu0 0
          %4664 = vmatprep.subr.bf16.mxu0 0
          %4665 = vmatpush1.bf16.msra.mxu0 %v4648
          %4666 = vmatprep.subr.bf16.mxu0 0
          %4667 = vmatpush2.bf16.msra.mxu0 0
          %4668 = vmatprep.subr.bf16.mxu0 0
          %4669 = vmatpush2.bf16.msra.mxu0 0
          %4670 = vmatprep.subr.bf16.mxu0 0
          %4671 = vmatpush2.bf16.msra.mxu0 0
          %4672 = vmatprep.subr.bf16.mxu0 0
          %4673 = vmatpush2.bf16.msra.mxu0 0
          %4674 = vmatprep.subr.bf16.mxu0 0
          %4675 = vmatpush2.bf16.msra.mxu0 0
          %4676 = vmatprep.subr.bf16.mxu0 0
          %4677 = vmatpush2.bf16.msra.mxu0 0
          %4678 = vmatprep.subr.bf16.mxu0 0
          %4679 = vmatpush2.bf16.msra.mxu0 0
          %4680 = vmatprep.subr.bf16.mxu0 0
          %4681 = vmatpush2.bf16.msra.mxu0 0
          %4682 = vmatprep.mubr.bf16.mxu0 0
          %4683 = vmatmul.mubr.bf16.gmra.mxu0 %v4645
          %v4684 = vpop.f32.mrf.mxu0
          %v4685 = vadd.f32 0.0, %v4684
          %v4686 = vpop.f32.mrf.mxu0
          %v4687 = vpop.f32.mrf.mxu0
          %v4688 = vpop.f32.mrf.mxu0
          %4689 = vdwg.mxu0
          %v4691 = vsel %vm4182, %v4177, 0
          %v4694 = vsel %vm4186, %v3248, 0
          %4696 = vmatprep.subr.bf16.mxu0 0
          %4697 = vmatpush1.bf16.msra.mxu0 0
          %4698 = vmatprep.subr.bf16.mxu0 0
          %4699 = vmatpush1.bf16.msra.mxu0 0
          %4700 = vmatprep.subr.bf16.mxu0 0
          %4701 = vmatpush1.bf16.msra.mxu0 0
          %4702 = vmatprep.subr.bf16.mxu0 0
          %4703 = vmatpush1.bf16.msra.mxu0 0
          %4704 = vmatprep.subr.bf16.mxu0 0
          %4705 = vmatpush1.bf16.msra.mxu0 0
          %4706 = vmatprep.subr.bf16.mxu0 0
          %4707 = vmatpush1.bf16.msra.mxu0 0
          %4708 = vmatprep.subr.bf16.mxu0 0
          %4709 = vmatpush1.bf16.msra.mxu0 0
          %4710 = vmatprep.subr.bf16.mxu0 0
          %4711 = vmatpush1.bf16.msra.mxu0 %v4694
          %4712 = vmatprep.subr.bf16.mxu0 0
          %4713 = vmatpush2.bf16.msra.mxu0 0
          %4714 = vmatprep.subr.bf16.mxu0 0
          %4715 = vmatpush2.bf16.msra.mxu0 0
          %4716 = vmatprep.subr.bf16.mxu0 0
          %4717 = vmatpush2.bf16.msra.mxu0 0
          %4718 = vmatprep.subr.bf16.mxu0 0
          %4719 = vmatpush2.bf16.msra.mxu0 0
          %4720 = vmatprep.subr.bf16.mxu0 0
          %4721 = vmatpush2.bf16.msra.mxu0 0
          %4722 = vmatprep.subr.bf16.mxu0 0
          %4723 = vmatpush2.bf16.msra.mxu0 0
          %4724 = vmatprep.subr.bf16.mxu0 0
          %4725 = vmatpush2.bf16.msra.mxu0 0
          %4726 = vmatprep.subr.bf16.mxu0 0
          %4727 = vmatpush2.bf16.msra.mxu0 0
          %4728 = vmatprep.mubr.bf16.mxu0 0
          %4729 = vmatmul.mubr.bf16.gmra.mxu0 %v4691
          %v4730 = vpop.f32.mrf.mxu0
          %v4731 = vadd.f32 0.0, %v4730
          %v4732 = vpop.f32.mrf.mxu0
          %v4733 = vpop.f32.mrf.mxu0
          %v4734 = vpop.f32.mrf.mxu0
          %4735 = vdwg.mxu0
          %v4737 = vsel %vm4182, %v4178, 0
          %v4740 = vsel %vm4186, %v3215, 0
          %4742 = vmatprep.subr.bf16.mxu0 0
          %4743 = vmatpush1.bf16.msra.mxu0 0
          %4744 = vmatprep.subr.bf16.mxu0 0
          %4745 = vmatpush1.bf16.msra.mxu0 0
          %4746 = vmatprep.subr.bf16.mxu0 0
          %4747 = vmatpush1.bf16.msra.mxu0 0
          %4748 = vmatprep.subr.bf16.mxu0 0
          %4749 = vmatpush1.bf16.msra.mxu0 0
          %4750 = vmatprep.subr.bf16.mxu0 0
          %4751 = vmatpush1.bf16.msra.mxu0 0
          %4752 = vmatprep.subr.bf16.mxu0 0
          %4753 = vmatpush1.bf16.msra.mxu0 0
          %4754 = vmatprep.subr.bf16.mxu0 0
          %4755 = vmatpush1.bf16.msra.mxu0 0
          %4756 = vmatprep.subr.bf16.mxu0 0
          %4757 = vmatpush1.bf16.msra.mxu0 %v4740
          %4758 = vmatprep.subr.bf16.mxu0 0
          %4759 = vmatpush2.bf16.msra.mxu0 0
          %4760 = vmatprep.subr.bf16.mxu0 0
          %4761 = vmatpush2.bf16.msra.mxu0 0
          %4762 = vmatprep.subr.bf16.mxu0 0
          %4763 = vmatpush2.bf16.msra.mxu0 0
          %4764 = vmatprep.subr.bf16.mxu0 0
          %4765 = vmatpush2.bf16.msra.mxu0 0
          %4766 = vmatprep.subr.bf16.mxu0 0
          %4767 = vmatpush2.bf16.msra.mxu0 0
          %4768 = vmatprep.subr.bf16.mxu0 0
          %4769 = vmatpush2.bf16.msra.mxu0 0
          %4770 = vmatprep.subr.bf16.mxu0 0
          %4771 = vmatpush2.bf16.msra.mxu0 0
          %4772 = vmatprep.subr.bf16.mxu0 0
          %4773 = vmatpush2.bf16.msra.mxu0 0
          %4774 = vmatprep.mubr.bf16.mxu0 0
          %4775 = vmatmul.mubr.bf16.gmra.mxu0 %v4737
          %v4776 = vpop.f32.mrf.mxu0
          %v4777 = vadd.f32 0.0, %v4776
          %v4778 = vpop.f32.mrf.mxu0
          %v4779 = vpop.f32.mrf.mxu0
          %v4780 = vpop.f32.mrf.mxu0
          %4781 = vdwg.mxu0
          %v4783 = vsel %vm4182, %v4179, 0
          %v4786 = vsel %vm4186, %v3227, 0
          %4788 = vmatprep.subr.bf16.mxu0 0
          %4789 = vmatpush1.bf16.msra.mxu0 0
          %4790 = vmatprep.subr.bf16.mxu0 0
          %4791 = vmatpush1.bf16.msra.mxu0 0
          %4792 = vmatprep.subr.bf16.mxu0 0
          %4793 = vmatpush1.bf16.msra.mxu0 0
          %4794 = vmatprep.subr.bf16.mxu0 0
          %4795 = vmatpush1.bf16.msra.mxu0 0
          %4796 = vmatprep.subr.bf16.mxu0 0
          %4797 = vmatpush1.bf16.msra.mxu0 0
          %4798 = vmatprep.subr.bf16.mxu0 0
          %4799 = vmatpush1.bf16.msra.mxu0 0
          %4800 = vmatprep.subr.bf16.mxu0 0
          %4801 = vmatpush1.bf16.msra.mxu0 0
          %4802 = vmatprep.subr.bf16.mxu0 0
          %4803 = vmatpush1.bf16.msra.mxu0 %v4786
          %4804 = vmatprep.subr.bf16.mxu0 0
          %4805 = vmatpush2.bf16.msra.mxu0 0
          %4806 = vmatprep.subr.bf16.mxu0 0
          %4807 = vmatpush2.bf16.msra.mxu0 0
          %4808 = vmatprep.subr.bf16.mxu0 0
          %4809 = vmatpush2.bf16.msra.mxu0 0
          %4810 = vmatprep.subr.bf16.mxu0 0
          %4811 = vmatpush2.bf16.msra.mxu0 0
          %4812 = vmatprep.subr.bf16.mxu0 0
          %4813 = vmatpush2.bf16.msra.mxu0 0
          %4814 = vmatprep.subr.bf16.mxu0 0
          %4815 = vmatpush2.bf16.msra.mxu0 0
          %4816 = vmatprep.subr.bf16.mxu0 0
          %4817 = vmatpush2.bf16.msra.mxu0 0
          %4818 = vmatprep.subr.bf16.mxu0 0
          %4819 = vmatpush2.bf16.msra.mxu0 0
          %4820 = vmatprep.mubr.bf16.mxu0 0
          %4821 = vmatmul.mubr.bf16.gmra.mxu0 %v4783
          %v4822 = vpop.f32.mrf.mxu0
          %v4823 = vadd.f32 0.0, %v4822
          %v4824 = vpop.f32.mrf.mxu0
          %v4825 = vpop.f32.mrf.mxu0
          %v4826 = vpop.f32.mrf.mxu0
          %4827 = vdwg.mxu0
          %v4829 = vsel %vm4182, %v4180, 0
          %v4832 = vsel %vm4186, %v3239, 0
          %4834 = vmatprep.subr.bf16.mxu0 0
          %4835 = vmatpush1.bf16.msra.mxu0 0
          %4836 = vmatprep.subr.bf16.mxu0 0
          %4837 = vmatpush1.bf16.msra.mxu0 0
          %4838 = vmatprep.subr.bf16.mxu0 0
          %4839 = vmatpush1.bf16.msra.mxu0 0
          %4840 = vmatprep.subr.bf16.mxu0 0
          %4841 = vmatpush1.bf16.msra.mxu0 0
          %4842 = vmatprep.subr.bf16.mxu0 0
          %4843 = vmatpush1.bf16.msra.mxu0 0
          %4844 = vmatprep.subr.bf16.mxu0 0
          %4845 = vmatpush1.bf16.msra.mxu0 0
          %4846 = vmatprep.subr.bf16.mxu0 0
          %4847 = vmatpush1.bf16.msra.mxu0 0
          %4848 = vmatprep.subr.bf16.mxu0 0
          %4849 = vmatpush1.bf16.msra.mxu0 %v4832
          %4850 = vmatprep.subr.bf16.mxu0 0
          %4851 = vmatpush2.bf16.msra.mxu0 0
          %4852 = vmatprep.subr.bf16.mxu0 0
          %4853 = vmatpush2.bf16.msra.mxu0 0
          %4854 = vmatprep.subr.bf16.mxu0 0
          %4855 = vmatpush2.bf16.msra.mxu0 0
          %4856 = vmatprep.subr.bf16.mxu0 0
          %4857 = vmatpush2.bf16.msra.mxu0 0
          %4858 = vmatprep.subr.bf16.mxu0 0
          %4859 = vmatpush2.bf16.msra.mxu0 0
          %4860 = vmatprep.subr.bf16.mxu0 0
          %4861 = vmatpush2.bf16.msra.mxu0 0
          %4862 = vmatprep.subr.bf16.mxu0 0
          %4863 = vmatpush2.bf16.msra.mxu0 0
          %4864 = vmatprep.subr.bf16.mxu0 0
          %4865 = vmatpush2.bf16.msra.mxu0 0
          %4866 = vmatprep.mubr.bf16.mxu0 0
          %4867 = vmatmul.mubr.bf16.gmra.mxu0 %v4829
          %v4868 = vpop.f32.mrf.mxu0
          %v4869 = vadd.f32 0.0, %v4868
          %v4870 = vpop.f32.mrf.mxu0
          %v4871 = vpop.f32.mrf.mxu0
          %v4872 = vpop.f32.mrf.mxu0
          %4873 = vdwg.mxu0
          %v4875 = vsel %vm4182, %v4181, 0
          %v4878 = vsel %vm4186, %v3251, 0
          %4880 = vmatprep.subr.bf16.mxu0 0
          %4881 = vmatpush1.bf16.msra.mxu0 0
          %4882 = vmatprep.subr.bf16.mxu0 0
          %4883 = vmatpush1.bf16.msra.mxu0 0
          %4884 = vmatprep.subr.bf16.mxu0 0
          %4885 = vmatpush1.bf16.msra.mxu0 0
          %4886 = vmatprep.subr.bf16.mxu0 0
          %4887 = vmatpush1.bf16.msra.mxu0 0
          %4888 = vmatprep.subr.bf16.mxu0 0
          %4889 = vmatpush1.bf16.msra.mxu0 0
          %4890 = vmatprep.subr.bf16.mxu0 0
          %4891 = vmatpush1.bf16.msra.mxu0 0
          %4892 = vmatprep.subr.bf16.mxu0 0
          %4893 = vmatpush1.bf16.msra.mxu0 0
          %4894 = vmatprep.subr.bf16.mxu0 0
          %4895 = vmatpush1.bf16.msra.mxu0 %v4878
          %4896 = vmatprep.subr.bf16.mxu0 0
          %4897 = vmatpush2.bf16.msra.mxu0 0
          %4898 = vmatprep.subr.bf16.mxu0 0
          %4899 = vmatpush2.bf16.msra.mxu0 0
          %4900 = vmatprep.subr.bf16.mxu0 0
          %4901 = vmatpush2.bf16.msra.mxu0 0
          %4902 = vmatprep.subr.bf16.mxu0 0
          %4903 = vmatpush2.bf16.msra.mxu0 0
          %4904 = vmatprep.subr.bf16.mxu0 0
          %4905 = vmatpush2.bf16.msra.mxu0 0
          %4906 = vmatprep.subr.bf16.mxu0 0
          %4907 = vmatpush2.bf16.msra.mxu0 0
          %4908 = vmatprep.subr.bf16.mxu0 0
          %4909 = vmatpush2.bf16.msra.mxu0 0
          %4910 = vmatprep.subr.bf16.mxu0 0
          %4911 = vmatpush2.bf16.msra.mxu0 0
          %4912 = vmatprep.mubr.bf16.mxu0 0
          %4913 = vmatmul.mubr.bf16.gmra.mxu0 %v4875
          %v4914 = vpop.f32.mrf.mxu0
          %v4915 = vadd.f32 0.0, %v4914
          %v4916 = vpop.f32.mrf.mxu0
          %v4917 = vpop.f32.mrf.mxu0
          %v4918 = vpop.f32.mrf.mxu0
          %4919 = vdwg.mxu0
          %v4920 = vcombine.low %v4225, %v4593
          %v4922 = vunpack.c.l.s4 1983009808
          %v4923 = vunpack.c.0.s8 %v4922
          %v4924 = vlaneseq
          %v4925 = vshrl.u32 %v4924, 7
          %v4926 = vsub.s32 %v4923, %v4925
          %v4927 = vrot.slane %v4920, %v4926
          %v4928 = vcombine.low %v4409, %v4777
          %v4930 = vunpack.c.l.s4 1983009808
          %v4931 = vunpack.c.0.s8 %v4930
          %v4932 = vlaneseq
          %v4933 = vshrl.u32 %v4932, 7
          %v4934 = vsub.s32 %v4931, %v4933
          %v4935 = vrot.slane %v4928, %v4934
          %v4936 = vcombine.low %v4927, %v4935
          %v4937 = vcombine.high %v4927, %v4935
          %v4939 = vunpack.c.l.s4 1934713408
          %v4940 = vunpack.c.0.s8 %v4939
          %v4941 = vlaneseq
          %v4942 = vshrl.u32 %v4941, 7
          %v4943 = vsub.s32 %v4940, %v4942
          %v4944 = vrot.slane %v4936, %v4943
          %v4946 = vunpack.c.l.s4 1934713408
          %v4947 = vunpack.c.0.s8 %v4946
          %v4948 = vlaneseq
          %v4949 = vshrl.u32 %v4948, 7
          %v4950 = vsub.s32 %v4947, %v4949
          %v4951 = vrot.slane %v4937, %v4950
          %v4952 = vcombine.high %v4944, 0.0
          %v4953 = vcombine.high %v4951, 0.0
          %v4954 = vcombine.low %v4271, %v4639
          %v4956 = vunpack.c.l.s4 1983009808
          %v4957 = vunpack.c.0.s8 %v4956
          %v4958 = vlaneseq
          %v4959 = vshrl.u32 %v4958, 7
          %v4960 = vsub.s32 %v4957, %v4959
          %v4961 = vrot.slane %v4954, %v4960
          %v4962 = vcombine.low %v4455, %v4823
          %v4964 = vunpack.c.l.s4 1983009808
          %v4965 = vunpack.c.0.s8 %v4964
          %v4966 = vlaneseq
          %v4967 = vshrl.u32 %v4966, 7
          %v4968 = vsub.s32 %v4965, %v4967
          %v4969 = vrot.slane %v4962, %v4968
          %v4970 = vcombine.low %v4961, %v4969
          %v4971 = vcombine.high %v4961, %v4969
          %v4973 = vunpack.c.l.s4 1934713408
          %v4974 = vunpack.c.0.s8 %v4973
          %v4975 = vlaneseq
          %v4976 = vshrl.u32 %v4975, 7
          %v4977 = vsub.s32 %v4974, %v4976
          %v4978 = vrot.slane %v4970, %v4977
          %v4980 = vunpack.c.l.s4 1934713408
          %v4981 = vunpack.c.0.s8 %v4980
          %v4982 = vlaneseq
          %v4983 = vshrl.u32 %v4982, 7
          %v4984 = vsub.s32 %v4981, %v4983
          %v4985 = vrot.slane %v4971, %v4984
          %v4986 = vcombine.high %v4978, 0.0
          %v4987 = vcombine.high %v4985, 0.0
          %v4988 = vcombine.low %v4317, %v4685
          %v4990 = vunpack.c.l.s4 1983009808
          %v4991 = vunpack.c.0.s8 %v4990
          %v4992 = vlaneseq
          %v4993 = vshrl.u32 %v4992, 7
          %v4994 = vsub.s32 %v4991, %v4993
          %v4995 = vrot.slane %v4988, %v4994
          %v4996 = vcombine.low %v4501, %v4869
          %v4998 = vunpack.c.l.s4 1983009808
          %v4999 = vunpack.c.0.s8 %v4998
          %v5000 = vlaneseq
          %v5001 = vshrl.u32 %v5000, 7
          %v5002 = vsub.s32 %v4999, %v5001
          %v5003 = vrot.slane %v4996, %v5002
          %v5004 = vcombine.low %v4995, %v5003
          %v5005 = vcombine.high %v4995, %v5003
          %v5007 = vunpack.c.l.s4 1934713408
          %v5008 = vunpack.c.0.s8 %v5007
          %v5009 = vlaneseq
          %v5010 = vshrl.u32 %v5009, 7
          %v5011 = vsub.s32 %v5008, %v5010
          %v5012 = vrot.slane %v5004, %v5011
          %v5014 = vunpack.c.l.s4 1934713408
          %v5015 = vunpack.c.0.s8 %v5014
          %v5016 = vlaneseq
          %v5017 = vshrl.u32 %v5016, 7
          %v5018 = vsub.s32 %v5015, %v5017
          %v5019 = vrot.slane %v5005, %v5018
          %v5020 = vcombine.high %v5012, 0.0
          %v5021 = vcombine.high %v5019, 0.0
          %v5022 = vcombine.low %v4363, %v4731
          %v5024 = vunpack.c.l.s4 1983009808
          %v5025 = vunpack.c.0.s8 %v5024
          %v5026 = vlaneseq
          %v5027 = vshrl.u32 %v5026, 7
          %v5028 = vsub.s32 %v5025, %v5027
          %v5029 = vrot.slane %v5022, %v5028
          %v5030 = vcombine.low %v4547, %v4915
          %v5032 = vunpack.c.l.s4 1983009808
          %v5033 = vunpack.c.0.s8 %v5032
          %v5034 = vlaneseq
          %v5035 = vshrl.u32 %v5034, 7
          %v5036 = vsub.s32 %v5033, %v5035
          %v5037 = vrot.slane %v5030, %v5036
          %v5038 = vcombine.low %v5029, %v5037
          %v5039 = vcombine.high %v5029, %v5037
          %v5041 = vunpack.c.l.s4 1934713408
          %v5042 = vunpack.c.0.s8 %v5041
          %v5043 = vlaneseq
          %v5044 = vshrl.u32 %v5043, 7
          %v5045 = vsub.s32 %v5042, %v5044
          %v5046 = vrot.slane %v5038, %v5045
          %v5048 = vunpack.c.l.s4 1934713408
          %v5049 = vunpack.c.0.s8 %v5048
          %v5050 = vlaneseq
          %v5051 = vshrl.u32 %v5050, 7
          %v5052 = vsub.s32 %v5049, %v5051
          %v5053 = vrot.slane %v5039, %v5052
          %v5054 = vcombine.high %v5046, 0.0
          %v5055 = vcombine.high %v5053, 0.0
          %v5056 = vcombine.low %v4944, %v4951
          %v5058 = vunpack.c.l.s4 1983009808
          %v5059 = vunpack.c.0.s8 %v5058
          %v5060 = vlaneseq
          %v5061 = vshrl.u32 %v5060, 7
          %v5062 = vsub.s32 %v5059, %v5061
          %v5063 = vrot.slane %v5056, %v5062
          %v5064 = vcombine.low %v4952, %v4953
          %v5066 = vunpack.c.l.s4 1983009808
          %v5067 = vunpack.c.0.s8 %v5066
          %v5068 = vlaneseq
          %v5069 = vshrl.u32 %v5068, 7
          %v5070 = vsub.s32 %v5067, %v5069
          %v5071 = vrot.slane %v5064, %v5070
          %v5072 = vcombine.low %v5063, %v5071
          %v5073 = vcombine.high %v5063, %v5071
          %v5075 = vunpack.c.l.s4 1934713408
          %v5076 = vunpack.c.0.s8 %v5075
          %v5077 = vlaneseq
          %v5078 = vshrl.u32 %v5077, 7
          %v5079 = vsub.s32 %v5076, %v5078
          %v5080 = vrot.slane %v5072, %v5079
          %v5082 = vunpack.c.l.s4 1934713408
          %v5083 = vunpack.c.0.s8 %v5082
          %v5084 = vlaneseq
          %v5085 = vshrl.u32 %v5084, 7
          %v5086 = vsub.s32 %v5083, %v5085
          %v5087 = vrot.slane %v5073, %v5086
          %v5088 = vcombine.high %v5080, 0.0
          %v5089 = vcombine.high %v5087, 0.0
          %v5090 = vcombine.low %v4978, %v4985
          %v5092 = vunpack.c.l.s4 1983009808
          %v5093 = vunpack.c.0.s8 %v5092
          %v5094 = vlaneseq
          %v5095 = vshrl.u32 %v5094, 7
          %v5096 = vsub.s32 %v5093, %v5095
          %v5097 = vrot.slane %v5090, %v5096
          %v5098 = vcombine.low %v4986, %v4987
          %v5100 = vunpack.c.l.s4 1983009808
          %v5101 = vunpack.c.0.s8 %v5100
          %v5102 = vlaneseq
          %v5103 = vshrl.u32 %v5102, 7
          %v5104 = vsub.s32 %v5101, %v5103
          %v5105 = vrot.slane %v5098, %v5104
          %v5106 = vcombine.low %v5097, %v5105
          %v5107 = vcombine.high %v5097, %v5105
          %v5109 = vunpack.c.l.s4 1934713408
          %v5110 = vunpack.c.0.s8 %v5109
          %v5111 = vlaneseq
          %v5112 = vshrl.u32 %v5111, 7
          %v5113 = vsub.s32 %v5110, %v5112
          %v5114 = vrot.slane %v5106, %v5113
          %v5116 = vunpack.c.l.s4 1934713408
          %v5117 = vunpack.c.0.s8 %v5116
          %v5118 = vlaneseq
          %v5119 = vshrl.u32 %v5118, 7
          %v5120 = vsub.s32 %v5117, %v5119
          %v5121 = vrot.slane %v5107, %v5120
          %v5122 = vcombine.high %v5114, 0.0
          %v5123 = vcombine.high %v5121, 0.0
          %v5124 = vcombine.low %v5012, %v5019
          %v5126 = vunpack.c.l.s4 1983009808
          %v5127 = vunpack.c.0.s8 %v5126
          %v5128 = vlaneseq
          %v5129 = vshrl.u32 %v5128, 7
          %v5130 = vsub.s32 %v5127, %v5129
          %v5131 = vrot.slane %v5124, %v5130
          %v5132 = vcombine.low %v5020, %v5021
          %v5134 = vunpack.c.l.s4 1983009808
          %v5135 = vunpack.c.0.s8 %v5134
          %v5136 = vlaneseq
          %v5137 = vshrl.u32 %v5136, 7
          %v5138 = vsub.s32 %v5135, %v5137
          %v5139 = vrot.slane %v5132, %v5138
          %v5140 = vcombine.low %v5131, %v5139
          %v5141 = vcombine.high %v5131, %v5139
          %v5143 = vunpack.c.l.s4 1934713408
          %v5144 = vunpack.c.0.s8 %v5143
          %v5145 = vlaneseq
          %v5146 = vshrl.u32 %v5145, 7
          %v5147 = vsub.s32 %v5144, %v5146
          %v5148 = vrot.slane %v5140, %v5147
          %v5150 = vunpack.c.l.s4 1934713408
          %v5151 = vunpack.c.0.s8 %v5150
          %v5152 = vlaneseq
          %v5153 = vshrl.u32 %v5152, 7
          %v5154 = vsub.s32 %v5151, %v5153
          %v5155 = vrot.slane %v5141, %v5154
          %v5156 = vcombine.high %v5148, 0.0
          %v5157 = vcombine.high %v5155, 0.0
          %v5158 = vcombine.low %v5046, %v5053
          %v5160 = vunpack.c.l.s4 1983009808
          %v5161 = vunpack.c.0.s8 %v5160
          %v5162 = vlaneseq
          %v5163 = vshrl.u32 %v5162, 7
          %v5164 = vsub.s32 %v5161, %v5163
          %v5165 = vrot.slane %v5158, %v5164
          %v5166 = vcombine.low %v5054, %v5055
          %v5168 = vunpack.c.l.s4 1983009808
          %v5169 = vunpack.c.0.s8 %v5168
          %v5170 = vlaneseq
          %v5171 = vshrl.u32 %v5170, 7
          %v5172 = vsub.s32 %v5169, %v5171
          %v5173 = vrot.slane %v5166, %v5172
          %v5174 = vcombine.low %v5165, %v5173
          %v5175 = vcombine.high %v5165, %v5173
          %v5177 = vunpack.c.l.s4 1934713408
          %v5178 = vunpack.c.0.s8 %v5177
          %v5179 = vlaneseq
          %v5180 = vshrl.u32 %v5179, 7
          %v5181 = vsub.s32 %v5178, %v5180
          %v5182 = vrot.slane %v5174, %v5181
          %v5184 = vunpack.c.l.s4 1934713408
          %v5185 = vunpack.c.0.s8 %v5184
          %v5186 = vlaneseq
          %v5187 = vshrl.u32 %v5186, 7
          %v5188 = vsub.s32 %v5185, %v5187
          %v5189 = vrot.slane %v5175, %v5188
          %v5190 = vcombine.high %v5182, 0.0
          %v5191 = vcombine.high %v5189, 0.0
          %v5196 = vcombine.low %v5080, %v5114
          %v5197 = vcombine.low %v5148, %v5182
          %v5204 = vcombine.low %v5088, %v5122
          %v5205 = vcombine.low %v5156, %v5190
          %5206 = vrot.lane.b32.xlu0 %v5204, 32
          %v5207 = vpop.permute.xlu0 %5206
          %5208 = vrot.lane.b32.xlu0 %v5205, 32
          %v5209 = vpop.permute.xlu0 %5208
          %v5216 = vcombine.low %v5087, %v5121
          %v5217 = vcombine.low %v5155, %v5189
          %5218 = vrot.lane.b32.xlu0 %v5216, 64
          %v5219 = vpop.permute.xlu0 %5218
          %5220 = vrot.lane.b32.xlu0 %v5217, 64
          %v5221 = vpop.permute.xlu0 %5220
          %v5228 = vcombine.low %v5089, %v5123
          %v5229 = vcombine.low %v5157, %v5191
          %5230 = vrot.lane.b32.xlu0 %v5228, 96
          %v5231 = vpop.permute.xlu0 %5230
          %5232 = vrot.lane.b32.xlu0 %v5229, 96
          %v5233 = vpop.permute.xlu0 %5232
          %v5236 = vsel %vm3252, %v5196, %v5207
          %v5237 = vsel %vm3252, %v5197, %v5209
          %vm5238 = vcmask 523264
          %v5239 = vsel %vm5238, %v5236, %v5219
          %v5240 = vsel %vm5238, %v5237, %v5221
          %vm5241 = vcmask 785408
          %v5242 = vsel %vm5241, %v5239, %v5231
          %v5243 = vsel %vm5241, %v5240, %v5233
          %v5244 = vpack.c.bf16 %v5243, %v5242
          %v5246 = vunpack.c.l.b16 %v5244
          %v5247 = vunpack.c.h.b16 %v5244
          %v5248 = vpack.c.b16 %v5246, %v5246
          %v5249 = vpack.c.b16 %v5247, %v5247
          %5252 = vst [vmem:[%s359] sm:$0xf] %v5248
          %5253 = vst [vmem:[%s359 + $0x4] sm:$0xf] %v5249
        $region73: #{fd_attention_forward.4} parent=60 // pred_fallthru
          _
        %s5254 = sand.u32 %s62, 1
        %s5255 = sand.u32 %s62, 1
        %s5256 = smul.addr %s5255, 8
        %s5257 = scalar_lea.vmem [#allocation3], %s5256
        // Predicated region
        $region74: #{fd_attention_forward.4} parent=60 // pred_check
          %p5258 = pneg %p72
        $region75: #{fd_attention_forward.4} parent=60 // pred_check_branch
          %5260 = sbr.rel (%p5258) target = $region77
        $region76: #{fd_attention_forward.4} parent=60 // pred_region
          %s5261 = smul.addr %s16, 4
          %s5262 = sadd.s32 %s17, %s5261
          %s5263 = smul.addr %s5262, 4
          %s5264 = scalar_lea.vmem %s1, %s5263
          // Predicated region
          $region78: #{fd_attention_forward.4} parent=76 // pred_check
            _
          $region79: #{fd_attention_forward.4} parent=76 // pred_check_branch
            %5266 = sbr.rel (0) target = $region81
          $region80: #{fd_attention_forward.4} parent=76 // pred_region
            // Predicated region
            $region82: #{fd_attention_forward.4} parent=80 // pred_check
              _
            $region83: #{fd_attention_forward.4} parent=80 // pred_check_branch
              %5268 = sbr.rel target = $region85
            $region84: #{fd_attention_forward.4} parent=80 // pred_region
              // Predicated region
              $region97: #{fd_attention_forward.4} parent=84 // pred_check
                _
              $region98: #{fd_attention_forward.4} parent=84 // pred_check_branch
                %5286 = sbr.rel (0) target = $region100
              $region99: #{fd_attention_forward.4} parent=84 // pred_region
                loop: start=0, step=1, limit=1
                $region101: #{fd_attention_forward.4} parent=99 // loop_pre_header
                  _
                $region102: #{fd_attention_forward.4} parent=99 // loop_header
                  %s5288 = sphi 0, %s5292
                  %p5289 = scmp.ge.s32.totalorder %s5288, 1
                  %s5293 = sphi %s5257, %s5257
                  %s5294 = sphi %s5264, %s5264
                $region103: #{fd_attention_forward.4} parent=99 // loop_header_branch
                  %5291 = sbr.rel (%p5289) target = $region107
                $region104: #{fd_attention_forward.4} parent=99 // loop_body
                  _
                $region105: #{fd_attention_forward.4} parent=99 // loop_footer
                  %s5292 = sadd.s32 1, %s5288
                $region106: #{fd_attention_forward.4} parent=99 // loop_footer_branch
                  %5287 = sbr.rel target = $region102
                $region107: #{fd_attention_forward.4} parent=99 // loop_exit
                  _
                %s5296 = ssub.s32 16, 1
                loop: start=0, step=1, limit=1
                $region108: #{fd_attention_forward.4} parent=99 // loop_pre_header
                  _
                $region109: #{fd_attention_forward.4} parent=99 // loop_header
                  %s5298 = sphi 0, %s5302
                  %p5299 = scmp.ge.s32.totalorder %s5298, 1
                  %s5303 = sphi %s5257, %s5257
                  %s5304 = sphi %s5264, %s5264
                $region110: #{fd_attention_forward.4} parent=99 // loop_header_branch
                  %5301 = sbr.rel (%p5299) target = $region114
                $region111: #{fd_attention_forward.4} parent=99 // loop_body
                  %v5305 = vld [vmem:[%s5303] sm:%s5296]
                  %5306 = vst [vmem:[%s5304] sm:%s5296] %v5305
                  %v5307 = vld [vmem:[%s5303 + $0x4] sm:%s5296]
                  %5308 = vst [vmem:[%s5304 + $0x8] sm:%s5296] %v5307
                $region112: #{fd_attention_forward.4} parent=99 // loop_footer
                  %s5302 = sadd.s32 1, %s5298
                $region113: #{fd_attention_forward.4} parent=99 // loop_footer_branch
                  %5297 = sbr.rel target = $region109
                $region114: #{fd_attention_forward.4} parent=99 // loop_exit
                  _
              $region100: #{fd_attention_forward.4} parent=84 // pred_fallthru
                _
            $region85: #{fd_attention_forward.4} parent=80 // pred_fallthru
              _
            // Predicated region
            $region86: #{fd_attention_forward.4} parent=80 // pred_check
              _
            $region87: #{fd_attention_forward.4} parent=80 // pred_check_branch
              %5270 = sbr.rel (0) target = $region89
            $region88: #{fd_attention_forward.4} parent=80 // pred_region
              %s5272 = ssub.s32 16, 1
              loop: start=0, step=1, limit=1
              $region90: #{fd_attention_forward.4} parent=88 // loop_pre_header
                _
              $region91: #{fd_attention_forward.4} parent=88 // loop_header
                %s5274 = sphi 0, %s5278
                %p5275 = scmp.ge.s32.totalorder %s5274, 1
                %s5279 = sphi %s5257, %s5257
                %s5280 = sphi %s5264, %s5264
              $region92: #{fd_attention_forward.4} parent=88 // loop_header_branch
                %5277 = sbr.rel (%p5275) target = $region96
              $region93: #{fd_attention_forward.4} parent=88 // loop_body
                %v5281 = vld [vmem:[%s5279] sm:%s5272]
                %5282 = vst [vmem:[%s5280] sm:%s5272] %v5281
                %v5283 = vld [vmem:[%s5279 + $0x4] sm:%s5272]
                %5284 = vst [vmem:[%s5280 + $0x8] sm:%s5272] %v5283
              $region94: #{fd_attention_forward.4} parent=88 // loop_footer
                %s5278 = sadd.s32 1, %s5274
              $region95: #{fd_attention_forward.4} parent=88 // loop_footer_branch
                %5273 = sbr.rel target = $region91
              $region96: #{fd_attention_forward.4} parent=88 // loop_exit
                _
            $region89: #{fd_attention_forward.4} parent=80 // pred_fallthru
              _
          $region81: #{fd_attention_forward.4} parent=76 // pred_fallthru
            _
          %5309 = vnop
        $region77: #{fd_attention_forward.4} parent=60 // pred_fallthru
          _
      $region61: #{fd_attention_forward.4} parent=5 // pred_fallthru
        _
      %p5310 = scmp.le.s32.totalorder 2, %s7
      // Predicated region
      $region115: #{fd_attention_forward.4} parent=5 // pred_check
        %p5311 = pneg %p5310
      $region116: #{fd_attention_forward.4} parent=5 // pred_check_branch
        %5313 = sbr.rel (%p5311) target = $region118
      $region117: #{fd_attention_forward.4} parent=5 // pred_region
        %s5314 = ssub.s32 %s7, 2
        // Predicated region
        $region119: #{fd_attention_forward.4} parent=117 // pred_check
          %p5315 = pneg %p78
        $region120: #{fd_attention_forward.4} parent=117 // pred_check_branch
          %5317 = sbr.rel (%p5315) target = $region122
        $region121: #{fd_attention_forward.4} parent=117 // pred_region
          %s5318 = sand.u32 %s63, 1
          %s5319 = sand.u32 %s63, 1
          %s5320 = smul.addr %s5319, 8
          %s5321 = scalar_lea.vmem [#allocation3], %s5320
        $region122: #{fd_attention_forward.4} parent=117 // pred_fallthru
          _
      $region118: #{fd_attention_forward.4} parent=5 // pred_fallthru
        _
    $region6: #{fd_attention_forward.4} parent=1 // loop_footer
      %s11 = sadd.s32 1, %s7
    $region7: #{fd_attention_forward.4} parent=1 // loop_footer_branch
      %6 = sbr.rel target = $region3
    $region8: #{fd_attention_forward.4} parent=1 // loop_exit
      _

</llo_original>
